<compile_context>
chip_gen: v7x
topology: tpu7x:2x2x1
jax: 0.10.0
libtpu: 0.0.40
codegen_flags: <defaults>
</compile_context>

<pallas_src>
import math

import jax
import jax.numpy as jnp
from jax.experimental import pallas as pl
from jax.experimental.pallas import tpu as pltpu

# ---------------- problem sizes (small, consistent with the module) -------------
B, S, SK = 2, 8, 8          # batch, decoder seq len, encoder seq len
E, H, F = 32, 4, 64         # embed_dim, num_heads, ff_dim
DH = E // H                 # head dim
EPS = 1e-5                  # nn.LayerNorm default eps
SCALE = 1.0 / math.sqrt(DH)


def _layernorm(x, gamma, beta):
    mu = jnp.mean(x, axis=-1, keepdims=True)
    var = jnp.mean((x - mu) ** 2, axis=-1, keepdims=True)
    return (x - mu) * jax.lax.rsqrt(var + EPS) * gamma + beta


def decoder_layer_kernel(
        # activations / masks
        x_ref, enc_ref, smask_ref, cmask_ref,
        # self-attention params (fused qkv)
        wqkv1_ref, bqkv1_ref, wo1_ref, bo1_ref,
        # cross-attention params (q separate, fused kv)
        wq2_ref, bq2_ref, wkv2_ref, bkv2_ref, wo2_ref, bo2_ref,
        # feed-forward params
        w1_ref, b1_ref, w2_ref, b2_ref,
        # layer-norm params packed as (3, E)
        ln_g_ref, ln_b_ref,
        # outputs
        out_ref, self_attn_ref, cross_attn_ref):

    x = x_ref[...]        # (B*S, E)   both batch elements, row-stacked
    enc = enc_ref[...]    # (B*SK, E)

    # Head-/batch-invariant additive mask bias, computed & tiled ONCE.
    smask_bias = jnp.concatenate(
        [jnp.where(smask_ref[...] == 0.0, -1e9, 0.0)] * (B * H), axis=0)   # (B*H*S, S)
    cmask_bias = jnp.concatenate(
        [jnp.where(cmask_ref[...] == 0.0, -1e9, 0.0)] * (B * H), axis=0)   # (B*H*S, SK)

    def attention(q, k, v, skv, bias_tiled):
        # q: (B*S, E) pre-scaled; k, v: (B*skv, E); bias_tiled: (B*H*S, skv)
        # per-(batch, head) scores, stacked along rows -> one softmax pass
        blocks = []
        for b in range(B):
            for h in range(H):
                qh = q[b * S:(b + 1) * S, h * DH:(h + 1) * DH]
                kh = k[b * skv:(b + 1) * skv, h * DH:(h + 1) * DH]
                blocks.append(jnp.dot(qh, kh.T, preferred_element_type=jnp.float32))
        scores = jnp.concatenate(blocks, axis=0) + bias_tiled      # (B*H*S, skv)
        attn = jax.nn.softmax(scores, axis=-1)                     # single pass
        # per-(batch, head) weighted sums, re-assembled into a (B*S, E) slab
        ctx_rows = []
        for b in range(B):
            cols = []
            for h in range(H):
                vh = v[b * skv:(b + 1) * skv, h * DH:(h + 1) * DH]
                p = attn[(b * H + h) * S:(b * H + h + 1) * S, :]
                cols.append(jnp.dot(p, vh, preferred_element_type=jnp.float32))
            ctx_rows.append(jnp.concatenate(cols, axis=-1))
        ctx = jnp.concatenate(ctx_rows, axis=0)                    # (B*S, E)
        return ctx, attn

    # ---------------- self-attention + residual + norm1 ----------------
    qkv = jnp.dot(x, wqkv1_ref[...], preferred_element_type=jnp.float32) + bqkv1_ref[...]
    q = qkv[:, :E] * SCALE
    k = qkv[:, E:2 * E]
    v = qkv[:, 2 * E:]
    ctx, attn = attention(q, k, v, S, smask_bias)
    self_attn_ref[...] = attn                                      # one store
    sa = jnp.dot(ctx, wo1_ref[...], preferred_element_type=jnp.float32) + bo1_ref[...]
    x = _layernorm(x + sa, ln_g_ref[0:1, :], ln_b_ref[0:1, :])

    # ---------------- cross-attention + residual + norm2 ----------------
    q = (jnp.dot(x, wq2_ref[...], preferred_element_type=jnp.float32) + bq2_ref[...]) * SCALE
    kv = jnp.dot(enc, wkv2_ref[...], preferred_element_type=jnp.float32) + bkv2_ref[...]
    k = kv[:, :E]
    v = kv[:, E:]
    ctx, attn = attention(q, k, v, SK, cmask_bias)
    cross_attn_ref[...] = attn                                     # one store
    ca = jnp.dot(ctx, wo2_ref[...], preferred_element_type=jnp.float32) + bo2_ref[...]
    x = _layernorm(x + ca, ln_g_ref[1:2, :], ln_b_ref[1:2, :])

    # ---------------- positionwise feed-forward + residual + norm3 -------
    h1 = jnp.maximum(jnp.dot(x, w1_ref[...], preferred_element_type=jnp.float32) + b1_ref[...], 0.0)
    ff = jnp.dot(h1, w2_ref[...], preferred_element_type=jnp.float32) + b2_ref[...]
    x = _layernorm(x + ff, ln_g_ref[2:3, :], ln_b_ref[2:3, :])

    out_ref[...] = x


def decoder_layer(x, enc, self_mask, cross_mask, params):
    """params: flat list of the 26 original (PyTorch-style) parameter arrays."""
    (wq1, bq1, wk1, bk1, wv1, bv1, wo1, bo1,
     wq2, bq2, wk2, bk2, wv2, bv2, wo2, bo2,
     w1, b1, w2, b2, g1, be1, g2, be2, g3, be3) = params

    # ---- pack / fuse parameters offline (fewer, larger kernel inputs & DMAs) ----
    wqkv1 = jnp.concatenate([wq1, wk1, wv1], axis=1)       # (E, 3E)
    bqkv1 = jnp.concatenate([bq1, bk1, bv1], axis=1)       # (1, 3E)
    wkv2 = jnp.concatenate([wk2, wv2], axis=1)             # (E, 2E)
    bkv2 = jnp.concatenate([bk2, bv2], axis=1)             # (1, 2E)
    ln_g = jnp.concatenate([g1, g2, g3], axis=0)           # (3, E)
    ln_b = jnp.concatenate([be1, be2, be3], axis=0)        # (3, E)

    kernel_inputs = [
        x.reshape(B * S, E), enc.reshape(B * SK, E), self_mask, cross_mask,
        wqkv1, bqkv1, wo1, bo1,
        wq2, bq2, wkv2, bkv2, wo2, bo2,
        w1, b1, w2, b2, ln_g, ln_b,
    ]

    def full_spec(a):
        return pl.BlockSpec(a.shape, lambda i, n=a.ndim: (0,) * n)

    out_shape = (
        jax.ShapeDtypeStruct((B * S, E), jnp.float32),         # decoder output rows
        jax.ShapeDtypeStruct((B * H * S, S), jnp.float32),     # self-attn weights (stacked)
        jax.ShapeDtypeStruct((B * H * S, SK), jnp.float32),    # cross-attn weights (stacked)
    )
    out_specs = tuple(pl.BlockSpec(s.shape, lambda i: (0, 0)) for s in out_shape)

    out2, sattn2, cattn2 = pl.pallas_call(
        decoder_layer_kernel,
        out_shape=out_shape,
        grid_spec=pltpu.PrefetchScalarGridSpec(
            num_scalar_prefetch=0,
            grid=(1,),                      # single step: batch folded into one invocation
            in_specs=[full_spec(a) for a in kernel_inputs],
            out_specs=out_specs,
        ),
        compiler_params=pltpu.CompilerParams(
            dimension_semantics=("arbitrary",)),
    )(*kernel_inputs)

    return (out2.reshape(B, S, E),
            sattn2.reshape(B, H, S, S),
            cattn2.reshape(B, H, S, SK))


# ------------------------- pure-JAX reference (for checking) --------------------
def ref_mha(qx, kvx, wq, bq, wk, bk, wv, bv, wo, bo, mask):
    q = qx @ wq + bq
    k = kvx @ wk + bk
    v = kvx @ wv + bv
    Bq, Sq, _ = q.shape
    Skv = k.shape[1]
    qh = q.reshape(Bq, Sq, H, DH).transpose(0, 2, 1, 3)
    kh = k.reshape(Bq, Skv, H, DH).transpose(0, 2, 1, 3)
    vh = v.reshape(Bq, Skv, H, DH).transpose(0, 2, 1, 3)
    scores = jnp.einsum('bhqd,bhkd->bhqk', qh, kh) / math.sqrt(DH)
    scores = jnp.where(mask[None, None] == 0.0, -1e9, scores)
    attn = jax.nn.softmax(scores, axis=-1)
    oh = jnp.einsum('bhqk,bhkd->bhqd', attn, vh)
    o = oh.transpose(0, 2, 1, 3).reshape(Bq, Sq, E) @ wo + bo
    return o, attn


def ref_decoder_layer(x, enc, smask, cmask, p):
    (wq1, bq1, wk1, bk1, wv1, bv1, wo1, bo1,
     wq2, bq2, wk2, bk2, wv2, bv2, wo2, bo2,
     w1, b1, w2, b2, g1, be1, g2, be2, g3, be3) = p
    sa, saw = ref_mha(x, x, wq1, bq1, wk1, bk1, wv1, bv1, wo1, bo1, smask)
    x = _layernorm(x + sa, g1, be1)
    ca, caw = ref_mha(x, enc, wq2, bq2, wk2, bk2, wv2, bv2, wo2, bo2, cmask)
    x = _layernorm(x + ca, g2, be2)
    ff = jnp.maximum(x @ w1 + b1, 0.0) @ w2 + b2
    x = _layernorm(x + ff, g3, be3)
    return x, saw, caw


# ------------------------------------ main ---------------------------------------
if __name__ == "__main__":
    key = jax.random.PRNGKey(0)
    ks = jax.random.split(key, 32)
    ki = iter(range(32))

    def nrm(shape, scale=0.05):
        return (scale * jax.random.normal(ks[next(ki)], shape)).astype(jnp.float32)

    x = nrm((B, S, E), 1.0)
    enc = nrm((B, SK, E), 1.0)

    # masks: 1.0 = attend, 0.0 = masked (PyTorch masked_fill(mask == 0, -1e9))
    self_mask = jnp.tril(jnp.ones((S, S), jnp.float32))
    cross_mask = jnp.ones((S, SK), jnp.float32)

    def attn_params():
        return [nrm((E, E)), nrm((1, E)),   # Wq, bq
                nrm((E, E)), nrm((1, E)),   # Wk, bk
                nrm((E, E)), nrm((1, E)),   # Wv, bv
                nrm((E, E)), nrm((1, E))]   # Wo, bo

    params = (
        attn_params() +                     # self-attention
        attn_params() +                     # cross-attention
        [nrm((E, F)), nrm((1, F)),          # FFN layer 1
         nrm((F, E)), nrm((1, E))] +        # FFN layer 2
        [jnp.ones((1, E), jnp.float32), jnp.zeros((1, E), jnp.float32),   # norm1
         jnp.ones((1, E), jnp.float32), jnp.zeros((1, E), jnp.float32),   # norm2
         jnp.ones((1, E), jnp.float32), jnp.zeros((1, E), jnp.float32)]   # norm3
    )

    out, self_w, cross_w = decoder_layer(x, enc, self_mask, cross_mask, params)
    jax.block_until_ready((out, self_w, cross_w))

    r_out, r_self_w, r_cross_w = ref_decoder_layer(x, enc, self_mask, cross_mask, params)
    assert jnp.allclose(out, r_out, rtol=1e-4, atol=1e-4)
    assert jnp.allclose(self_w, r_self_w, rtol=1e-4, atol=1e-4)
    assert jnp.allclose(cross_w, r_cross_w, rtol=1e-4, atol=1e-4)

    print("KERNEL_OK")
</pallas_src>

<mosaic_0001>
module attributes {stable_mosaic.version = 11 : i64} {
  func.func @decoder_layer_kernel(%arg0: i32, %arg1: memref<16x32xf32, #tpu.memory_space<vmem>>, %arg2: memref<16x32xf32, #tpu.memory_space<vmem>>, %arg3: memref<8x8xf32, #tpu.memory_space<vmem>>, %arg4: memref<8x8xf32, #tpu.memory_space<vmem>>, %arg5: memref<32x96xf32, #tpu.memory_space<vmem>>, %arg6: memref<1x96xf32, #tpu.memory_space<vmem>>, %arg7: memref<32x32xf32, #tpu.memory_space<vmem>>, %arg8: memref<1x32xf32, #tpu.memory_space<vmem>>, %arg9: memref<32x32xf32, #tpu.memory_space<vmem>>, %arg10: memref<1x32xf32, #tpu.memory_space<vmem>>, %arg11: memref<32x64xf32, #tpu.memory_space<vmem>>, %arg12: memref<1x64xf32, #tpu.memory_space<vmem>>, %arg13: memref<32x32xf32, #tpu.memory_space<vmem>>, %arg14: memref<1x32xf32, #tpu.memory_space<vmem>>, %arg15: memref<32x64xf32, #tpu.memory_space<vmem>>, %arg16: memref<1x64xf32, #tpu.memory_space<vmem>>, %arg17: memref<64x32xf32, #tpu.memory_space<vmem>>, %arg18: memref<1x32xf32, #tpu.memory_space<vmem>>, %arg19: memref<3x32xf32, #tpu.memory_space<vmem>>, %arg20: memref<3x32xf32, #tpu.memory_space<vmem>>, %arg21: memref<16x32xf32, #tpu.memory_space<vmem>>, %arg22: memref<64x8xf32, #tpu.memory_space<vmem>>, %arg23: memref<64x8xf32, #tpu.memory_space<vmem>>) attributes {dimension_semantics = [#tpu.dimension_semantics<arbitrary>], iteration_bounds = array<i64: 1>, scalar_prefetch = 0 : i64, scratch_operands = 0 : i64, tpu.core_type = #tpu.core_type<tc>, window_params = [{pipeline_mode = #tpu.pipeline_mode<synchronous>, transform_indices = @transform_0, window_bounds = array<i64: 16, 32>}, {pipeline_mode = #tpu.pipeline_mode<synchronous>, transform_indices = @transform_1, window_bounds = array<i64: 16, 32>}, {pipeline_mode = #tpu.pipeline_mode<synchronous>, transform_indices = @transform_2, window_bounds = array<i64: 8, 8>}, {pipeline_mode = #tpu.pipeline_mode<synchronous>, transform_indices = @transform_3, window_bounds = array<i64: 8, 8>}, {pipeline_mode = #tpu.pipeline_mode<synchronous>, transform_indices = @transform_4, window_bounds = array<i64: 32, 96>}, {pipeline_mode = #tpu.pipeline_mode<synchronous>, transform_indices = @transform_5, window_bounds = array<i64: 1, 96>}, {pipeline_mode = #tpu.pipeline_mode<synchronous>, transform_indices = @transform_6, window_bounds = array<i64: 32, 32>}, {pipeline_mode = #tpu.pipeline_mode<synchronous>, transform_indices = @transform_7, window_bounds = array<i64: 1, 32>}, {pipeline_mode = #tpu.pipeline_mode<synchronous>, transform_indices = @transform_8, window_bounds = array<i64: 32, 32>}, {pipeline_mode = #tpu.pipeline_mode<synchronous>, transform_indices = @transform_9, window_bounds = array<i64: 1, 32>}, {pipeline_mode = #tpu.pipeline_mode<synchronous>, transform_indices = @transform_10, window_bounds = array<i64: 32, 64>}, {pipeline_mode = #tpu.pipeline_mode<synchronous>, transform_indices = @transform_11, window_bounds = array<i64: 1, 64>}, {pipeline_mode = #tpu.pipeline_mode<synchronous>, transform_indices = @transform_12, window_bounds = array<i64: 32, 32>}, {pipeline_mode = #tpu.pipeline_mode<synchronous>, transform_indices = @transform_13, window_bounds = array<i64: 1, 32>}, {pipeline_mode = #tpu.pipeline_mode<synchronous>, transform_indices = @transform_14, window_bounds = array<i64: 32, 64>}, {pipeline_mode = #tpu.pipeline_mode<synchronous>, transform_indices = @transform_15, window_bounds = array<i64: 1, 64>}, {pipeline_mode = #tpu.pipeline_mode<synchronous>, transform_indices = @transform_16, window_bounds = array<i64: 64, 32>}, {pipeline_mode = #tpu.pipeline_mode<synchronous>, transform_indices = @transform_17, window_bounds = array<i64: 1, 32>}, {pipeline_mode = #tpu.pipeline_mode<synchronous>, transform_indices = @transform_18, window_bounds = array<i64: 3, 32>}, {pipeline_mode = #tpu.pipeline_mode<synchronous>, transform_indices = @transform_19, window_bounds = array<i64: 3, 32>}, {pipeline_mode = #tpu.pipeline_mode<synchronous>, transform_indices = @transform_20, window_bounds = array<i64: 16, 32>}, {pipeline_mode = #tpu.pipeline_mode<synchronous>, transform_indices = @transform_21, window_bounds = array<i64: 64, 8>}, {pipeline_mode = #tpu.pipeline_mode<synchronous>, transform_indices = @transform_22, window_bounds = array<i64: 64, 8>}]} {
    %c0 = arith.constant 0 : index
    %c0_0 = arith.constant 0 : index
    %0 = vector.load %arg1[%c0, %c0_0] : memref<16x32xf32, #tpu.memory_space<vmem>>, vector<16x32xf32>
    %c0_1 = arith.constant 0 : index
    %c0_2 = arith.constant 0 : index
    %1 = vector.load %arg2[%c0_1, %c0_2] : memref<16x32xf32, #tpu.memory_space<vmem>>, vector<16x32xf32>
    %c0_3 = arith.constant 0 : index
    %c0_4 = arith.constant 0 : index
    %2 = vector.load %arg3[%c0_3, %c0_4] : memref<8x8xf32, #tpu.memory_space<vmem>>, vector<8x8xf32>
    %cst = arith.constant 0.000000e+00 : f32
    %3 = vector.broadcast %cst : f32 to vector<8x8xf32>
    %4 = arith.cmpf oeq, %2, %3 : vector<8x8xf32>
    %cst_5 = arith.constant -1.000000e+09 : f32
    %cst_6 = arith.constant 0.000000e+00 : f32
    %5 = vector.broadcast %cst_5 : f32 to vector<8x8xf32>
    %6 = vector.broadcast %cst_6 : f32 to vector<8x8xf32>
    %7 = arith.select %4, %5, %6 : vector<8x8xi1>, vector<8x8xf32>
    %8 = tpu.concatenate %7, %7, %7, %7, %7, %7, %7, %7 in 0 : vector<8x8xf32>, vector<8x8xf32>, vector<8x8xf32>, vector<8x8xf32>, vector<8x8xf32>, vector<8x8xf32>, vector<8x8xf32>, vector<8x8xf32> -> vector<64x8xf32>
    %c0_7 = arith.constant 0 : index
    %c0_8 = arith.constant 0 : index
    %9 = vector.load %arg4[%c0_7, %c0_8] : memref<8x8xf32, #tpu.memory_space<vmem>>, vector<8x8xf32>
    %cst_9 = arith.constant 0.000000e+00 : f32
    %10 = vector.broadcast %cst_9 : f32 to vector<8x8xf32>
    %11 = arith.cmpf oeq, %9, %10 : vector<8x8xf32>
    %cst_10 = arith.constant -1.000000e+09 : f32
    %cst_11 = arith.constant 0.000000e+00 : f32
    %12 = vector.broadcast %cst_10 : f32 to vector<8x8xf32>
    %13 = vector.broadcast %cst_11 : f32 to vector<8x8xf32>
    %14 = arith.select %11, %12, %13 : vector<8x8xi1>, vector<8x8xf32>
    %15 = tpu.concatenate %14, %14, %14, %14, %14, %14, %14, %14 in 0 : vector<8x8xf32>, vector<8x8xf32>, vector<8x8xf32>, vector<8x8xf32>, vector<8x8xf32>, vector<8x8xf32>, vector<8x8xf32>, vector<8x8xf32> -> vector<64x8xf32>
    %c0_12 = arith.constant 0 : index
    %c0_13 = arith.constant 0 : index
    %16 = vector.load %arg5[%c0_12, %c0_13] : memref<32x96xf32, #tpu.memory_space<vmem>>, vector<32x96xf32>
    %cst_14 = arith.constant dense<0.000000e+00> : vector<16x96xf32>
    %17 = tpu.matmul %0, %16, %cst_14 {dimension_numbers = #tpu.dot_dimension_numbers<[1], [0], [0], [1], [0, 0, 1, 1], [], []>} : vector<16x32xf32>, vector<32x96xf32>, vector<16x96xf32> -> vector<16x96xf32>
    %c0_15 = arith.constant 0 : index
    %c0_16 = arith.constant 0 : index
    %18 = vector.load %arg6[%c0_15, %c0_16] : memref<1x96xf32, #tpu.memory_space<vmem>>, vector<1x96xf32>
    %19 = vector.broadcast %18 : vector<1x96xf32> to vector<16x96xf32>
    %20 = arith.addf %17, %19 : vector<16x96xf32>
    %21 = vector.extract_strided_slice %20 {offsets = [0, 0], sizes = [16, 32], strides = [1, 1]} : vector<16x96xf32> to vector<16x32xf32>
    %cst_17 = arith.constant 0.353553385 : f32
    %22 = vector.broadcast %cst_17 : f32 to vector<16x32xf32>
    %23 = arith.mulf %21, %22 : vector<16x32xf32>
    %24 = vector.extract_strided_slice %20 {offsets = [0, 32], sizes = [16, 32], strides = [1, 1]} : vector<16x96xf32> to vector<16x32xf32>
    %25 = vector.extract_strided_slice %20 {offsets = [0, 64], sizes = [16, 32], strides = [1, 1]} : vector<16x96xf32> to vector<16x32xf32>
    %26 = vector.extract_strided_slice %23 {offsets = [0, 0], sizes = [8, 8], strides = [1, 1]} : vector<16x32xf32> to vector<8x8xf32>
    %27 = vector.extract_strided_slice %24 {offsets = [0, 0], sizes = [8, 8], strides = [1, 1]} : vector<16x32xf32> to vector<8x8xf32>
    %28 = tpu.transpose %27, [1, 0] : vector<8x8xf32> -> vector<8x8xf32>
    %cst_18 = arith.constant dense<0.000000e+00> : vector<8x8xf32>
    %29 = tpu.matmul %26, %28, %cst_18 {dimension_numbers = #tpu.dot_dimension_numbers<[1], [0], [0], [1], [0, 0, 1, 1], [], []>} : vector<8x8xf32>, vector<8x8xf32>, vector<8x8xf32> -> vector<8x8xf32>
    %30 = vector.extract_strided_slice %23 {offsets = [0, 8], sizes = [8, 8], strides = [1, 1]} : vector<16x32xf32> to vector<8x8xf32>
    %31 = vector.extract_strided_slice %24 {offsets = [0, 8], sizes = [8, 8], strides = [1, 1]} : vector<16x32xf32> to vector<8x8xf32>
    %32 = tpu.transpose %31, [1, 0] : vector<8x8xf32> -> vector<8x8xf32>
    %cst_19 = arith.constant dense<0.000000e+00> : vector<8x8xf32>
    %33 = tpu.matmul %30, %32, %cst_19 {dimension_numbers = #tpu.dot_dimension_numbers<[1], [0], [0], [1], [0, 0, 1, 1], [], []>} : vector<8x8xf32>, vector<8x8xf32>, vector<8x8xf32> -> vector<8x8xf32>
    %34 = vector.extract_strided_slice %23 {offsets = [0, 16], sizes = [8, 8], strides = [1, 1]} : vector<16x32xf32> to vector<8x8xf32>
    %35 = vector.extract_strided_slice %24 {offsets = [0, 16], sizes = [8, 8], strides = [1, 1]} : vector<16x32xf32> to vector<8x8xf32>
    %36 = tpu.transpose %35, [1, 0] : vector<8x8xf32> -> vector<8x8xf32>
    %cst_20 = arith.constant dense<0.000000e+00> : vector<8x8xf32>
    %37 = tpu.matmul %34, %36, %cst_20 {dimension_numbers = #tpu.dot_dimension_numbers<[1], [0], [0], [1], [0, 0, 1, 1], [], []>} : vector<8x8xf32>, vector<8x8xf32>, vector<8x8xf32> -> vector<8x8xf32>
    %38 = vector.extract_strided_slice %23 {offsets = [0, 24], sizes = [8, 8], strides = [1, 1]} : vector<16x32xf32> to vector<8x8xf32>
    %39 = vector.extract_strided_slice %24 {offsets = [0, 24], sizes = [8, 8], strides = [1, 1]} : vector<16x32xf32> to vector<8x8xf32>
    %40 = tpu.transpose %39, [1, 0] : vector<8x8xf32> -> vector<8x8xf32>
    %cst_21 = arith.constant dense<0.000000e+00> : vector<8x8xf32>
    %41 = tpu.matmul %38, %40, %cst_21 {dimension_numbers = #tpu.dot_dimension_numbers<[1], [0], [0], [1], [0, 0, 1, 1], [], []>} : vector<8x8xf32>, vector<8x8xf32>, vector<8x8xf32> -> vector<8x8xf32>
    %42 = vector.extract_strided_slice %23 {offsets = [8, 0], sizes = [8, 8], strides = [1, 1]} : vector<16x32xf32> to vector<8x8xf32>
    %43 = vector.extract_strided_slice %24 {offsets = [8, 0], sizes = [8, 8], strides = [1, 1]} : vector<16x32xf32> to vector<8x8xf32>
    %44 = tpu.transpose %43, [1, 0] : vector<8x8xf32> -> vector<8x8xf32>
    %cst_22 = arith.constant dense<0.000000e+00> : vector<8x8xf32>
    %45 = tpu.matmul %42, %44, %cst_22 {dimension_numbers = #tpu.dot_dimension_numbers<[1], [0], [0], [1], [0, 0, 1, 1], [], []>} : vector<8x8xf32>, vector<8x8xf32>, vector<8x8xf32> -> vector<8x8xf32>
    %46 = vector.extract_strided_slice %23 {offsets = [8, 8], sizes = [8, 8], strides = [1, 1]} : vector<16x32xf32> to vector<8x8xf32>
    %47 = vector.extract_strided_slice %24 {offsets = [8, 8], sizes = [8, 8], strides = [1, 1]} : vector<16x32xf32> to vector<8x8xf32>
    %48 = tpu.transpose %47, [1, 0] : vector<8x8xf32> -> vector<8x8xf32>
    %cst_23 = arith.constant dense<0.000000e+00> : vector<8x8xf32>
    %49 = tpu.matmul %46, %48, %cst_23 {dimension_numbers = #tpu.dot_dimension_numbers<[1], [0], [0], [1], [0, 0, 1, 1], [], []>} : vector<8x8xf32>, vector<8x8xf32>, vector<8x8xf32> -> vector<8x8xf32>
    %50 = vector.extract_strided_slice %23 {offsets = [8, 16], sizes = [8, 8], strides = [1, 1]} : vector<16x32xf32> to vector<8x8xf32>
    %51 = vector.extract_strided_slice %24 {offsets = [8, 16], sizes = [8, 8], strides = [1, 1]} : vector<16x32xf32> to vector<8x8xf32>
    %52 = tpu.transpose %51, [1, 0] : vector<8x8xf32> -> vector<8x8xf32>
    %cst_24 = arith.constant dense<0.000000e+00> : vector<8x8xf32>
    %53 = tpu.matmul %50, %52, %cst_24 {dimension_numbers = #tpu.dot_dimension_numbers<[1], [0], [0], [1], [0, 0, 1, 1], [], []>} : vector<8x8xf32>, vector<8x8xf32>, vector<8x8xf32> -> vector<8x8xf32>
    %54 = vector.extract_strided_slice %23 {offsets = [8, 24], sizes = [8, 8], strides = [1, 1]} : vector<16x32xf32> to vector<8x8xf32>
    %55 = vector.extract_strided_slice %24 {offsets = [8, 24], sizes = [8, 8], strides = [1, 1]} : vector<16x32xf32> to vector<8x8xf32>
    %56 = tpu.transpose %55, [1, 0] : vector<8x8xf32> -> vector<8x8xf32>
    %cst_25 = arith.constant dense<0.000000e+00> : vector<8x8xf32>
    %57 = tpu.matmul %54, %56, %cst_25 {dimension_numbers = #tpu.dot_dimension_numbers<[1], [0], [0], [1], [0, 0, 1, 1], [], []>} : vector<8x8xf32>, vector<8x8xf32>, vector<8x8xf32> -> vector<8x8xf32>
    %58 = tpu.concatenate %29, %33, %37, %41, %45, %49, %53, %57 in 0 : vector<8x8xf32>, vector<8x8xf32>, vector<8x8xf32>, vector<8x8xf32>, vector<8x8xf32>, vector<8x8xf32>, vector<8x8xf32>, vector<8x8xf32> -> vector<64x8xf32>
    %59 = arith.addf %58, %8 : vector<64x8xf32>
    %cst_26 = arith.constant dense<0xFF800000> : vector<64xf32>
    %60 = vector.multi_reduction <maximumf>, %59, %cst_26 [1] : vector<64x8xf32> to vector<64xf32>
    %cst_27 = arith.constant 0xFF800000 : f32
    %61 = vector.broadcast %cst_27 : f32 to vector<64xf32>
    %62 = arith.maximumf %61, %60 : vector<64xf32>
    %63 = vector.shape_cast %62 : vector<64xf32> to vector<64x1xf32>
    %64 = vector.broadcast %63 : vector<64x1xf32> to vector<64x8xf32>
    %65 = arith.subf %59, %64 : vector<64x8xf32>
    %66 = math.exp %65 : vector<64x8xf32>
    %cst_28 = arith.constant dense<0.000000e+00> : vector<64xf32>
    %67 = vector.multi_reduction <add>, %66, %cst_28 [1] : vector<64x8xf32> to vector<64xf32>
    %68 = vector.shape_cast %67 : vector<64xf32> to vector<64x1xf32>
    %69 = vector.broadcast %68 : vector<64x1xf32> to vector<64x8xf32>
    %70 = arith.divf %66, %69 : vector<64x8xf32>
    %71 = vector.extract_strided_slice %25 {offsets = [0, 0], sizes = [8, 8], strides = [1, 1]} : vector<16x32xf32> to vector<8x8xf32>
    %72 = vector.extract_strided_slice %70 {offsets = [0, 0], sizes = [8, 8], strides = [1, 1]} : vector<64x8xf32> to vector<8x8xf32>
    %cst_29 = arith.constant dense<0.000000e+00> : vector<8x8xf32>
    %73 = tpu.matmul %72, %71, %cst_29 {dimension_numbers = #tpu.dot_dimension_numbers<[1], [0], [0], [1], [0, 0, 1, 1], [], []>} : vector<8x8xf32>, vector<8x8xf32>, vector<8x8xf32> -> vector<8x8xf32>
    %74 = vector.extract_strided_slice %25 {offsets = [0, 8], sizes = [8, 8], strides = [1, 1]} : vector<16x32xf32> to vector<8x8xf32>
    %75 = vector.extract_strided_slice %70 {offsets = [8, 0], sizes = [8, 8], strides = [1, 1]} : vector<64x8xf32> to vector<8x8xf32>
    %cst_30 = arith.constant dense<0.000000e+00> : vector<8x8xf32>
    %76 = tpu.matmul %75, %74, %cst_30 {dimension_numbers = #tpu.dot_dimension_numbers<[1], [0], [0], [1], [0, 0, 1, 1], [], []>} : vector<8x8xf32>, vector<8x8xf32>, vector<8x8xf32> -> vector<8x8xf32>
    %77 = vector.extract_strided_slice %25 {offsets = [0, 16], sizes = [8, 8], strides = [1, 1]} : vector<16x32xf32> to vector<8x8xf32>
    %78 = vector.extract_strided_slice %70 {offsets = [16, 0], sizes = [8, 8], strides = [1, 1]} : vector<64x8xf32> to vector<8x8xf32>
    %cst_31 = arith.constant dense<0.000000e+00> : vector<8x8xf32>
    %79 = tpu.matmul %78, %77, %cst_31 {dimension_numbers = #tpu.dot_dimension_numbers<[1], [0], [0], [1], [0, 0, 1, 1], [], []>} : vector<8x8xf32>, vector<8x8xf32>, vector<8x8xf32> -> vector<8x8xf32>
    %80 = vector.extract_strided_slice %25 {offsets = [0, 24], sizes = [8, 8], strides = [1, 1]} : vector<16x32xf32> to vector<8x8xf32>
    %81 = vector.extract_strided_slice %70 {offsets = [24, 0], sizes = [8, 8], strides = [1, 1]} : vector<64x8xf32> to vector<8x8xf32>
    %cst_32 = arith.constant dense<0.000000e+00> : vector<8x8xf32>
    %82 = tpu.matmul %81, %80, %cst_32 {dimension_numbers = #tpu.dot_dimension_numbers<[1], [0], [0], [1], [0, 0, 1, 1], [], []>} : vector<8x8xf32>, vector<8x8xf32>, vector<8x8xf32> -> vector<8x8xf32>
    %83 = tpu.concatenate %73, %76, %79, %82 in 1 : vector<8x8xf32>, vector<8x8xf32>, vector<8x8xf32>, vector<8x8xf32> -> vector<8x32xf32>
    %84 = vector.extract_strided_slice %25 {offsets = [8, 0], sizes = [8, 8], strides = [1, 1]} : vector<16x32xf32> to vector<8x8xf32>
    %85 = vector.extract_strided_slice %70 {offsets = [32, 0], sizes = [8, 8], strides = [1, 1]} : vector<64x8xf32> to vector<8x8xf32>
    %cst_33 = arith.constant dense<0.000000e+00> : vector<8x8xf32>
    %86 = tpu.matmul %85, %84, %cst_33 {dimension_numbers = #tpu.dot_dimension_numbers<[1], [0], [0], [1], [0, 0, 1, 1], [], []>} : vector<8x8xf32>, vector<8x8xf32>, vector<8x8xf32> -> vector<8x8xf32>
    %87 = vector.extract_strided_slice %25 {offsets = [8, 8], sizes = [8, 8], strides = [1, 1]} : vector<16x32xf32> to vector<8x8xf32>
    %88 = vector.extract_strided_slice %70 {offsets = [40, 0], sizes = [8, 8], strides = [1, 1]} : vector<64x8xf32> to vector<8x8xf32>
    %cst_34 = arith.constant dense<0.000000e+00> : vector<8x8xf32>
    %89 = tpu.matmul %88, %87, %cst_34 {dimension_numbers = #tpu.dot_dimension_numbers<[1], [0], [0], [1], [0, 0, 1, 1], [], []>} : vector<8x8xf32>, vector<8x8xf32>, vector<8x8xf32> -> vector<8x8xf32>
    %90 = vector.extract_strided_slice %25 {offsets = [8, 16], sizes = [8, 8], strides = [1, 1]} : vector<16x32xf32> to vector<8x8xf32>
    %91 = vector.extract_strided_slice %70 {offsets = [48, 0], sizes = [8, 8], strides = [1, 1]} : vector<64x8xf32> to vector<8x8xf32>
    %cst_35 = arith.constant dense<0.000000e+00> : vector<8x8xf32>
    %92 = tpu.matmul %91, %90, %cst_35 {dimension_numbers = #tpu.dot_dimension_numbers<[1], [0], [0], [1], [0, 0, 1, 1], [], []>} : vector<8x8xf32>, vector<8x8xf32>, vector<8x8xf32> -> vector<8x8xf32>
    %93 = vector.extract_strided_slice %25 {offsets = [8, 24], sizes = [8, 8], strides = [1, 1]} : vector<16x32xf32> to vector<8x8xf32>
    %94 = vector.extract_strided_slice %70 {offsets = [56, 0], sizes = [8, 8], strides = [1, 1]} : vector<64x8xf32> to vector<8x8xf32>
    %cst_36 = arith.constant dense<0.000000e+00> : vector<8x8xf32>
    %95 = tpu.matmul %94, %93, %cst_36 {dimension_numbers = #tpu.dot_dimension_numbers<[1], [0], [0], [1], [0, 0, 1, 1], [], []>} : vector<8x8xf32>, vector<8x8xf32>, vector<8x8xf32> -> vector<8x8xf32>
    %96 = tpu.concatenate %86, %89, %92, %95 in 1 : vector<8x8xf32>, vector<8x8xf32>, vector<8x8xf32>, vector<8x8xf32> -> vector<8x32xf32>
    %97 = tpu.concatenate %83, %96 in 0 : vector<8x32xf32>, vector<8x32xf32> -> vector<16x32xf32>
    %c0_37 = arith.constant 0 : index
    %c0_38 = arith.constant 0 : index
    %98 = vector.load %arg22[%c0_37, %c0_38] : memref<64x8xf32, #tpu.memory_space<vmem>>, vector<64x8xf32>
    tpu.vector_store %arg22[%c0_37, %c0_38], %70 {strides = array<i32>} : memref<64x8xf32, #tpu.memory_space<vmem>>, vector<64x8xf32>,
    %c0_39 = arith.constant 0 : index
    %c0_40 = arith.constant 0 : index
    %99 = vector.load %arg7[%c0_39, %c0_40] : memref<32x32xf32, #tpu.memory_space<vmem>>, vector<32x32xf32>
    %cst_41 = arith.constant dense<0.000000e+00> : vector<16x32xf32>
    %100 = tpu.matmul %97, %99, %cst_41 {dimension_numbers = #tpu.dot_dimension_numbers<[1], [0], [0], [1], [0, 0, 1, 1], [], []>} : vector<16x32xf32>, vector<32x32xf32>, vector<16x32xf32> -> vector<16x32xf32>
    %c0_42 = arith.constant 0 : index
    %c0_43 = arith.constant 0 : index
    %101 = vector.load %arg8[%c0_42, %c0_43] : memref<1x32xf32, #tpu.memory_space<vmem>>, vector<1x32xf32>
    %102 = vector.broadcast %101 : vector<1x32xf32> to vector<16x32xf32>
    %103 = arith.addf %100, %102 : vector<16x32xf32>
    %104 = arith.addf %0, %103 : vector<16x32xf32>
    %c0_44 = arith.constant 0 : index
    %c0_45 = arith.constant 0 : index
    %105 = vector.load %arg19[%c0_44, %c0_45] : memref<3x32xf32, #tpu.memory_space<vmem>>, vector<1x32xf32>
    %c0_46 = arith.constant 0 : index
    %c0_47 = arith.constant 0 : index
    %106 = vector.load %arg20[%c0_46, %c0_47] : memref<3x32xf32, #tpu.memory_space<vmem>>, vector<1x32xf32>
    %cst_48 = arith.constant dense<0.000000e+00> : vector<16xf32>
    %107 = vector.multi_reduction <add>, %104, %cst_48 [1] : vector<16x32xf32> to vector<16xf32>
    %108 = vector.shape_cast %107 : vector<16xf32> to vector<16x1xf32>
    %cst_49 = arith.constant 3.200000e+01 : f32
    %109 = vector.broadcast %cst_49 : f32 to vector<16x1xf32>
    %110 = arith.divf %108, %109 : vector<16x1xf32>
    %111 = vector.broadcast %110 : vector<16x1xf32> to vector<16x32xf32>
    %112 = arith.subf %104, %111 : vector<16x32xf32>
    %113 = arith.mulf %112, %112 : vector<16x32xf32>
    %cst_50 = arith.constant dense<0.000000e+00> : vector<16xf32>
    %114 = vector.multi_reduction <add>, %113, %cst_50 [1] : vector<16x32xf32> to vector<16xf32>
    %115 = vector.shape_cast %114 : vector<16xf32> to vector<16x1xf32>
    %cst_51 = arith.constant 3.200000e+01 : f32
    %116 = vector.broadcast %cst_51 : f32 to vector<16x1xf32>
    %117 = arith.divf %115, %116 : vector<16x1xf32>
    %118 = vector.broadcast %110 : vector<16x1xf32> to vector<16x32xf32>
    %119 = arith.subf %104, %118 : vector<16x32xf32>
    %cst_52 = arith.constant 9.99999974E-6 : f32
    %120 = vector.broadcast %cst_52 : f32 to vector<16x1xf32>
    %121 = arith.addf %117, %120 : vector<16x1xf32>
    %122 = math.rsqrt %121 : vector<16x1xf32>
    %123 = vector.broadcast %122 : vector<16x1xf32> to vector<16x32xf32>
    %124 = arith.mulf %119, %123 : vector<16x32xf32>
    %125 = vector.broadcast %105 : vector<1x32xf32> to vector<16x32xf32>
    %126 = arith.mulf %124, %125 : vector<16x32xf32>
    %127 = vector.broadcast %106 : vector<1x32xf32> to vector<16x32xf32>
    %128 = arith.addf %126, %127 : vector<16x32xf32>
    %c0_53 = arith.constant 0 : index
    %c0_54 = arith.constant 0 : index
    %129 = vector.load %arg9[%c0_53, %c0_54] : memref<32x32xf32, #tpu.memory_space<vmem>>, vector<32x32xf32>
    %cst_55 = arith.constant dense<0.000000e+00> : vector<16x32xf32>
    %130 = tpu.matmul %128, %129, %cst_55 {dimension_numbers = #tpu.dot_dimension_numbers<[1], [0], [0], [1], [0, 0, 1, 1], [], []>} : vector<16x32xf32>, vector<32x32xf32>, vector<16x32xf32> -> vector<16x32xf32>
    %c0_56 = arith.constant 0 : index
    %c0_57 = arith.constant 0 : index
    %131 = vector.load %arg10[%c0_56, %c0_57] : memref<1x32xf32, #tpu.memory_space<vmem>>, vector<1x32xf32>
    %132 = vector.broadcast %131 : vector<1x32xf32> to vector<16x32xf32>
    %133 = arith.addf %130, %132 : vector<16x32xf32>
    %cst_58 = arith.constant 0.353553385 : f32
    %134 = vector.broadcast %cst_58 : f32 to vector<16x32xf32>
    %135 = arith.mulf %133, %134 : vector<16x32xf32>
    %c0_59 = arith.constant 0 : index
    %c0_60 = arith.constant 0 : index
    %136 = vector.load %arg11[%c0_59, %c0_60] : memref<32x64xf32, #tpu.memory_space<vmem>>, vector<32x64xf32>
    %cst_61 = arith.constant dense<0.000000e+00> : vector<16x64xf32>
    %137 = tpu.matmul %1, %136, %cst_61 {dimension_numbers = #tpu.dot_dimension_numbers<[1], [0], [0], [1], [0, 0, 1, 1], [], []>} : vector<16x32xf32>, vector<32x64xf32>, vector<16x64xf32> -> vector<16x64xf32>
    %c0_62 = arith.constant 0 : index
    %c0_63 = arith.constant 0 : index
    %138 = vector.load %arg12[%c0_62, %c0_63] : memref<1x64xf32, #tpu.memory_space<vmem>>, vector<1x64xf32>
    %139 = vector.broadcast %138 : vector<1x64xf32> to vector<16x64xf32>
    %140 = arith.addf %137, %139 : vector<16x64xf32>
    %141 = vector.extract_strided_slice %140 {offsets = [0, 0], sizes = [16, 32], strides = [1, 1]} : vector<16x64xf32> to vector<16x32xf32>
    %142 = vector.extract_strided_slice %140 {offsets = [0, 32], sizes = [16, 32], strides = [1, 1]} : vector<16x64xf32> to vector<16x32xf32>
    %143 = vector.extract_strided_slice %135 {offsets = [0, 0], sizes = [8, 8], strides = [1, 1]} : vector<16x32xf32> to vector<8x8xf32>
    %144 = vector.extract_strided_slice %141 {offsets = [0, 0], sizes = [8, 8], strides = [1, 1]} : vector<16x32xf32> to vector<8x8xf32>
    %145 = tpu.transpose %144, [1, 0] : vector<8x8xf32> -> vector<8x8xf32>
    %cst_64 = arith.constant dense<0.000000e+00> : vector<8x8xf32>
    %146 = tpu.matmul %143, %145, %cst_64 {dimension_numbers = #tpu.dot_dimension_numbers<[1], [0], [0], [1], [0, 0, 1, 1], [], []>} : vector<8x8xf32>, vector<8x8xf32>, vector<8x8xf32> -> vector<8x8xf32>
    %147 = vector.extract_strided_slice %135 {offsets = [0, 8], sizes = [8, 8], strides = [1, 1]} : vector<16x32xf32> to vector<8x8xf32>
    %148 = vector.extract_strided_slice %141 {offsets = [0, 8], sizes = [8, 8], strides = [1, 1]} : vector<16x32xf32> to vector<8x8xf32>
    %149 = tpu.transpose %148, [1, 0] : vector<8x8xf32> -> vector<8x8xf32>
    %cst_65 = arith.constant dense<0.000000e+00> : vector<8x8xf32>
    %150 = tpu.matmul %147, %149, %cst_65 {dimension_numbers = #tpu.dot_dimension_numbers<[1], [0], [0], [1], [0, 0, 1, 1], [], []>} : vector<8x8xf32>, vector<8x8xf32>, vector<8x8xf32> -> vector<8x8xf32>
    %151 = vector.extract_strided_slice %135 {offsets = [0, 16], sizes = [8, 8], strides = [1, 1]} : vector<16x32xf32> to vector<8x8xf32>
    %152 = vector.extract_strided_slice %141 {offsets = [0, 16], sizes = [8, 8], strides = [1, 1]} : vector<16x32xf32> to vector<8x8xf32>
    %153 = tpu.transpose %152, [1, 0] : vector<8x8xf32> -> vector<8x8xf32>
    %cst_66 = arith.constant dense<0.000000e+00> : vector<8x8xf32>
    %154 = tpu.matmul %151, %153, %cst_66 {dimension_numbers = #tpu.dot_dimension_numbers<[1], [0], [0], [1], [0, 0, 1, 1], [], []>} : vector<8x8xf32>, vector<8x8xf32>, vector<8x8xf32> -> vector<8x8xf32>
    %155 = vector.extract_strided_slice %135 {offsets = [0, 24], sizes = [8, 8], strides = [1, 1]} : vector<16x32xf32> to vector<8x8xf32>
    %156 = vector.extract_strided_slice %141 {offsets = [0, 24], sizes = [8, 8], strides = [1, 1]} : vector<16x32xf32> to vector<8x8xf32>
    %157 = tpu.transpose %156, [1, 0] : vector<8x8xf32> -> vector<8x8xf32>
    %cst_67 = arith.constant dense<0.000000e+00> : vector<8x8xf32>
    %158 = tpu.matmul %155, %157, %cst_67 {dimension_numbers = #tpu.dot_dimension_numbers<[1], [0], [0], [1], [0, 0, 1, 1], [], []>} : vector<8x8xf32>, vector<8x8xf32>, vector<8x8xf32> -> vector<8x8xf32>
    %159 = vector.extract_strided_slice %135 {offsets = [8, 0], sizes = [8, 8], strides = [1, 1]} : vector<16x32xf32> to vector<8x8xf32>
    %160 = vector.extract_strided_slice %141 {offsets = [8, 0], sizes = [8, 8], strides = [1, 1]} : vector<16x32xf32> to vector<8x8xf32>
    %161 = tpu.transpose %160, [1, 0] : vector<8x8xf32> -> vector<8x8xf32>
    %cst_68 = arith.constant dense<0.000000e+00> : vector<8x8xf32>
    %162 = tpu.matmul %159, %161, %cst_68 {dimension_numbers = #tpu.dot_dimension_numbers<[1], [0], [0], [1], [0, 0, 1, 1], [], []>} : vector<8x8xf32>, vector<8x8xf32>, vector<8x8xf32> -> vector<8x8xf32>
    %163 = vector.extract_strided_slice %135 {offsets = [8, 8], sizes = [8, 8], strides = [1, 1]} : vector<16x32xf32> to vector<8x8xf32>
    %164 = vector.extract_strided_slice %141 {offsets = [8, 8], sizes = [8, 8], strides = [1, 1]} : vector<16x32xf32> to vector<8x8xf32>
    %165 = tpu.transpose %164, [1, 0] : vector<8x8xf32> -> vector<8x8xf32>
    %cst_69 = arith.constant dense<0.000000e+00> : vector<8x8xf32>
    %166 = tpu.matmul %163, %165, %cst_69 {dimension_numbers = #tpu.dot_dimension_numbers<[1], [0], [0], [1], [0, 0, 1, 1], [], []>} : vector<8x8xf32>, vector<8x8xf32>, vector<8x8xf32> -> vector<8x8xf32>
    %167 = vector.extract_strided_slice %135 {offsets = [8, 16], sizes = [8, 8], strides = [1, 1]} : vector<16x32xf32> to vector<8x8xf32>
    %168 = vector.extract_strided_slice %141 {offsets = [8, 16], sizes = [8, 8], strides = [1, 1]} : vector<16x32xf32> to vector<8x8xf32>
    %169 = tpu.transpose %168, [1, 0] : vector<8x8xf32> -> vector<8x8xf32>
    %cst_70 = arith.constant dense<0.000000e+00> : vector<8x8xf32>
    %170 = tpu.matmul %167, %169, %cst_70 {dimension_numbers = #tpu.dot_dimension_numbers<[1], [0], [0], [1], [0, 0, 1, 1], [], []>} : vector<8x8xf32>, vector<8x8xf32>, vector<8x8xf32> -> vector<8x8xf32>
    %171 = vector.extract_strided_slice %135 {offsets = [8, 24], sizes = [8, 8], strides = [1, 1]} : vector<16x32xf32> to vector<8x8xf32>
    %172 = vector.extract_strided_slice %141 {offsets = [8, 24], sizes = [8, 8], strides = [1, 1]} : vector<16x32xf32> to vector<8x8xf32>
    %173 = tpu.transpose %172, [1, 0] : vector<8x8xf32> -> vector<8x8xf32>
    %cst_71 = arith.constant dense<0.000000e+00> : vector<8x8xf32>
    %174 = tpu.matmul %171, %173, %cst_71 {dimension_numbers = #tpu.dot_dimension_numbers<[1], [0], [0], [1], [0, 0, 1, 1], [], []>} : vector<8x8xf32>, vector<8x8xf32>, vector<8x8xf32> -> vector<8x8xf32>
    %175 = tpu.concatenate %146, %150, %154, %158, %162, %166, %170, %174 in 0 : vector<8x8xf32>, vector<8x8xf32>, vector<8x8xf32>, vector<8x8xf32>, vector<8x8xf32>, vector<8x8xf32>, vector<8x8xf32>, vector<8x8xf32> -> vector<64x8xf32>
    %176 = arith.addf %175, %15 : vector<64x8xf32>
    %cst_72 = arith.constant dense<0xFF800000> : vector<64xf32>
    %177 = vector.multi_reduction <maximumf>, %176, %cst_72 [1] : vector<64x8xf32> to vector<64xf32>
    %cst_73 = arith.constant 0xFF800000 : f32
    %178 = vector.broadcast %cst_73 : f32 to vector<64xf32>
    %179 = arith.maximumf %178, %177 : vector<64xf32>
    %180 = vector.shape_cast %179 : vector<64xf32> to vector<64x1xf32>
    %181 = vector.broadcast %180 : vector<64x1xf32> to vector<64x8xf32>
    %182 = arith.subf %176, %181 : vector<64x8xf32>
    %183 = math.exp %182 : vector<64x8xf32>
    %cst_74 = arith.constant dense<0.000000e+00> : vector<64xf32>
    %184 = vector.multi_reduction <add>, %183, %cst_74 [1] : vector<64x8xf32> to vector<64xf32>
    %185 = vector.shape_cast %184 : vector<64xf32> to vector<64x1xf32>
    %186 = vector.broadcast %185 : vector<64x1xf32> to vector<64x8xf32>
    %187 = arith.divf %183, %186 : vector<64x8xf32>
    %188 = vector.extract_strided_slice %142 {offsets = [0, 0], sizes = [8, 8], strides = [1, 1]} : vector<16x32xf32> to vector<8x8xf32>
    %189 = vector.extract_strided_slice %187 {offsets = [0, 0], sizes = [8, 8], strides = [1, 1]} : vector<64x8xf32> to vector<8x8xf32>
    %cst_75 = arith.constant dense<0.000000e+00> : vector<8x8xf32>
    %190 = tpu.matmul %189, %188, %cst_75 {dimension_numbers = #tpu.dot_dimension_numbers<[1], [0], [0], [1], [0, 0, 1, 1], [], []>} : vector<8x8xf32>, vector<8x8xf32>, vector<8x8xf32> -> vector<8x8xf32>
    %191 = vector.extract_strided_slice %142 {offsets = [0, 8], sizes = [8, 8], strides = [1, 1]} : vector<16x32xf32> to vector<8x8xf32>
    %192 = vector.extract_strided_slice %187 {offsets = [8, 0], sizes = [8, 8], strides = [1, 1]} : vector<64x8xf32> to vector<8x8xf32>
    %cst_76 = arith.constant dense<0.000000e+00> : vector<8x8xf32>
    %193 = tpu.matmul %192, %191, %cst_76 {dimension_numbers = #tpu.dot_dimension_numbers<[1], [0], [0], [1], [0, 0, 1, 1], [], []>} : vector<8x8xf32>, vector<8x8xf32>, vector<8x8xf32> -> vector<8x8xf32>
    %194 = vector.extract_strided_slice %142 {offsets = [0, 16], sizes = [8, 8], strides = [1, 1]} : vector<16x32xf32> to vector<8x8xf32>
    %195 = vector.extract_strided_slice %187 {offsets = [16, 0], sizes = [8, 8], strides = [1, 1]} : vector<64x8xf32> to vector<8x8xf32>
    %cst_77 = arith.constant dense<0.000000e+00> : vector<8x8xf32>
    %196 = tpu.matmul %195, %194, %cst_77 {dimension_numbers = #tpu.dot_dimension_numbers<[1], [0], [0], [1], [0, 0, 1, 1], [], []>} : vector<8x8xf32>, vector<8x8xf32>, vector<8x8xf32> -> vector<8x8xf32>
    %197 = vector.extract_strided_slice %142 {offsets = [0, 24], sizes = [8, 8], strides = [1, 1]} : vector<16x32xf32> to vector<8x8xf32>
    %198 = vector.extract_strided_slice %187 {offsets = [24, 0], sizes = [8, 8], strides = [1, 1]} : vector<64x8xf32> to vector<8x8xf32>
    %cst_78 = arith.constant dense<0.000000e+00> : vector<8x8xf32>
    %199 = tpu.matmul %198, %197, %cst_78 {dimension_numbers = #tpu.dot_dimension_numbers<[1], [0], [0], [1], [0, 0, 1, 1], [], []>} : vector<8x8xf32>, vector<8x8xf32>, vector<8x8xf32> -> vector<8x8xf32>
    %200 = tpu.concatenate %190, %193, %196, %199 in 1 : vector<8x8xf32>, vector<8x8xf32>, vector<8x8xf32>, vector<8x8xf32> -> vector<8x32xf32>
    %201 = vector.extract_strided_slice %142 {offsets = [8, 0], sizes = [8, 8], strides = [1, 1]} : vector<16x32xf32> to vector<8x8xf32>
    %202 = vector.extract_strided_slice %187 {offsets = [32, 0], sizes = [8, 8], strides = [1, 1]} : vector<64x8xf32> to vector<8x8xf32>
    %cst_79 = arith.constant dense<0.000000e+00> : vector<8x8xf32>
    %203 = tpu.matmul %202, %201, %cst_79 {dimension_numbers = #tpu.dot_dimension_numbers<[1], [0], [0], [1], [0, 0, 1, 1], [], []>} : vector<8x8xf32>, vector<8x8xf32>, vector<8x8xf32> -> vector<8x8xf32>
    %204 = vector.extract_strided_slice %142 {offsets = [8, 8], sizes = [8, 8], strides = [1, 1]} : vector<16x32xf32> to vector<8x8xf32>
    %205 = vector.extract_strided_slice %187 {offsets = [40, 0], sizes = [8, 8], strides = [1, 1]} : vector<64x8xf32> to vector<8x8xf32>
    %cst_80 = arith.constant dense<0.000000e+00> : vector<8x8xf32>
    %206 = tpu.matmul %205, %204, %cst_80 {dimension_numbers = #tpu.dot_dimension_numbers<[1], [0], [0], [1], [0, 0, 1, 1], [], []>} : vector<8x8xf32>, vector<8x8xf32>, vector<8x8xf32> -> vector<8x8xf32>
    %207 = vector.extract_strided_slice %142 {offsets = [8, 16], sizes = [8, 8], strides = [1, 1]} : vector<16x32xf32> to vector<8x8xf32>
    %208 = vector.extract_strided_slice %187 {offsets = [48, 0], sizes = [8, 8], strides = [1, 1]} : vector<64x8xf32> to vector<8x8xf32>
    %cst_81 = arith.constant dense<0.000000e+00> : vector<8x8xf32>
    %209 = tpu.matmul %208, %207, %cst_81 {dimension_numbers = #tpu.dot_dimension_numbers<[1], [0], [0], [1], [0, 0, 1, 1], [], []>} : vector<8x8xf32>, vector<8x8xf32>, vector<8x8xf32> -> vector<8x8xf32>
    %210 = vector.extract_strided_slice %142 {offsets = [8, 24], sizes = [8, 8], strides = [1, 1]} : vector<16x32xf32> to vector<8x8xf32>
    %211 = vector.extract_strided_slice %187 {offsets = [56, 0], sizes = [8, 8], strides = [1, 1]} : vector<64x8xf32> to vector<8x8xf32>
    %cst_82 = arith.constant dense<0.000000e+00> : vector<8x8xf32>
    %212 = tpu.matmul %211, %210, %cst_82 {dimension_numbers = #tpu.dot_dimension_numbers<[1], [0], [0], [1], [0, 0, 1, 1], [], []>} : vector<8x8xf32>, vector<8x8xf32>, vector<8x8xf32> -> vector<8x8xf32>
    %213 = tpu.concatenate %203, %206, %209, %212 in 1 : vector<8x8xf32>, vector<8x8xf32>, vector<8x8xf32>, vector<8x8xf32> -> vector<8x32xf32>
    %214 = tpu.concatenate %200, %213 in 0 : vector<8x32xf32>, vector<8x32xf32> -> vector<16x32xf32>
    %c0_83 = arith.constant 0 : index
    %c0_84 = arith.constant 0 : index
    %215 = vector.load %arg23[%c0_83, %c0_84] : memref<64x8xf32, #tpu.memory_space<vmem>>, vector<64x8xf32>
    tpu.vector_store %arg23[%c0_83, %c0_84], %187 {strides = array<i32>} : memref<64x8xf32, #tpu.memory_space<vmem>>, vector<64x8xf32>,
    %c0_85 = arith.constant 0 : index
    %c0_86 = arith.constant 0 : index
    %216 = vector.load %arg13[%c0_85, %c0_86] : memref<32x32xf32, #tpu.memory_space<vmem>>, vector<32x32xf32>
    %cst_87 = arith.constant dense<0.000000e+00> : vector<16x32xf32>
    %217 = tpu.matmul %214, %216, %cst_87 {dimension_numbers = #tpu.dot_dimension_numbers<[1], [0], [0], [1], [0, 0, 1, 1], [], []>} : vector<16x32xf32>, vector<32x32xf32>, vector<16x32xf32> -> vector<16x32xf32>
    %c0_88 = arith.constant 0 : index
    %c0_89 = arith.constant 0 : index
    %218 = vector.load %arg14[%c0_88, %c0_89] : memref<1x32xf32, #tpu.memory_space<vmem>>, vector<1x32xf32>
    %219 = vector.broadcast %218 : vector<1x32xf32> to vector<16x32xf32>
    %220 = arith.addf %217, %219 : vector<16x32xf32>
    %221 = arith.addf %128, %220 : vector<16x32xf32>
    %c1 = arith.constant 1 : index
    %c0_90 = arith.constant 0 : index
    %222 = vector.load %arg19[%c1, %c0_90] : memref<3x32xf32, #tpu.memory_space<vmem>>, vector<1x32xf32>
    %c1_91 = arith.constant 1 : index
    %c0_92 = arith.constant 0 : index
    %223 = vector.load %arg20[%c1_91, %c0_92] : memref<3x32xf32, #tpu.memory_space<vmem>>, vector<1x32xf32>
    %cst_93 = arith.constant dense<0.000000e+00> : vector<16xf32>
    %224 = vector.multi_reduction <add>, %221, %cst_93 [1] : vector<16x32xf32> to vector<16xf32>
    %225 = vector.shape_cast %224 : vector<16xf32> to vector<16x1xf32>
    %cst_94 = arith.constant 3.200000e+01 : f32
    %226 = vector.broadcast %cst_94 : f32 to vector<16x1xf32>
    %227 = arith.divf %225, %226 : vector<16x1xf32>
    %228 = vector.broadcast %227 : vector<16x1xf32> to vector<16x32xf32>
    %229 = arith.subf %221, %228 : vector<16x32xf32>
    %230 = arith.mulf %229, %229 : vector<16x32xf32>
    %cst_95 = arith.constant dense<0.000000e+00> : vector<16xf32>
    %231 = vector.multi_reduction <add>, %230, %cst_95 [1] : vector<16x32xf32> to vector<16xf32>
    %232 = vector.shape_cast %231 : vector<16xf32> to vector<16x1xf32>
    %cst_96 = arith.constant 3.200000e+01 : f32
    %233 = vector.broadcast %cst_96 : f32 to vector<16x1xf32>
    %234 = arith.divf %232, %233 : vector<16x1xf32>
    %235 = vector.broadcast %227 : vector<16x1xf32> to vector<16x32xf32>
    %236 = arith.subf %221, %235 : vector<16x32xf32>
    %cst_97 = arith.constant 9.99999974E-6 : f32
    %237 = vector.broadcast %cst_97 : f32 to vector<16x1xf32>
    %238 = arith.addf %234, %237 : vector<16x1xf32>
    %239 = math.rsqrt %238 : vector<16x1xf32>
    %240 = vector.broadcast %239 : vector<16x1xf32> to vector<16x32xf32>
    %241 = arith.mulf %236, %240 : vector<16x32xf32>
    %242 = vector.broadcast %222 : vector<1x32xf32> to vector<16x32xf32>
    %243 = arith.mulf %241, %242 : vector<16x32xf32>
    %244 = vector.broadcast %223 : vector<1x32xf32> to vector<16x32xf32>
    %245 = arith.addf %243, %244 : vector<16x32xf32>
    %c0_98 = arith.constant 0 : index
    %c0_99 = arith.constant 0 : index
    %246 = vector.load %arg15[%c0_98, %c0_99] : memref<32x64xf32, #tpu.memory_space<vmem>>, vector<32x64xf32>
    %cst_100 = arith.constant dense<0.000000e+00> : vector<16x64xf32>
    %247 = tpu.matmul %245, %246, %cst_100 {dimension_numbers = #tpu.dot_dimension_numbers<[1], [0], [0], [1], [0, 0, 1, 1], [], []>} : vector<16x32xf32>, vector<32x64xf32>, vector<16x64xf32> -> vector<16x64xf32>
    %c0_101 = arith.constant 0 : index
    %c0_102 = arith.constant 0 : index
    %248 = vector.load %arg16[%c0_101, %c0_102] : memref<1x64xf32, #tpu.memory_space<vmem>>, vector<1x64xf32>
    %249 = vector.broadcast %248 : vector<1x64xf32> to vector<16x64xf32>
    %250 = arith.addf %247, %249 : vector<16x64xf32>
    %cst_103 = arith.constant 0.000000e+00 : f32
    %251 = vector.broadcast %cst_103 : f32 to vector<16x64xf32>
    %252 = arith.maximumf %250, %251 : vector<16x64xf32>
    %c0_104 = arith.constant 0 : index
    %c0_105 = arith.constant 0 : index
    %253 = vector.load %arg17[%c0_104, %c0_105] : memref<64x32xf32, #tpu.memory_space<vmem>>, vector<64x32xf32>
    %cst_106 = arith.constant dense<0.000000e+00> : vector<16x32xf32>
    %254 = tpu.matmul %252, %253, %cst_106 {dimension_numbers = #tpu.dot_dimension_numbers<[1], [0], [0], [1], [0, 0, 1, 1], [], []>} : vector<16x64xf32>, vector<64x32xf32>, vector<16x32xf32> -> vector<16x32xf32>
    %c0_107 = arith.constant 0 : index
    %c0_108 = arith.constant 0 : index
    %255 = vector.load %arg18[%c0_107, %c0_108] : memref<1x32xf32, #tpu.memory_space<vmem>>, vector<1x32xf32>
    %256 = vector.broadcast %255 : vector<1x32xf32> to vector<16x32xf32>
    %257 = arith.addf %254, %256 : vector<16x32xf32>
    %258 = arith.addf %245, %257 : vector<16x32xf32>
    %c2 = arith.constant 2 : index
    %c0_109 = arith.constant 0 : index
    %259 = vector.load %arg19[%c2, %c0_109] : memref<3x32xf32, #tpu.memory_space<vmem>>, vector<1x32xf32>
    %c2_110 = arith.constant 2 : index
    %c0_111 = arith.constant 0 : index
    %260 = vector.load %arg20[%c2_110, %c0_111] : memref<3x32xf32, #tpu.memory_space<vmem>>, vector<1x32xf32>
    %cst_112 = arith.constant dense<0.000000e+00> : vector<16xf32>
    %261 = vector.multi_reduction <add>, %258, %cst_112 [1] : vector<16x32xf32> to vector<16xf32>
    %262 = vector.shape_cast %261 : vector<16xf32> to vector<16x1xf32>
    %cst_113 = arith.constant 3.200000e+01 : f32
    %263 = vector.broadcast %cst_113 : f32 to vector<16x1xf32>
    %264 = arith.divf %262, %263 : vector<16x1xf32>
    %265 = vector.broadcast %264 : vector<16x1xf32> to vector<16x32xf32>
    %266 = arith.subf %258, %265 : vector<16x32xf32>
    %267 = arith.mulf %266, %266 : vector<16x32xf32>
    %cst_114 = arith.constant dense<0.000000e+00> : vector<16xf32>
    %268 = vector.multi_reduction <add>, %267, %cst_114 [1] : vector<16x32xf32> to vector<16xf32>
    %269 = vector.shape_cast %268 : vector<16xf32> to vector<16x1xf32>
    %cst_115 = arith.constant 3.200000e+01 : f32
    %270 = vector.broadcast %cst_115 : f32 to vector<16x1xf32>
    %271 = arith.divf %269, %270 : vector<16x1xf32>
    %272 = vector.broadcast %264 : vector<16x1xf32> to vector<16x32xf32>
    %273 = arith.subf %258, %272 : vector<16x32xf32>
    %cst_116 = arith.constant 9.99999974E-6 : f32
    %274 = vector.broadcast %cst_116 : f32 to vector<16x1xf32>
    %275 = arith.addf %271, %274 : vector<16x1xf32>
    %276 = math.rsqrt %275 : vector<16x1xf32>
    %277 = vector.broadcast %276 : vector<16x1xf32> to vector<16x32xf32>
    %278 = arith.mulf %273, %277 : vector<16x32xf32>
    %279 = vector.broadcast %259 : vector<1x32xf32> to vector<16x32xf32>
    %280 = arith.mulf %278, %279 : vector<16x32xf32>
    %281 = vector.broadcast %260 : vector<1x32xf32> to vector<16x32xf32>
    %282 = arith.addf %280, %281 : vector<16x32xf32>
    %c0_117 = arith.constant 0 : index
    %c0_118 = arith.constant 0 : index
    %283 = vector.load %arg21[%c0_117, %c0_118] : memref<16x32xf32, #tpu.memory_space<vmem>>, vector<16x32xf32>
    tpu.vector_store %arg21[%c0_117, %c0_118], %282 {strides = array<i32>} : memref<16x32xf32, #tpu.memory_space<vmem>>, vector<16x32xf32>,
    return
  }
  func.func @transform_0(%arg0: i32) -> (i32, i32) {
    %c0_i32 = arith.constant 0 : i32
    %c0_i32_0 = arith.constant 0 : i32
    %c0_i32_1 = arith.constant 0 : i32
    return %c0_i32, %c0_i32_0 : i32, i32
  }
  func.func @transform_1(%arg0: i32) -> (i32, i32) {
    %c0_i32 = arith.constant 0 : i32
    %c0_i32_0 = arith.constant 0 : i32
    %c0_i32_1 = arith.constant 0 : i32
    return %c0_i32, %c0_i32_0 : i32, i32
  }
  func.func @transform_2(%arg0: i32) -> (i32, i32) {
    %c0_i32 = arith.constant 0 : i32
    %c0_i32_0 = arith.constant 0 : i32
    %c0_i32_1 = arith.constant 0 : i32
    return %c0_i32, %c0_i32_0 : i32, i32
  }
  func.func @transform_3(%arg0: i32) -> (i32, i32) {
    %c0_i32 = arith.constant 0 : i32
    %c0_i32_0 = arith.constant 0 : i32
    %c0_i32_1 = arith.constant 0 : i32
    return %c0_i32, %c0_i32_0 : i32, i32
  }
  func.func @transform_4(%arg0: i32) -> (i32, i32) {
    %c0_i32 = arith.constant 0 : i32
    %c0_i32_0 = arith.constant 0 : i32
    %c0_i32_1 = arith.constant 0 : i32
    return %c0_i32, %c0_i32_0 : i32, i32
  }
  func.func @transform_5(%arg0: i32) -> (i32, i32) {
    %c0_i32 = arith.constant 0 : i32
    %c0_i32_0 = arith.constant 0 : i32
    %c0_i32_1 = arith.constant 0 : i32
    return %c0_i32, %c0_i32_0 : i32, i32
  }
  func.func @transform_6(%arg0: i32) -> (i32, i32) {
    %c0_i32 = arith.constant 0 : i32
    %c0_i32_0 = arith.constant 0 : i32
    %c0_i32_1 = arith.constant 0 : i32
    return %c0_i32, %c0_i32_0 : i32, i32
  }
  func.func @transform_7(%arg0: i32) -> (i32, i32) {
    %c0_i32 = arith.constant 0 : i32
    %c0_i32_0 = arith.constant 0 : i32
    %c0_i32_1 = arith.constant 0 : i32
    return %c0_i32, %c0_i32_0 : i32, i32
  }
  func.func @transform_8(%arg0: i32) -> (i32, i32) {
    %c0_i32 = arith.constant 0 : i32
    %c0_i32_0 = arith.constant 0 : i32
    %c0_i32_1 = arith.constant 0 : i32
    return %c0_i32, %c0_i32_0 : i32, i32
  }
  func.func @transform_9(%arg0: i32) -> (i32, i32) {
    %c0_i32 = arith.constant 0 : i32
    %c0_i32_0 = arith.constant 0 : i32
    %c0_i32_1 = arith.constant 0 : i32
    return %c0_i32, %c0_i32_0 : i32, i32
  }
  func.func @transform_10(%arg0: i32) -> (i32, i32) {
    %c0_i32 = arith.constant 0 : i32
    %c0_i32_0 = arith.constant 0 : i32
    %c0_i32_1 = arith.constant 0 : i32
    return %c0_i32, %c0_i32_0 : i32, i32
  }
  func.func @transform_11(%arg0: i32) -> (i32, i32) {
    %c0_i32 = arith.constant 0 : i32
    %c0_i32_0 = arith.constant 0 : i32
    %c0_i32_1 = arith.constant 0 : i32
    return %c0_i32, %c0_i32_0 : i32, i32
  }
  func.func @transform_12(%arg0: i32) -> (i32, i32) {
    %c0_i32 = arith.constant 0 : i32
    %c0_i32_0 = arith.constant 0 : i32
    %c0_i32_1 = arith.constant 0 : i32
    return %c0_i32, %c0_i32_0 : i32, i32
  }
  func.func @transform_13(%arg0: i32) -> (i32, i32) {
    %c0_i32 = arith.constant 0 : i32
    %c0_i32_0 = arith.constant 0 : i32
    %c0_i32_1 = arith.constant 0 : i32
    return %c0_i32, %c0_i32_0 : i32, i32
  }
  func.func @transform_14(%arg0: i32) -> (i32, i32) {
    %c0_i32 = arith.constant 0 : i32
    %c0_i32_0 = arith.constant 0 : i32
    %c0_i32_1 = arith.constant 0 : i32
    return %c0_i32, %c0_i32_0 : i32, i32
  }
  func.func @transform_15(%arg0: i32) -> (i32, i32) {
    %c0_i32 = arith.constant 0 : i32
    %c0_i32_0 = arith.constant 0 : i32
    %c0_i32_1 = arith.constant 0 : i32
    return %c0_i32, %c0_i32_0 : i32, i32
  }
  func.func @transform_16(%arg0: i32) -> (i32, i32) {
    %c0_i32 = arith.constant 0 : i32
    %c0_i32_0 = arith.constant 0 : i32
    %c0_i32_1 = arith.constant 0 : i32
    return %c0_i32, %c0_i32_0 : i32, i32
  }
  func.func @transform_17(%arg0: i32) -> (i32, i32) {
    %c0_i32 = arith.constant 0 : i32
    %c0_i32_0 = arith.constant 0 : i32
    %c0_i32_1 = arith.constant 0 : i32
    return %c0_i32, %c0_i32_0 : i32, i32
  }
  func.func @transform_18(%arg0: i32) -> (i32, i32) {
    %c0_i32 = arith.constant 0 : i32
    %c0_i32_0 = arith.constant 0 : i32
    %c0_i32_1 = arith.constant 0 : i32
    return %c0_i32, %c0_i32_0 : i32, i32
  }
  func.func @transform_19(%arg0: i32) -> (i32, i32) {
    %c0_i32 = arith.constant 0 : i32
    %c0_i32_0 = arith.constant 0 : i32
    %c0_i32_1 = arith.constant 0 : i32
    return %c0_i32, %c0_i32_0 : i32, i32
  }
  func.func @transform_20(%arg0: i32) -> (i32, i32) {
    %c0_i32 = arith.constant 0 : i32
    %c0_i32_0 = arith.constant 0 : i32
    %c0_i32_1 = arith.constant 0 : i32
    return %c0_i32, %c0_i32_0 : i32, i32
  }
  func.func @transform_21(%arg0: i32) -> (i32, i32) {
    %c0_i32 = arith.constant 0 : i32
    %c0_i32_0 = arith.constant 0 : i32
    %c0_i32_1 = arith.constant 0 : i32
    return %c0_i32, %c0_i32_0 : i32, i32
  }
  func.func @transform_22(%arg0: i32) -> (i32, i32) {
    %c0_i32 = arith.constant 0 : i32
    %c0_i32_0 = arith.constant 0 : i32
    %c0_i32_1 = arith.constant 0 : i32
    return %c0_i32, %c0_i32_0 : i32, i32
  }
}

</mosaic_0001>

<llo_original>
// kernel: tpu_custom_call.1
$region0: #{tpu_custom_call.1}
  #allocation0 [shape = 'u32[]', space=smem, size = 0x4, offset = 0x4, fixed_abs, tag = 'smem constant byte address 0x4 - core index']
  #allocation1 [shape = 'u32[144,128]{1,0:T(1,128)}', space=vmem, size = 0x12000, scoped, tag = 'internal scratch']
  %s0 = inlined_call_operand.hbm [shape: f32[16,32], index: 0, kind: input, shape index: {}]
  %s1 = inlined_call_operand.hbm [shape: f32[16,32], index: 1, kind: input, shape index: {}]
  %s2 = inlined_call_operand.hbm [shape: f32[8,8], index: 2, kind: input, shape index: {}]
  %s3 = inlined_call_operand.vmem [shape: f32[8,8], index: 3, kind: input, shape index: {}]
  %s4 = inlined_call_operand.vmem [shape: f32[32,96], index: 4, kind: input, shape index: {}]
  %s5 = inlined_call_operand.vmem [shape: f32[1,96], index: 5, kind: input, shape index: {}]
  %s6 = inlined_call_operand.vmem [shape: f32[32,32], index: 6, kind: input, shape index: {}]
  %s7 = inlined_call_operand.vmem [shape: f32[1,32], index: 7, kind: input, shape index: {}]
  %s8 = inlined_call_operand.vmem [shape: f32[32,32], index: 8, kind: input, shape index: {}]
  %s9 = inlined_call_operand.vmem [shape: f32[1,32], index: 9, kind: input, shape index: {}]
  %s10 = inlined_call_operand.hbm [shape: f32[32,64], index: 10, kind: input, shape index: {}]
  %s11 = inlined_call_operand.vmem [shape: f32[1,64], index: 11, kind: input, shape index: {}]
  %s12 = inlined_call_operand.hbm [shape: f32[32,32], index: 12, kind: input, shape index: {}]
  %s13 = inlined_call_operand.vmem [shape: f32[1,32], index: 13, kind: input, shape index: {}]
  %s14 = inlined_call_operand.hbm [shape: f32[32,64], index: 14, kind: input, shape index: {}]
  %s15 = inlined_call_operand.vmem [shape: f32[1,64], index: 15, kind: input, shape index: {}]
  %s16 = inlined_call_operand.vmem [shape: f32[64,32], index: 16, kind: input, shape index: {}]
  %s17 = inlined_call_operand.vmem [shape: f32[1,32], index: 17, kind: input, shape index: {}]
  %s18 = inlined_call_operand.vmem [shape: f32[3,32], index: 18, kind: input, shape index: {}]
  %s19 = inlined_call_operand.vmem [shape: f32[3,32], index: 19, kind: input, shape index: {}]
  %s20 = inlined_call_operand.hbm [shape: f32[16,32], index: 20, kind: output, shape index: {0}]
  %s21 = inlined_call_operand.vmem [shape: f32[64,8], index: 21, kind: output, shape index: {1}]
  %s22 = inlined_call_operand.vmem [shape: f32[64,8], index: 22, kind: output, shape index: {2}]
  %23 = xla_tuple %s20, %s21, %s22
  %s24 = sld [smem:[#allocation0]]
  $region130: #{tpu_custom_call.1} parent=0
    _
  %s26 = ssub.s32 1, %s24
  %s27 = scalar_select 0, %s26, %s24
  $region1: #{tpu_custom_call.1} parent=0
    #allocation2 [shape = 'u8[8192]{0}', space=vmem, size = 0x2000, scoped, tag = 'input window, operand 0, single buffered']
    #allocation3 [shape = 's32[1]{0}', space=sflag, size = 0x4, scoped, tag = 'scoped memory for tpu_custom_call.1']
    #allocation4 [shape = 's32[1]{0}', space=sflag, size = 0x4, scoped, tag = 'scoped memory for tpu_custom_call.1']
    #allocation5 [shape = 'u8[8192]{0}', space=vmem, size = 0x2000, scoped, tag = 'input window, operand 1, single buffered']
    #allocation6 [shape = 's32[1]{0}', space=sflag, size = 0x4, scoped, tag = 'scoped memory for tpu_custom_call.1']
    #allocation7 [shape = 'u8[4096]{0}', space=vmem, size = 0x1000, scoped, tag = 'input window, operand 2, single buffered']
    #allocation8 [shape = 'u8[16384]{0}', space=vmem, size = 0x4000, scoped, tag = 'input window, operand 10, single buffered']
    #allocation9 [shape = 's32[1]{0}', space=sflag, size = 0x4, scoped, tag = 'scoped memory for tpu_custom_call.1']
    #allocation10 [shape = 'u8[16384]{0}', space=vmem, size = 0x4000, scoped, tag = 'input window, operand 12, single buffered']
    #allocation11 [shape = 'u8[16384]{0}', space=vmem, size = 0x4000, scoped, tag = 'input window, operand 14, single buffered']
    #allocation12 [shape = 's32[1]{0}', space=sflag, size = 0x4, scoped, tag = 'scoped memory for tpu_custom_call.1']
    #allocation13 [shape = 'u8[8192]{0}', space=vmem, size = 0x2000, scoped, tag = 'output window, operand 0, single buffered']
    %28 = vsyncpa [#allocation3], 0
    %29 = vsyncpa [#allocation6], 0
    %30 = vsyncpa [#allocation9], 0
    %31 = vsyncpa [#allocation12], 0
    %32 = vsyncpa [#allocation4], 0
    // Predicated region
    $region2: #{tpu_custom_call.1} parent=1 // pred_check
      _
    $region3: #{tpu_custom_call.1} parent=1 // pred_check_branch
      %34 = sbr.rel (0) target = $region5
    $region4: #{tpu_custom_call.1} parent=1 // pred_region
      %s36 = ssub.s32 256, 256
      %37 = vsyncadd [#allocation3], %s36
      %s38 = sshll.u32 [#allocation2], 4
      %s39 = int_to_ptr.vmem [resolvable:$true] %s38
      %44 = dma.hbm_to_vmem [thread:$0]  %s0, 256, %s39, [#allocation3], 128, 128, 8
    $region5: #{tpu_custom_call.1} parent=1 // pred_fallthru
      _
    // Predicated region
    $region6: #{tpu_custom_call.1} parent=1 // pred_check
      _
    $region7: #{tpu_custom_call.1} parent=1 // pred_check_branch
      %46 = sbr.rel (0) target = $region9
    $region8: #{tpu_custom_call.1} parent=1 // pred_region
      %s48 = ssub.s32 256, 256
      %49 = vsyncadd [#allocation6], %s48
      %s50 = sshll.u32 [#allocation5], 4
      %s51 = int_to_ptr.vmem [resolvable:$true] %s50
      %56 = dma.hbm_to_vmem [thread:$0]  %s1, 256, %s51, [#allocation6], 128, 128, 8
    $region9: #{tpu_custom_call.1} parent=1 // pred_fallthru
      _
    // Predicated region
    $region10: #{tpu_custom_call.1} parent=1 // pred_check
      _
    $region11: #{tpu_custom_call.1} parent=1 // pred_check_branch
      %58 = sbr.rel (0) target = $region13
    $region12: #{tpu_custom_call.1} parent=1 // pred_region
      %s60 = ssub.s32 128, 128
      %61 = vsyncadd [#allocation6], %s60
      %s63 = sshll.u32 [#allocation7], 4
      %s64 = int_to_ptr.vmem [resolvable:$true] %s63
      %66 = dma.hbm_to_vmem [thread:$0]  %s2, 128, %s64, [#allocation6]
    $region13: #{tpu_custom_call.1} parent=1 // pred_fallthru
      _
    // Predicated region
    $region14: #{tpu_custom_call.1} parent=1 // pred_check
      _
    $region15: #{tpu_custom_call.1} parent=1 // pred_check_branch
      %68 = sbr.rel (0) target = $region17
    $region16: #{tpu_custom_call.1} parent=1 // pred_region
      _
    $region17: #{tpu_custom_call.1} parent=1 // pred_fallthru
      _
    // Predicated region
    $region18: #{tpu_custom_call.1} parent=1 // pred_check
      _
    $region19: #{tpu_custom_call.1} parent=1 // pred_check_branch
      %70 = sbr.rel (0) target = $region21
    $region20: #{tpu_custom_call.1} parent=1 // pred_region
      _
    $region21: #{tpu_custom_call.1} parent=1 // pred_fallthru
      _
    // Predicated region
    $region22: #{tpu_custom_call.1} parent=1 // pred_check
      _
    $region23: #{tpu_custom_call.1} parent=1 // pred_check_branch
      %72 = sbr.rel (0) target = $region25
    $region24: #{tpu_custom_call.1} parent=1 // pred_region
      _
    $region25: #{tpu_custom_call.1} parent=1 // pred_fallthru
      _
    // Predicated region
    $region26: #{tpu_custom_call.1} parent=1 // pred_check
      _
    $region27: #{tpu_custom_call.1} parent=1 // pred_check_branch
      %74 = sbr.rel (0) target = $region29
    $region28: #{tpu_custom_call.1} parent=1 // pred_region
      _
    $region29: #{tpu_custom_call.1} parent=1 // pred_fallthru
      _
    // Predicated region
    $region30: #{tpu_custom_call.1} parent=1 // pred_check
      _
    $region31: #{tpu_custom_call.1} parent=1 // pred_check_branch
      %76 = sbr.rel (0) target = $region33
    $region32: #{tpu_custom_call.1} parent=1 // pred_region
      _
    $region33: #{tpu_custom_call.1} parent=1 // pred_fallthru
      _
    // Predicated region
    $region34: #{tpu_custom_call.1} parent=1 // pred_check
      _
    $region35: #{tpu_custom_call.1} parent=1 // pred_check_branch
      %78 = sbr.rel (0) target = $region37
    $region36: #{tpu_custom_call.1} parent=1 // pred_region
      _
    $region37: #{tpu_custom_call.1} parent=1 // pred_fallthru
      _
    // Predicated region
    $region38: #{tpu_custom_call.1} parent=1 // pred_check
      _
    $region39: #{tpu_custom_call.1} parent=1 // pred_check_branch
      %80 = sbr.rel (0) target = $region41
    $region40: #{tpu_custom_call.1} parent=1 // pred_region
      _
    $region41: #{tpu_custom_call.1} parent=1 // pred_fallthru
      _
    // Predicated region
    $region42: #{tpu_custom_call.1} parent=1 // pred_check
      _
    $region43: #{tpu_custom_call.1} parent=1 // pred_check_branch
      %82 = sbr.rel (0) target = $region45
    $region44: #{tpu_custom_call.1} parent=1 // pred_region
      %s84 = ssub.s32 512, 512
      %85 = vsyncadd [#allocation9], %s84
      %s86 = sshll.u32 [#allocation8], 4
      %s87 = int_to_ptr.vmem [resolvable:$true] %s86
      %92 = dma.hbm_to_vmem [thread:$0]  %s10, 512, %s87, [#allocation9], 128, 128, 8
    $region45: #{tpu_custom_call.1} parent=1 // pred_fallthru
      _
    // Predicated region
    $region46: #{tpu_custom_call.1} parent=1 // pred_check
      _
    $region47: #{tpu_custom_call.1} parent=1 // pred_check_branch
      %94 = sbr.rel (0) target = $region49
    $region48: #{tpu_custom_call.1} parent=1 // pred_region
      _
    $region49: #{tpu_custom_call.1} parent=1 // pred_fallthru
      _
    // Predicated region
    $region50: #{tpu_custom_call.1} parent=1 // pred_check
      _
    $region51: #{tpu_custom_call.1} parent=1 // pred_check_branch
      %96 = sbr.rel (0) target = $region53
    $region52: #{tpu_custom_call.1} parent=1 // pred_region
      %s98 = ssub.s32 512, 512
      %99 = vsyncadd [#allocation9], %s98
      %s100 = sshll.u32 [#allocation10], 4
      %s101 = int_to_ptr.vmem [resolvable:$true] %s100
      %106 = dma.hbm_to_vmem [thread:$0]  %s12, 512, %s101, [#allocation9], 128, 128, 8
    $region53: #{tpu_custom_call.1} parent=1 // pred_fallthru
      _
    // Predicated region
    $region54: #{tpu_custom_call.1} parent=1 // pred_check
      _
    $region55: #{tpu_custom_call.1} parent=1 // pred_check_branch
      %108 = sbr.rel (0) target = $region57
    $region56: #{tpu_custom_call.1} parent=1 // pred_region
      _
    $region57: #{tpu_custom_call.1} parent=1 // pred_fallthru
      _
    // Predicated region
    $region58: #{tpu_custom_call.1} parent=1 // pred_check
      _
    $region59: #{tpu_custom_call.1} parent=1 // pred_check_branch
      %110 = sbr.rel (0) target = $region61
    $region60: #{tpu_custom_call.1} parent=1 // pred_region
      %s112 = ssub.s32 512, 512
      %113 = vsyncadd [#allocation12], %s112
      %s114 = sshll.u32 [#allocation11], 4
      %s115 = int_to_ptr.vmem [resolvable:$true] %s114
      %120 = dma.hbm_to_vmem [thread:$0]  %s14, 512, %s115, [#allocation12], 128, 128, 8
    $region61: #{tpu_custom_call.1} parent=1 // pred_fallthru
      _
    // Predicated region
    $region62: #{tpu_custom_call.1} parent=1 // pred_check
      _
    $region63: #{tpu_custom_call.1} parent=1 // pred_check_branch
      %122 = sbr.rel (0) target = $region65
    $region64: #{tpu_custom_call.1} parent=1 // pred_region
      _
    $region65: #{tpu_custom_call.1} parent=1 // pred_fallthru
      _
    // Predicated region
    $region66: #{tpu_custom_call.1} parent=1 // pred_check
      _
    $region67: #{tpu_custom_call.1} parent=1 // pred_check_branch
      %124 = sbr.rel (0) target = $region69
    $region68: #{tpu_custom_call.1} parent=1 // pred_region
      _
    $region69: #{tpu_custom_call.1} parent=1 // pred_fallthru
      _
    // Predicated region
    $region70: #{tpu_custom_call.1} parent=1 // pred_check
      _
    $region71: #{tpu_custom_call.1} parent=1 // pred_check_branch
      %126 = sbr.rel (0) target = $region73
    $region72: #{tpu_custom_call.1} parent=1 // pred_region
      _
    $region73: #{tpu_custom_call.1} parent=1 // pred_fallthru
      _
    // Predicated region
    $region74: #{tpu_custom_call.1} parent=1 // pred_check
      _
    $region75: #{tpu_custom_call.1} parent=1 // pred_check_branch
      %128 = sbr.rel (0) target = $region77
    $region76: #{tpu_custom_call.1} parent=1 // pred_region
      _
    $region77: #{tpu_custom_call.1} parent=1 // pred_fallthru
      _
    // Predicated region
    $region78: #{tpu_custom_call.1} parent=1 // pred_check
      _
    $region79: #{tpu_custom_call.1} parent=1 // pred_check_branch
      %130 = sbr.rel (0) target = $region81
    $region80: #{tpu_custom_call.1} parent=1 // pred_region
      _
    $region81: #{tpu_custom_call.1} parent=1 // pred_fallthru
      _
    // Predicated region
    $region82: #{tpu_custom_call.1} parent=1 // pred_check
      _
    $region83: #{tpu_custom_call.1} parent=1 // pred_check_branch
      %132 = sbr.rel (0) target = $region85
    $region84: #{tpu_custom_call.1} parent=1 // pred_region
      %133 = dma.done [#allocation3], 256
    $region85: #{tpu_custom_call.1} parent=1 // pred_fallthru
      _
    // Predicated region
    $region86: #{tpu_custom_call.1} parent=1 // pred_check
      _
    $region87: #{tpu_custom_call.1} parent=1 // pred_check_branch
      %135 = sbr.rel (0) target = $region89
    $region88: #{tpu_custom_call.1} parent=1 // pred_region
      %136 = dma.done [#allocation6], 256
    $region89: #{tpu_custom_call.1} parent=1 // pred_fallthru
      _
    // Predicated region
    $region90: #{tpu_custom_call.1} parent=1 // pred_check
      _
    $region91: #{tpu_custom_call.1} parent=1 // pred_check_branch
      %138 = sbr.rel (0) target = $region93
    $region92: #{tpu_custom_call.1} parent=1 // pred_region
      %139 = dma.done [#allocation6], 128
    $region93: #{tpu_custom_call.1} parent=1 // pred_fallthru
      _
    // Predicated region
    $region94: #{tpu_custom_call.1} parent=1 // pred_check
      _
    $region95: #{tpu_custom_call.1} parent=1 // pred_check_branch
      %141 = sbr.rel (0) target = $region97
    $region96: #{tpu_custom_call.1} parent=1 // pred_region
      %142 = dma.done [#allocation9], 512
    $region97: #{tpu_custom_call.1} parent=1 // pred_fallthru
      _
    // Predicated region
    $region98: #{tpu_custom_call.1} parent=1 // pred_check
      _
    $region99: #{tpu_custom_call.1} parent=1 // pred_check_branch
      %144 = sbr.rel (0) target = $region101
    $region100: #{tpu_custom_call.1} parent=1 // pred_region
      %145 = dma.done [#allocation9], 512
    $region101: #{tpu_custom_call.1} parent=1 // pred_fallthru
      _
    // Predicated region
    $region102: #{tpu_custom_call.1} parent=1 // pred_check
      _
    $region103: #{tpu_custom_call.1} parent=1 // pred_check_branch
      %147 = sbr.rel (0) target = $region105
    $region104: #{tpu_custom_call.1} parent=1 // pred_region
      %148 = dma.done [#allocation12], 512
    $region105: #{tpu_custom_call.1} parent=1 // pred_fallthru
      _
    %v149 = vld [vmem:[#allocation2] sm:$0xff]
    %v150 = vld [vmem:[#allocation2 + $0x8] sm:$0xff]
    %v151 = vld [vmem:[#allocation5] sm:$0xff]
    %v152 = vld [vmem:[#allocation5 + $0x8] sm:$0xff]
    %v153 = vld [vmem:[#allocation7] sm:$0xff]
    %vm154 = vcmp.eq.f32.partialorder %v153, 0.0
    %v155 = vsel %vm154, -1e+09, 0.0
    %v156 = vld [vmem:[%s3] sm:$0xff]
    %vm157 = vcmp.eq.f32.partialorder %v156, 0.0
    %v158 = vsel %vm157, -1e+09, 0.0
    %v159 = vld [vmem:[%s4] sm:$0xff]
    %v160 = vld [vmem:[%s4 + $0x8] sm:$0xff]
    %v161 = vld [vmem:[%s4 + $0x10] sm:$0xff]
    %v162 = vld [vmem:[%s4 + $0x18] sm:$0xff]
    %v163 = vld [vmem:[%s5] sm:$0x1]
    %v165 = vlaneseq
    %v166 = vshrl.u32 %v165, 7
    %v167 = vsub.s32 0, %v166
    %v168 = vrot.slane %v163, %v167
    %vm170 = vcmask 261120
    %v172 = vsel %vm170, %v149, 0
    %v175 = vsel %vm170, %v150, 0
    %177 = vmatprep.subr.mxu0 0.0
    %178 = vmatpush1.msra.mxu0 %v159
    %179 = vmatprep.subr.mxu0 0.0
    %180 = vmatpush1.msra.mxu0 %v160
    %181 = vmatprep.subr.mxu0 0.0
    %182 = vmatpush1.msra.mxu0 %v161
    %183 = vmatprep.subr.mxu0 0.0
    %184 = vmatpush1.msra.mxu0 %v162
    %185 = vmatprep.subr.mxu0 0.0
    %186 = vmatpush1.msra.mxu0 0.0
    %187 = vmatprep.subr.mxu0 0.0
    %188 = vmatpush1.msra.mxu0 0.0
    %189 = vmatprep.subr.mxu0 0.0
    %190 = vmatpush1.msra.mxu0 0.0
    %191 = vmatprep.subr.mxu0 0.0
    %192 = vmatpush1.msra.mxu0 0.0
    %193 = vmatprep.subr.mxu0 0.0
    %194 = vmatpush1.msra.mxu0 0.0
    %195 = vmatprep.subr.mxu0 0.0
    %196 = vmatpush1.msra.mxu0 0.0
    %197 = vmatprep.subr.mxu0 0.0
    %198 = vmatpush1.msra.mxu0 0.0
    %199 = vmatprep.subr.mxu0 0.0
    %200 = vmatpush1.msra.mxu0 0.0
    %201 = vmatprep.subr.mxu0 0.0
    %202 = vmatpush1.msra.mxu0 0.0
    %203 = vmatprep.subr.mxu0 0.0
    %204 = vmatpush1.msra.mxu0 0.0
    %205 = vmatprep.subr.mxu0 0.0
    %206 = vmatpush1.msra.mxu0 0.0
    %207 = vmatprep.subr.mxu0 0.0
    %208 = vmatpush1.msra.mxu0 0.0
    %209 = vmatprep.subr.mxu0 0.0
    %210 = vmatpush1.msra.mxu0 0.0
    %211 = vmatprep.subr.mxu0 0.0
    %212 = vmatpush1.msra.mxu0 0.0
    %213 = vmatprep.subr.mxu0 0.0
    %214 = vmatpush1.msra.mxu0 0.0
    %215 = vmatprep.subr.mxu0 0.0
    %216 = vmatpush1.msra.mxu0 0.0
    %217 = vmatprep.subr.mxu0 0.0
    %218 = vmatpush1.msra.mxu0 0.0
    %219 = vmatprep.subr.mxu0 0.0
    %220 = vmatpush1.msra.mxu0 0.0
    %221 = vmatprep.subr.mxu0 0.0
    %222 = vmatpush1.msra.mxu0 0.0
    %223 = vmatprep.subr.mxu0 0.0
    %224 = vmatpush1.msra.mxu0 0.0
    %225 = vmatprep.subr.mxu0 0.0
    %226 = vmatpush1.msra.mxu0 0.0
    %227 = vmatprep.subr.mxu0 0.0
    %228 = vmatpush1.msra.mxu0 0.0
    %229 = vmatprep.subr.mxu0 0.0
    %230 = vmatpush1.msra.mxu0 0.0
    %231 = vmatprep.subr.mxu0 0.0
    %232 = vmatpush1.msra.mxu0 0.0
    %233 = vmatprep.subr.mxu0 0.0
    %234 = vmatpush1.msra.mxu0 0.0
    %235 = vmatprep.subr.mxu0 0.0
    %236 = vmatpush1.msra.mxu0 0.0
    %237 = vmatprep.subr.mxu0 0.0
    %238 = vmatpush1.msra.mxu0 0.0
    %239 = vmatprep.subr.mxu0 0.0
    %240 = vmatpush1.msra.mxu0 0.0
    %241 = vmatprep.mubr.f32.mxu0 0.0
    %242 = vmatmul.mubr.f32.gmra.mrb[0].mxu0 %v172
    %v243 = vpop.f32.mrb[0].mxu0
    %v244 = vadd.f32 %v168, %v243
    %v245 = vpop.f32.mrb[0].mxu0
    %246 = vmatprep.mubr.f32.mxu0 0.0
    %247 = vmatmul.mubr.f32.gmra.mrb[0].mxu0 %v175
    %v248 = vpop.f32.mrb[0].mxu0
    %v249 = vadd.f32 %v168, %v248
    %v250 = vpop.f32.mrb[0].mxu0
    %251 = vdwg.mxu0
    %v252 = vmul.f32 %v244, 0.35355338
    %v253 = vmul.f32 %v249, 0.35355338
    %255 = vrot.lane.b32.xlu0 %v244, 96
    %v256 = vpop.permute.xlu0 %255
    %vm257 = vcmask 64512
    %v259 = vsel %vm257, %v252, 0
    %v261 = vsel %vm257, %v256, 0
    %263 = vmatprep.subr.mxu0 0.0
    %264 = vmatpush1.xpose.msra.mxu0 %v261
    %265 = vmatprep.subr.mxu0 0.0
    %266 = vmatpush1.xpose.msra.mxu0 0.0
    %267 = vmatprep.subr.mxu0 0.0
    %268 = vmatpush1.xpose.msra.mxu0 0.0
    %269 = vmatprep.subr.mxu0 0.0
    %270 = vmatpush1.xpose.msra.mxu0 0.0
    %271 = vmatprep.subr.mxu0 0.0
    %272 = vmatpush1.xpose.msra.mxu0 0.0
    %273 = vmatprep.subr.mxu0 0.0
    %274 = vmatpush1.xpose.msra.mxu0 0.0
    %275 = vmatprep.subr.mxu0 0.0
    %276 = vmatpush1.xpose.msra.mxu0 0.0
    %277 = vmatprep.subr.mxu0 0.0
    %278 = vmatpush1.xpose.msra.mxu0 0.0
    %279 = vmatprep.subr.mxu0 0.0
    %280 = vmatpush1.xpose.msra.mxu0 0.0
    %281 = vmatprep.subr.mxu0 0.0
    %282 = vmatpush1.xpose.msra.mxu0 0.0
    %283 = vmatprep.subr.mxu0 0.0
    %284 = vmatpush1.xpose.msra.mxu0 0.0
    %285 = vmatprep.subr.mxu0 0.0
    %286 = vmatpush1.xpose.msra.mxu0 0.0
    %287 = vmatprep.subr.mxu0 0.0
    %288 = vmatpush1.xpose.msra.mxu0 0.0
    %289 = vmatprep.subr.mxu0 0.0
    %290 = vmatpush1.xpose.msra.mxu0 0.0
    %291 = vmatprep.subr.mxu0 0.0
    %292 = vmatpush1.xpose.msra.mxu0 0.0
    %293 = vmatprep.subr.mxu0 0.0
    %294 = vmatpush1.xpose.msra.mxu0 0.0
    %295 = vmatprep.subr.mxu0 0.0
    %296 = vmatpush1.xpose.msra.mxu0 0.0
    %297 = vmatprep.subr.mxu0 0.0
    %298 = vmatpush1.xpose.msra.mxu0 0.0
    %299 = vmatprep.subr.mxu0 0.0
    %300 = vmatpush1.xpose.msra.mxu0 0.0
    %301 = vmatprep.subr.mxu0 0.0
    %302 = vmatpush1.xpose.msra.mxu0 0.0
    %303 = vmatprep.subr.mxu0 0.0
    %304 = vmatpush1.xpose.msra.mxu0 0.0
    %305 = vmatprep.subr.mxu0 0.0
    %306 = vmatpush1.xpose.msra.mxu0 0.0
    %307 = vmatprep.subr.mxu0 0.0
    %308 = vmatpush1.xpose.msra.mxu0 0.0
    %309 = vmatprep.subr.mxu0 0.0
    %310 = vmatpush1.xpose.msra.mxu0 0.0
    %311 = vmatprep.subr.mxu0 0.0
    %312 = vmatpush1.xpose.msra.mxu0 0.0
    %313 = vmatprep.subr.mxu0 0.0
    %314 = vmatpush1.xpose.msra.mxu0 0.0
    %315 = vmatprep.subr.mxu0 0.0
    %316 = vmatpush1.xpose.msra.mxu0 0.0
    %317 = vmatprep.subr.mxu0 0.0
    %318 = vmatpush1.xpose.msra.mxu0 0.0
    %319 = vmatprep.subr.mxu0 0.0
    %320 = vmatpush1.xpose.msra.mxu0 0.0
    %321 = vmatprep.subr.mxu0 0.0
    %322 = vmatpush1.xpose.msra.mxu0 0.0
    %323 = vmatprep.subr.mxu0 0.0
    %324 = vmatpush1.xpose.msra.mxu0 0.0
    %325 = vmatprep.subr.mxu0 0.0
    %326 = vmatpush1.xpose.msra.mxu0 0.0
    %327 = vmatprep.mubr.f32.mxu0 0.0
    %328 = vmatmul.mubr.f32.gmra.mrb[0].mxu0 %v259
    %v329 = vpop.f32.mrb[0].mxu0
    %v330 = vadd.f32 0.0, %v329
    %v331 = vpop.f32.mrb[0].mxu0
    %332 = vdwg.mxu0
    %333 = vrot.lane.b32.xlu0 %v252, 120
    %v334 = vpop.permute.xlu0 %333
    %335 = vrot.lane.b32.xlu0 %v244, 88
    %v336 = vpop.permute.xlu0 %335
    %v337 = vsel %vm257, %v334, 0
    %v339 = vsel %vm257, %v336, 0
    %341 = vmatprep.subr.mxu0 0.0
    %342 = vmatpush1.xpose.msra.mxu0 %v339
    %343 = vmatprep.subr.mxu0 0.0
    %344 = vmatpush1.xpose.msra.mxu0 0.0
    %345 = vmatprep.subr.mxu0 0.0
    %346 = vmatpush1.xpose.msra.mxu0 0.0
    %347 = vmatprep.subr.mxu0 0.0
    %348 = vmatpush1.xpose.msra.mxu0 0.0
    %349 = vmatprep.subr.mxu0 0.0
    %350 = vmatpush1.xpose.msra.mxu0 0.0
    %351 = vmatprep.subr.mxu0 0.0
    %352 = vmatpush1.xpose.msra.mxu0 0.0
    %353 = vmatprep.subr.mxu0 0.0
    %354 = vmatpush1.xpose.msra.mxu0 0.0
    %355 = vmatprep.subr.mxu0 0.0
    %356 = vmatpush1.xpose.msra.mxu0 0.0
    %357 = vmatprep.subr.mxu0 0.0
    %358 = vmatpush1.xpose.msra.mxu0 0.0
    %359 = vmatprep.subr.mxu0 0.0
    %360 = vmatpush1.xpose.msra.mxu0 0.0
    %361 = vmatprep.subr.mxu0 0.0
    %362 = vmatpush1.xpose.msra.mxu0 0.0
    %363 = vmatprep.subr.mxu0 0.0
    %364 = vmatpush1.xpose.msra.mxu0 0.0
    %365 = vmatprep.subr.mxu0 0.0
    %366 = vmatpush1.xpose.msra.mxu0 0.0
    %367 = vmatprep.subr.mxu0 0.0
    %368 = vmatpush1.xpose.msra.mxu0 0.0
    %369 = vmatprep.subr.mxu0 0.0
    %370 = vmatpush1.xpose.msra.mxu0 0.0
    %371 = vmatprep.subr.mxu0 0.0
    %372 = vmatpush1.xpose.msra.mxu0 0.0
    %373 = vmatprep.subr.mxu0 0.0
    %374 = vmatpush1.xpose.msra.mxu0 0.0
    %375 = vmatprep.subr.mxu0 0.0
    %376 = vmatpush1.xpose.msra.mxu0 0.0
    %377 = vmatprep.subr.mxu0 0.0
    %378 = vmatpush1.xpose.msra.mxu0 0.0
    %379 = vmatprep.subr.mxu0 0.0
    %380 = vmatpush1.xpose.msra.mxu0 0.0
    %381 = vmatprep.subr.mxu0 0.0
    %382 = vmatpush1.xpose.msra.mxu0 0.0
    %383 = vmatprep.subr.mxu0 0.0
    %384 = vmatpush1.xpose.msra.mxu0 0.0
    %385 = vmatprep.subr.mxu0 0.0
    %386 = vmatpush1.xpose.msra.mxu0 0.0
    %387 = vmatprep.subr.mxu0 0.0
    %388 = vmatpush1.xpose.msra.mxu0 0.0
    %389 = vmatprep.subr.mxu0 0.0
    %390 = vmatpush1.xpose.msra.mxu0 0.0
    %391 = vmatprep.subr.mxu0 0.0
    %392 = vmatpush1.xpose.msra.mxu0 0.0
    %393 = vmatprep.subr.mxu0 0.0
    %394 = vmatpush1.xpose.msra.mxu0 0.0
    %395 = vmatprep.subr.mxu0 0.0
    %396 = vmatpush1.xpose.msra.mxu0 0.0
    %397 = vmatprep.subr.mxu0 0.0
    %398 = vmatpush1.xpose.msra.mxu0 0.0
    %399 = vmatprep.subr.mxu0 0.0
    %400 = vmatpush1.xpose.msra.mxu0 0.0
    %401 = vmatprep.subr.mxu0 0.0
    %402 = vmatpush1.xpose.msra.mxu0 0.0
    %403 = vmatprep.subr.mxu0 0.0
    %404 = vmatpush1.xpose.msra.mxu0 0.0
    %405 = vmatprep.mubr.f32.mxu0 0.0
    %406 = vmatmul.mubr.f32.gmra.mrb[0].mxu0 %v337
    %v407 = vpop.f32.mrb[0].mxu0
    %v408 = vadd.f32 0.0, %v407
    %v409 = vpop.f32.mrb[0].mxu0
    %410 = vdwg.mxu0
    %411 = vrot.lane.b32.xlu0 %v252, 112
    %v412 = vpop.permute.xlu0 %411
    %413 = vrot.lane.b32.xlu0 %v244, 80
    %v414 = vpop.permute.xlu0 %413
    %v415 = vsel %vm257, %v412, 0
    %v417 = vsel %vm257, %v414, 0
    %419 = vmatprep.subr.mxu0 0.0
    %420 = vmatpush1.xpose.msra.mxu0 %v417
    %421 = vmatprep.subr.mxu0 0.0
    %422 = vmatpush1.xpose.msra.mxu0 0.0
    %423 = vmatprep.subr.mxu0 0.0
    %424 = vmatpush1.xpose.msra.mxu0 0.0
    %425 = vmatprep.subr.mxu0 0.0
    %426 = vmatpush1.xpose.msra.mxu0 0.0
    %427 = vmatprep.subr.mxu0 0.0
    %428 = vmatpush1.xpose.msra.mxu0 0.0
    %429 = vmatprep.subr.mxu0 0.0
    %430 = vmatpush1.xpose.msra.mxu0 0.0
    %431 = vmatprep.subr.mxu0 0.0
    %432 = vmatpush1.xpose.msra.mxu0 0.0
    %433 = vmatprep.subr.mxu0 0.0
    %434 = vmatpush1.xpose.msra.mxu0 0.0
    %435 = vmatprep.subr.mxu0 0.0
    %436 = vmatpush1.xpose.msra.mxu0 0.0
    %437 = vmatprep.subr.mxu0 0.0
    %438 = vmatpush1.xpose.msra.mxu0 0.0
    %439 = vmatprep.subr.mxu0 0.0
    %440 = vmatpush1.xpose.msra.mxu0 0.0
    %441 = vmatprep.subr.mxu0 0.0
    %442 = vmatpush1.xpose.msra.mxu0 0.0
    %443 = vmatprep.subr.mxu0 0.0
    %444 = vmatpush1.xpose.msra.mxu0 0.0
    %445 = vmatprep.subr.mxu0 0.0
    %446 = vmatpush1.xpose.msra.mxu0 0.0
    %447 = vmatprep.subr.mxu0 0.0
    %448 = vmatpush1.xpose.msra.mxu0 0.0
    %449 = vmatprep.subr.mxu0 0.0
    %450 = vmatpush1.xpose.msra.mxu0 0.0
    %451 = vmatprep.subr.mxu0 0.0
    %452 = vmatpush1.xpose.msra.mxu0 0.0
    %453 = vmatprep.subr.mxu0 0.0
    %454 = vmatpush1.xpose.msra.mxu0 0.0
    %455 = vmatprep.subr.mxu0 0.0
    %456 = vmatpush1.xpose.msra.mxu0 0.0
    %457 = vmatprep.subr.mxu0 0.0
    %458 = vmatpush1.xpose.msra.mxu0 0.0
    %459 = vmatprep.subr.mxu0 0.0
    %460 = vmatpush1.xpose.msra.mxu0 0.0
    %461 = vmatprep.subr.mxu0 0.0
    %462 = vmatpush1.xpose.msra.mxu0 0.0
    %463 = vmatprep.subr.mxu0 0.0
    %464 = vmatpush1.xpose.msra.mxu0 0.0
    %465 = vmatprep.subr.mxu0 0.0
    %466 = vmatpush1.xpose.msra.mxu0 0.0
    %467 = vmatprep.subr.mxu0 0.0
    %468 = vmatpush1.xpose.msra.mxu0 0.0
    %469 = vmatprep.subr.mxu0 0.0
    %470 = vmatpush1.xpose.msra.mxu0 0.0
    %471 = vmatprep.subr.mxu0 0.0
    %472 = vmatpush1.xpose.msra.mxu0 0.0
    %473 = vmatprep.subr.mxu0 0.0
    %474 = vmatpush1.xpose.msra.mxu0 0.0
    %475 = vmatprep.subr.mxu0 0.0
    %476 = vmatpush1.xpose.msra.mxu0 0.0
    %477 = vmatprep.subr.mxu0 0.0
    %478 = vmatpush1.xpose.msra.mxu0 0.0
    %479 = vmatprep.subr.mxu0 0.0
    %480 = vmatpush1.xpose.msra.mxu0 0.0
    %481 = vmatprep.subr.mxu0 0.0
    %482 = vmatpush1.xpose.msra.mxu0 0.0
    %483 = vmatprep.mubr.f32.mxu0 0.0
    %484 = vmatmul.mubr.f32.gmra.mrb[0].mxu0 %v415
    %v485 = vpop.f32.mrb[0].mxu0
    %v486 = vadd.f32 0.0, %v485
    %v487 = vpop.f32.mrb[0].mxu0
    %488 = vdwg.mxu0
    %489 = vrot.lane.b32.xlu0 %v252, 104
    %v490 = vpop.permute.xlu0 %489
    %491 = vrot.lane.b32.xlu0 %v244, 72
    %v492 = vpop.permute.xlu0 %491
    %v493 = vsel %vm257, %v490, 0
    %v495 = vsel %vm257, %v492, 0
    %497 = vmatprep.subr.mxu0 0.0
    %498 = vmatpush1.xpose.msra.mxu0 %v495
    %499 = vmatprep.subr.mxu0 0.0
    %500 = vmatpush1.xpose.msra.mxu0 0.0
    %501 = vmatprep.subr.mxu0 0.0
    %502 = vmatpush1.xpose.msra.mxu0 0.0
    %503 = vmatprep.subr.mxu0 0.0
    %504 = vmatpush1.xpose.msra.mxu0 0.0
    %505 = vmatprep.subr.mxu0 0.0
    %506 = vmatpush1.xpose.msra.mxu0 0.0
    %507 = vmatprep.subr.mxu0 0.0
    %508 = vmatpush1.xpose.msra.mxu0 0.0
    %509 = vmatprep.subr.mxu0 0.0
    %510 = vmatpush1.xpose.msra.mxu0 0.0
    %511 = vmatprep.subr.mxu0 0.0
    %512 = vmatpush1.xpose.msra.mxu0 0.0
    %513 = vmatprep.subr.mxu0 0.0
    %514 = vmatpush1.xpose.msra.mxu0 0.0
    %515 = vmatprep.subr.mxu0 0.0
    %516 = vmatpush1.xpose.msra.mxu0 0.0
    %517 = vmatprep.subr.mxu0 0.0
    %518 = vmatpush1.xpose.msra.mxu0 0.0
    %519 = vmatprep.subr.mxu0 0.0
    %520 = vmatpush1.xpose.msra.mxu0 0.0
    %521 = vmatprep.subr.mxu0 0.0
    %522 = vmatpush1.xpose.msra.mxu0 0.0
    %523 = vmatprep.subr.mxu0 0.0
    %524 = vmatpush1.xpose.msra.mxu0 0.0
    %525 = vmatprep.subr.mxu0 0.0
    %526 = vmatpush1.xpose.msra.mxu0 0.0
    %527 = vmatprep.subr.mxu0 0.0
    %528 = vmatpush1.xpose.msra.mxu0 0.0
    %529 = vmatprep.subr.mxu0 0.0
    %530 = vmatpush1.xpose.msra.mxu0 0.0
    %531 = vmatprep.subr.mxu0 0.0
    %532 = vmatpush1.xpose.msra.mxu0 0.0
    %533 = vmatprep.subr.mxu0 0.0
    %534 = vmatpush1.xpose.msra.mxu0 0.0
    %535 = vmatprep.subr.mxu0 0.0
    %536 = vmatpush1.xpose.msra.mxu0 0.0
    %537 = vmatprep.subr.mxu0 0.0
    %538 = vmatpush1.xpose.msra.mxu0 0.0
    %539 = vmatprep.subr.mxu0 0.0
    %540 = vmatpush1.xpose.msra.mxu0 0.0
    %541 = vmatprep.subr.mxu0 0.0
    %542 = vmatpush1.xpose.msra.mxu0 0.0
    %543 = vmatprep.subr.mxu0 0.0
    %544 = vmatpush1.xpose.msra.mxu0 0.0
    %545 = vmatprep.subr.mxu0 0.0
    %546 = vmatpush1.xpose.msra.mxu0 0.0
    %547 = vmatprep.subr.mxu0 0.0
    %548 = vmatpush1.xpose.msra.mxu0 0.0
    %549 = vmatprep.subr.mxu0 0.0
    %550 = vmatpush1.xpose.msra.mxu0 0.0
    %551 = vmatprep.subr.mxu0 0.0
    %552 = vmatpush1.xpose.msra.mxu0 0.0
    %553 = vmatprep.subr.mxu0 0.0
    %554 = vmatpush1.xpose.msra.mxu0 0.0
    %555 = vmatprep.subr.mxu0 0.0
    %556 = vmatpush1.xpose.msra.mxu0 0.0
    %557 = vmatprep.subr.mxu0 0.0
    %558 = vmatpush1.xpose.msra.mxu0 0.0
    %559 = vmatprep.subr.mxu0 0.0
    %560 = vmatpush1.xpose.msra.mxu0 0.0
    %561 = vmatprep.mubr.f32.mxu0 0.0
    %562 = vmatmul.mubr.f32.gmra.mrb[0].mxu0 %v493
    %v563 = vpop.f32.mrb[0].mxu0
    %v564 = vadd.f32 0.0, %v563
    %v565 = vpop.f32.mrb[0].mxu0
    %566 = vdwg.mxu0
    %568 = vrot.lane.b32.xlu0 %v249, 96
    %v569 = vpop.permute.xlu0 %568
    %v571 = vsel %vm257, %v253, 0
    %v573 = vsel %vm257, %v569, 0
    %575 = vmatprep.subr.mxu0 0.0
    %576 = vmatpush1.xpose.msra.mxu0 %v573
    %577 = vmatprep.subr.mxu0 0.0
    %578 = vmatpush1.xpose.msra.mxu0 0.0
    %579 = vmatprep.subr.mxu0 0.0
    %580 = vmatpush1.xpose.msra.mxu0 0.0
    %581 = vmatprep.subr.mxu0 0.0
    %582 = vmatpush1.xpose.msra.mxu0 0.0
    %583 = vmatprep.subr.mxu0 0.0
    %584 = vmatpush1.xpose.msra.mxu0 0.0
    %585 = vmatprep.subr.mxu0 0.0
    %586 = vmatpush1.xpose.msra.mxu0 0.0
    %587 = vmatprep.subr.mxu0 0.0
    %588 = vmatpush1.xpose.msra.mxu0 0.0
    %589 = vmatprep.subr.mxu0 0.0
    %590 = vmatpush1.xpose.msra.mxu0 0.0
    %591 = vmatprep.subr.mxu0 0.0
    %592 = vmatpush1.xpose.msra.mxu0 0.0
    %593 = vmatprep.subr.mxu0 0.0
    %594 = vmatpush1.xpose.msra.mxu0 0.0
    %595 = vmatprep.subr.mxu0 0.0
    %596 = vmatpush1.xpose.msra.mxu0 0.0
    %597 = vmatprep.subr.mxu0 0.0
    %598 = vmatpush1.xpose.msra.mxu0 0.0
    %599 = vmatprep.subr.mxu0 0.0
    %600 = vmatpush1.xpose.msra.mxu0 0.0
    %601 = vmatprep.subr.mxu0 0.0
    %602 = vmatpush1.xpose.msra.mxu0 0.0
    %603 = vmatprep.subr.mxu0 0.0
    %604 = vmatpush1.xpose.msra.mxu0 0.0
    %605 = vmatprep.subr.mxu0 0.0
    %606 = vmatpush1.xpose.msra.mxu0 0.0
    %607 = vmatprep.subr.mxu0 0.0
    %608 = vmatpush1.xpose.msra.mxu0 0.0
    %609 = vmatprep.subr.mxu0 0.0
    %610 = vmatpush1.xpose.msra.mxu0 0.0
    %611 = vmatprep.subr.mxu0 0.0
    %612 = vmatpush1.xpose.msra.mxu0 0.0
    %613 = vmatprep.subr.mxu0 0.0
    %614 = vmatpush1.xpose.msra.mxu0 0.0
    %615 = vmatprep.subr.mxu0 0.0
    %616 = vmatpush1.xpose.msra.mxu0 0.0
    %617 = vmatprep.subr.mxu0 0.0
    %618 = vmatpush1.xpose.msra.mxu0 0.0
    %619 = vmatprep.subr.mxu0 0.0
    %620 = vmatpush1.xpose.msra.mxu0 0.0
    %621 = vmatprep.subr.mxu0 0.0
    %622 = vmatpush1.xpose.msra.mxu0 0.0
    %623 = vmatprep.subr.mxu0 0.0
    %624 = vmatpush1.xpose.msra.mxu0 0.0
    %625 = vmatprep.subr.mxu0 0.0
    %626 = vmatpush1.xpose.msra.mxu0 0.0
    %627 = vmatprep.subr.mxu0 0.0
    %628 = vmatpush1.xpose.msra.mxu0 0.0
    %629 = vmatprep.subr.mxu0 0.0
    %630 = vmatpush1.xpose.msra.mxu0 0.0
    %631 = vmatprep.subr.mxu0 0.0
    %632 = vmatpush1.xpose.msra.mxu0 0.0
    %633 = vmatprep.subr.mxu0 0.0
    %634 = vmatpush1.xpose.msra.mxu0 0.0
    %635 = vmatprep.subr.mxu0 0.0
    %636 = vmatpush1.xpose.msra.mxu0 0.0
    %637 = vmatprep.subr.mxu0 0.0
    %638 = vmatpush1.xpose.msra.mxu0 0.0
    %639 = vmatprep.mubr.f32.mxu0 0.0
    %640 = vmatmul.mubr.f32.gmra.mrb[0].mxu0 %v571
    %v641 = vpop.f32.mrb[0].mxu0
    %v642 = vadd.f32 0.0, %v641
    %v643 = vpop.f32.mrb[0].mxu0
    %644 = vdwg.mxu0
    %645 = vrot.lane.b32.xlu0 %v253, 120
    %v646 = vpop.permute.xlu0 %645
    %647 = vrot.lane.b32.xlu0 %v249, 88
    %v648 = vpop.permute.xlu0 %647
    %v649 = vsel %vm257, %v646, 0
    %v651 = vsel %vm257, %v648, 0
    %653 = vmatprep.subr.mxu0 0.0
    %654 = vmatpush1.xpose.msra.mxu0 %v651
    %655 = vmatprep.subr.mxu0 0.0
    %656 = vmatpush1.xpose.msra.mxu0 0.0
    %657 = vmatprep.subr.mxu0 0.0
    %658 = vmatpush1.xpose.msra.mxu0 0.0
    %659 = vmatprep.subr.mxu0 0.0
    %660 = vmatpush1.xpose.msra.mxu0 0.0
    %661 = vmatprep.subr.mxu0 0.0
    %662 = vmatpush1.xpose.msra.mxu0 0.0
    %663 = vmatprep.subr.mxu0 0.0
    %664 = vmatpush1.xpose.msra.mxu0 0.0
    %665 = vmatprep.subr.mxu0 0.0
    %666 = vmatpush1.xpose.msra.mxu0 0.0
    %667 = vmatprep.subr.mxu0 0.0
    %668 = vmatpush1.xpose.msra.mxu0 0.0
    %669 = vmatprep.subr.mxu0 0.0
    %670 = vmatpush1.xpose.msra.mxu0 0.0
    %671 = vmatprep.subr.mxu0 0.0
    %672 = vmatpush1.xpose.msra.mxu0 0.0
    %673 = vmatprep.subr.mxu0 0.0
    %674 = vmatpush1.xpose.msra.mxu0 0.0
    %675 = vmatprep.subr.mxu0 0.0
    %676 = vmatpush1.xpose.msra.mxu0 0.0
    %677 = vmatprep.subr.mxu0 0.0
    %678 = vmatpush1.xpose.msra.mxu0 0.0
    %679 = vmatprep.subr.mxu0 0.0
    %680 = vmatpush1.xpose.msra.mxu0 0.0
    %681 = vmatprep.subr.mxu0 0.0
    %682 = vmatpush1.xpose.msra.mxu0 0.0
    %683 = vmatprep.subr.mxu0 0.0
    %684 = vmatpush1.xpose.msra.mxu0 0.0
    %685 = vmatprep.subr.mxu0 0.0
    %686 = vmatpush1.xpose.msra.mxu0 0.0
    %687 = vmatprep.subr.mxu0 0.0
    %688 = vmatpush1.xpose.msra.mxu0 0.0
    %689 = vmatprep.subr.mxu0 0.0
    %690 = vmatpush1.xpose.msra.mxu0 0.0
    %691 = vmatprep.subr.mxu0 0.0
    %692 = vmatpush1.xpose.msra.mxu0 0.0
    %693 = vmatprep.subr.mxu0 0.0
    %694 = vmatpush1.xpose.msra.mxu0 0.0
    %695 = vmatprep.subr.mxu0 0.0
    %696 = vmatpush1.xpose.msra.mxu0 0.0
    %697 = vmatprep.subr.mxu0 0.0
    %698 = vmatpush1.xpose.msra.mxu0 0.0
    %699 = vmatprep.subr.mxu0 0.0
    %700 = vmatpush1.xpose.msra.mxu0 0.0
    %701 = vmatprep.subr.mxu0 0.0
    %702 = vmatpush1.xpose.msra.mxu0 0.0
    %703 = vmatprep.subr.mxu0 0.0
    %704 = vmatpush1.xpose.msra.mxu0 0.0
    %705 = vmatprep.subr.mxu0 0.0
    %706 = vmatpush1.xpose.msra.mxu0 0.0
    %707 = vmatprep.subr.mxu0 0.0
    %708 = vmatpush1.xpose.msra.mxu0 0.0
    %709 = vmatprep.subr.mxu0 0.0
    %710 = vmatpush1.xpose.msra.mxu0 0.0
    %711 = vmatprep.subr.mxu0 0.0
    %712 = vmatpush1.xpose.msra.mxu0 0.0
    %713 = vmatprep.subr.mxu0 0.0
    %714 = vmatpush1.xpose.msra.mxu0 0.0
    %715 = vmatprep.subr.mxu0 0.0
    %716 = vmatpush1.xpose.msra.mxu0 0.0
    %717 = vmatprep.mubr.f32.mxu0 0.0
    %718 = vmatmul.mubr.f32.gmra.mrb[0].mxu0 %v649
    %v719 = vpop.f32.mrb[0].mxu0
    %v720 = vadd.f32 0.0, %v719
    %v721 = vpop.f32.mrb[0].mxu0
    %722 = vdwg.mxu0
    %723 = vrot.lane.b32.xlu0 %v253, 112
    %v724 = vpop.permute.xlu0 %723
    %725 = vrot.lane.b32.xlu0 %v249, 80
    %v726 = vpop.permute.xlu0 %725
    %v727 = vsel %vm257, %v724, 0
    %v729 = vsel %vm257, %v726, 0
    %731 = vmatprep.subr.mxu0 0.0
    %732 = vmatpush1.xpose.msra.mxu0 %v729
    %733 = vmatprep.subr.mxu0 0.0
    %734 = vmatpush1.xpose.msra.mxu0 0.0
    %735 = vmatprep.subr.mxu0 0.0
    %736 = vmatpush1.xpose.msra.mxu0 0.0
    %737 = vmatprep.subr.mxu0 0.0
    %738 = vmatpush1.xpose.msra.mxu0 0.0
    %739 = vmatprep.subr.mxu0 0.0
    %740 = vmatpush1.xpose.msra.mxu0 0.0
    %741 = vmatprep.subr.mxu0 0.0
    %742 = vmatpush1.xpose.msra.mxu0 0.0
    %743 = vmatprep.subr.mxu0 0.0
    %744 = vmatpush1.xpose.msra.mxu0 0.0
    %745 = vmatprep.subr.mxu0 0.0
    %746 = vmatpush1.xpose.msra.mxu0 0.0
    %747 = vmatprep.subr.mxu0 0.0
    %748 = vmatpush1.xpose.msra.mxu0 0.0
    %749 = vmatprep.subr.mxu0 0.0
    %750 = vmatpush1.xpose.msra.mxu0 0.0
    %751 = vmatprep.subr.mxu0 0.0
    %752 = vmatpush1.xpose.msra.mxu0 0.0
    %753 = vmatprep.subr.mxu0 0.0
    %754 = vmatpush1.xpose.msra.mxu0 0.0
    %755 = vmatprep.subr.mxu0 0.0
    %756 = vmatpush1.xpose.msra.mxu0 0.0
    %757 = vmatprep.subr.mxu0 0.0
    %758 = vmatpush1.xpose.msra.mxu0 0.0
    %759 = vmatprep.subr.mxu0 0.0
    %760 = vmatpush1.xpose.msra.mxu0 0.0
    %761 = vmatprep.subr.mxu0 0.0
    %762 = vmatpush1.xpose.msra.mxu0 0.0
    %763 = vmatprep.subr.mxu0 0.0
    %764 = vmatpush1.xpose.msra.mxu0 0.0
    %765 = vmatprep.subr.mxu0 0.0
    %766 = vmatpush1.xpose.msra.mxu0 0.0
    %767 = vmatprep.subr.mxu0 0.0
    %768 = vmatpush1.xpose.msra.mxu0 0.0
    %769 = vmatprep.subr.mxu0 0.0
    %770 = vmatpush1.xpose.msra.mxu0 0.0
    %771 = vmatprep.subr.mxu0 0.0
    %772 = vmatpush1.xpose.msra.mxu0 0.0
    %773 = vmatprep.subr.mxu0 0.0
    %774 = vmatpush1.xpose.msra.mxu0 0.0
    %775 = vmatprep.subr.mxu0 0.0
    %776 = vmatpush1.xpose.msra.mxu0 0.0
    %777 = vmatprep.subr.mxu0 0.0
    %778 = vmatpush1.xpose.msra.mxu0 0.0
    %779 = vmatprep.subr.mxu0 0.0
    %780 = vmatpush1.xpose.msra.mxu0 0.0
    %781 = vmatprep.subr.mxu0 0.0
    %782 = vmatpush1.xpose.msra.mxu0 0.0
    %783 = vmatprep.subr.mxu0 0.0
    %784 = vmatpush1.xpose.msra.mxu0 0.0
    %785 = vmatprep.subr.mxu0 0.0
    %786 = vmatpush1.xpose.msra.mxu0 0.0
    %787 = vmatprep.subr.mxu0 0.0
    %788 = vmatpush1.xpose.msra.mxu0 0.0
    %789 = vmatprep.subr.mxu0 0.0
    %790 = vmatpush1.xpose.msra.mxu0 0.0
    %791 = vmatprep.subr.mxu0 0.0
    %792 = vmatpush1.xpose.msra.mxu0 0.0
    %793 = vmatprep.subr.mxu0 0.0
    %794 = vmatpush1.xpose.msra.mxu0 0.0
    %795 = vmatprep.mubr.f32.mxu0 0.0
    %796 = vmatmul.mubr.f32.gmra.mrb[0].mxu0 %v727
    %v797 = vpop.f32.mrb[0].mxu0
    %v798 = vadd.f32 0.0, %v797
    %v799 = vpop.f32.mrb[0].mxu0
    %800 = vdwg.mxu0
    %801 = vrot.lane.b32.xlu0 %v253, 104
    %v802 = vpop.permute.xlu0 %801
    %803 = vrot.lane.b32.xlu0 %v249, 72
    %v804 = vpop.permute.xlu0 %803
    %v805 = vsel %vm257, %v802, 0
    %v807 = vsel %vm257, %v804, 0
    %809 = vmatprep.subr.mxu0 0.0
    %810 = vmatpush1.xpose.msra.mxu0 %v807
    %811 = vmatprep.subr.mxu0 0.0
    %812 = vmatpush1.xpose.msra.mxu0 0.0
    %813 = vmatprep.subr.mxu0 0.0
    %814 = vmatpush1.xpose.msra.mxu0 0.0
    %815 = vmatprep.subr.mxu0 0.0
    %816 = vmatpush1.xpose.msra.mxu0 0.0
    %817 = vmatprep.subr.mxu0 0.0
    %818 = vmatpush1.xpose.msra.mxu0 0.0
    %819 = vmatprep.subr.mxu0 0.0
    %820 = vmatpush1.xpose.msra.mxu0 0.0
    %821 = vmatprep.subr.mxu0 0.0
    %822 = vmatpush1.xpose.msra.mxu0 0.0
    %823 = vmatprep.subr.mxu0 0.0
    %824 = vmatpush1.xpose.msra.mxu0 0.0
    %825 = vmatprep.subr.mxu0 0.0
    %826 = vmatpush1.xpose.msra.mxu0 0.0
    %827 = vmatprep.subr.mxu0 0.0
    %828 = vmatpush1.xpose.msra.mxu0 0.0
    %829 = vmatprep.subr.mxu0 0.0
    %830 = vmatpush1.xpose.msra.mxu0 0.0
    %831 = vmatprep.subr.mxu0 0.0
    %832 = vmatpush1.xpose.msra.mxu0 0.0
    %833 = vmatprep.subr.mxu0 0.0
    %834 = vmatpush1.xpose.msra.mxu0 0.0
    %835 = vmatprep.subr.mxu0 0.0
    %836 = vmatpush1.xpose.msra.mxu0 0.0
    %837 = vmatprep.subr.mxu0 0.0
    %838 = vmatpush1.xpose.msra.mxu0 0.0
    %839 = vmatprep.subr.mxu0 0.0
    %840 = vmatpush1.xpose.msra.mxu0 0.0
    %841 = vmatprep.subr.mxu0 0.0
    %842 = vmatpush1.xpose.msra.mxu0 0.0
    %843 = vmatprep.subr.mxu0 0.0
    %844 = vmatpush1.xpose.msra.mxu0 0.0
    %845 = vmatprep.subr.mxu0 0.0
    %846 = vmatpush1.xpose.msra.mxu0 0.0
    %847 = vmatprep.subr.mxu0 0.0
    %848 = vmatpush1.xpose.msra.mxu0 0.0
    %849 = vmatprep.subr.mxu0 0.0
    %850 = vmatpush1.xpose.msra.mxu0 0.0
    %851 = vmatprep.subr.mxu0 0.0
    %852 = vmatpush1.xpose.msra.mxu0 0.0
    %853 = vmatprep.subr.mxu0 0.0
    %854 = vmatpush1.xpose.msra.mxu0 0.0
    %855 = vmatprep.subr.mxu0 0.0
    %856 = vmatpush1.xpose.msra.mxu0 0.0
    %857 = vmatprep.subr.mxu0 0.0
    %858 = vmatpush1.xpose.msra.mxu0 0.0
    %859 = vmatprep.subr.mxu0 0.0
    %860 = vmatpush1.xpose.msra.mxu0 0.0
    %861 = vmatprep.subr.mxu0 0.0
    %862 = vmatpush1.xpose.msra.mxu0 0.0
    %863 = vmatprep.subr.mxu0 0.0
    %864 = vmatpush1.xpose.msra.mxu0 0.0
    %865 = vmatprep.subr.mxu0 0.0
    %866 = vmatpush1.xpose.msra.mxu0 0.0
    %867 = vmatprep.subr.mxu0 0.0
    %868 = vmatpush1.xpose.msra.mxu0 0.0
    %869 = vmatprep.subr.mxu0 0.0
    %870 = vmatpush1.xpose.msra.mxu0 0.0
    %871 = vmatprep.subr.mxu0 0.0
    %872 = vmatpush1.xpose.msra.mxu0 0.0
    %873 = vmatprep.mubr.f32.mxu0 0.0
    %874 = vmatmul.mubr.f32.gmra.mrb[0].mxu0 %v805
    %v875 = vpop.f32.mrb[0].mxu0
    %v876 = vadd.f32 0.0, %v875
    %v877 = vpop.f32.mrb[0].mxu0
    %878 = vdwg.mxu0
    %v879 = vadd.f32 %v330, %v155
    %v880 = vadd.f32 %v408, %v155
    %v881 = vadd.f32 %v486, %v155
    %v882 = vadd.f32 %v564, %v155
    %v883 = vadd.f32 %v642, %v155
    %v884 = vadd.f32 %v720, %v155
    %v885 = vadd.f32 %v798, %v155
    %v886 = vadd.f32 %v876, %v155
    %v887 = vsel %vm257, %v879, -inf
    %888 = vmax.xlane.f32.xlu0 %v887
    %v889 = vpop.xlane.xlu0 %888
    %v890 = vsel %vm257, %v880, -inf
    %891 = vmax.xlane.f32.xlu0 %v890
    %v892 = vpop.xlane.xlu0 %891
    %v893 = vsel %vm257, %v881, -inf
    %894 = vmax.xlane.f32.xlu0 %v893
    %v895 = vpop.xlane.xlu0 %894
    %v896 = vsel %vm257, %v882, -inf
    %897 = vmax.xlane.f32.xlu0 %v896
    %v898 = vpop.xlane.xlu0 %897
    %v899 = vsel %vm257, %v883, -inf
    %900 = vmax.xlane.f32.xlu0 %v899
    %v901 = vpop.xlane.xlu0 %900
    %v902 = vsel %vm257, %v884, -inf
    %903 = vmax.xlane.f32.xlu0 %v902
    %v904 = vpop.xlane.xlu0 %903
    %v905 = vsel %vm257, %v885, -inf
    %906 = vmax.xlane.f32.xlu0 %v905
    %v907 = vpop.xlane.xlu0 %906
    %v908 = vsel %vm257, %v886, -inf
    %909 = vmax.xlane.f32.xlu0 %v908
    %v910 = vpop.xlane.xlu0 %909
    %v911 = vsub.f32 %v879, %v889
    %v912 = vsub.f32 %v880, %v892
    %v913 = vsub.f32 %v881, %v895
    %v914 = vsub.f32 %v882, %v898
    %v915 = vsub.f32 %v883, %v901
    %v916 = vsub.f32 %v884, %v904
    %v917 = vsub.f32 %v885, %v907
    %v918 = vsub.f32 %v886, %v910
    %v919 = vmul.f32 %v911, 1.442695
    %v920 = vpow.pop %v919
    %v921 = vmul.f32 %v912, 1.442695
    %v922 = vpow.pop %v921
    %v923 = vmul.f32 %v913, 1.442695
    %v924 = vpow.pop %v923
    %v925 = vmul.f32 %v914, 1.442695
    %v926 = vpow.pop %v925
    %v927 = vmul.f32 %v915, 1.442695
    %v928 = vpow.pop %v927
    %v929 = vmul.f32 %v916, 1.442695
    %v930 = vpow.pop %v929
    %v931 = vmul.f32 %v917, 1.442695
    %v932 = vpow.pop %v931
    %v933 = vmul.f32 %v918, 1.442695
    %v934 = vpow.pop %v933
    %v935 = vsel %vm257, %v920, 0.0
    %936 = vadd.xlane.f32.xlu0 %v935
    %v937 = vpop.xlane.xlu0 %936
    %v938 = vsel %vm257, %v922, 0.0
    %939 = vadd.xlane.f32.xlu0 %v938
    %v940 = vpop.xlane.xlu0 %939
    %v941 = vsel %vm257, %v924, 0.0
    %942 = vadd.xlane.f32.xlu0 %v941
    %v943 = vpop.xlane.xlu0 %942
    %v944 = vsel %vm257, %v926, 0.0
    %945 = vadd.xlane.f32.xlu0 %v944
    %v946 = vpop.xlane.xlu0 %945
    %v947 = vsel %vm257, %v928, 0.0
    %948 = vadd.xlane.f32.xlu0 %v947
    %v949 = vpop.xlane.xlu0 %948
    %v950 = vsel %vm257, %v930, 0.0
    %951 = vadd.xlane.f32.xlu0 %v950
    %v952 = vpop.xlane.xlu0 %951
    %v953 = vsel %vm257, %v932, 0.0
    %954 = vadd.xlane.f32.xlu0 %v953
    %v955 = vpop.xlane.xlu0 %954
    %v956 = vsel %vm257, %v934, 0.0
    %957 = vadd.xlane.f32.xlu0 %v956
    %v958 = vpop.xlane.xlu0 %957
    %v959 = vrcp.pop %v937
    %v960 = vmul.f32 %v920, %v959
    %v961 = vrcp.pop %v940
    %v962 = vmul.f32 %v922, %v961
    %v963 = vrcp.pop %v943
    %v964 = vmul.f32 %v924, %v963
    %v965 = vrcp.pop %v946
    %v966 = vmul.f32 %v926, %v965
    %v967 = vrcp.pop %v949
    %v968 = vmul.f32 %v928, %v967
    %v969 = vrcp.pop %v952
    %v970 = vmul.f32 %v930, %v969
    %v971 = vrcp.pop %v955
    %v972 = vmul.f32 %v932, %v971
    %v973 = vrcp.pop %v958
    %v974 = vmul.f32 %v934, %v973
    %975 = vrot.lane.b32.xlu0 %v244, 64
    %v976 = vpop.permute.xlu0 %975
    %v979 = vsel %vm257, %v960, 0
    %981 = vmatprep.subr.mxu0 0.0
    %982 = vmatpush1.msra.mxu0 %v976
    %983 = vmatprep.subr.mxu0 0.0
    %984 = vmatpush1.msra.mxu0 0.0
    %985 = vmatprep.subr.mxu0 0.0
    %986 = vmatpush1.msra.mxu0 0.0
    %987 = vmatprep.subr.mxu0 0.0
    %988 = vmatpush1.msra.mxu0 0.0
    %989 = vmatprep.subr.mxu0 0.0
    %990 = vmatpush1.msra.mxu0 0.0
    %991 = vmatprep.subr.mxu0 0.0
    %992 = vmatpush1.msra.mxu0 0.0
    %993 = vmatprep.subr.mxu0 0.0
    %994 = vmatpush1.msra.mxu0 0.0
    %995 = vmatprep.subr.mxu0 0.0
    %996 = vmatpush1.msra.mxu0 0.0
    %997 = vmatprep.subr.mxu0 0.0
    %998 = vmatpush1.msra.mxu0 0.0
    %999 = vmatprep.subr.mxu0 0.0
    %1000 = vmatpush1.msra.mxu0 0.0
    %1001 = vmatprep.subr.mxu0 0.0
    %1002 = vmatpush1.msra.mxu0 0.0
    %1003 = vmatprep.subr.mxu0 0.0
    %1004 = vmatpush1.msra.mxu0 0.0
    %1005 = vmatprep.subr.mxu0 0.0
    %1006 = vmatpush1.msra.mxu0 0.0
    %1007 = vmatprep.subr.mxu0 0.0
    %1008 = vmatpush1.msra.mxu0 0.0
    %1009 = vmatprep.subr.mxu0 0.0
    %1010 = vmatpush1.msra.mxu0 0.0
    %1011 = vmatprep.subr.mxu0 0.0
    %1012 = vmatpush1.msra.mxu0 0.0
    %1013 = vmatprep.subr.mxu0 0.0
    %1014 = vmatpush1.msra.mxu0 0.0
    %1015 = vmatprep.subr.mxu0 0.0
    %1016 = vmatpush1.msra.mxu0 0.0
    %1017 = vmatprep.subr.mxu0 0.0
    %1018 = vmatpush1.msra.mxu0 0.0
    %1019 = vmatprep.subr.mxu0 0.0
    %1020 = vmatpush1.msra.mxu0 0.0
    %1021 = vmatprep.subr.mxu0 0.0
    %1022 = vmatpush1.msra.mxu0 0.0
    %1023 = vmatprep.subr.mxu0 0.0
    %1024 = vmatpush1.msra.mxu0 0.0
    %1025 = vmatprep.subr.mxu0 0.0
    %1026 = vmatpush1.msra.mxu0 0.0
    %1027 = vmatprep.subr.mxu0 0.0
    %1028 = vmatpush1.msra.mxu0 0.0
    %1029 = vmatprep.subr.mxu0 0.0
    %1030 = vmatpush1.msra.mxu0 0.0
    %1031 = vmatprep.subr.mxu0 0.0
    %1032 = vmatpush1.msra.mxu0 0.0
    %1033 = vmatprep.subr.mxu0 0.0
    %1034 = vmatpush1.msra.mxu0 0.0
    %1035 = vmatprep.subr.mxu0 0.0
    %1036 = vmatpush1.msra.mxu0 0.0
    %1037 = vmatprep.subr.mxu0 0.0
    %1038 = vmatpush1.msra.mxu0 0.0
    %1039 = vmatprep.subr.mxu0 0.0
    %1040 = vmatpush1.msra.mxu0 0.0
    %1041 = vmatprep.subr.mxu0 0.0
    %1042 = vmatpush1.msra.mxu0 0.0
    %1043 = vmatprep.subr.mxu0 0.0
    %1044 = vmatpush1.msra.mxu0 0.0
    %1045 = vmatprep.mubr.f32.mxu0 0.0
    %1046 = vmatmul.mubr.f32.gmra.mrb[0].mxu0 %v979
    %v1047 = vpop.f32.mrb[0].mxu0
    %v1048 = vadd.f32 0.0, %v1047
    %v1049 = vpop.f32.mrb[0].mxu0
    %1050 = vdwg.mxu0
    %1051 = vrot.lane.b32.xlu0 %v244, 56
    %v1052 = vpop.permute.xlu0 %1051
    %v1055 = vsel %vm257, %v962, 0
    %1057 = vmatprep.subr.mxu0 0.0
    %1058 = vmatpush1.msra.mxu0 %v1052
    %1059 = vmatprep.subr.mxu0 0.0
    %1060 = vmatpush1.msra.mxu0 0.0
    %1061 = vmatprep.subr.mxu0 0.0
    %1062 = vmatpush1.msra.mxu0 0.0
    %1063 = vmatprep.subr.mxu0 0.0
    %1064 = vmatpush1.msra.mxu0 0.0
    %1065 = vmatprep.subr.mxu0 0.0
    %1066 = vmatpush1.msra.mxu0 0.0
    %1067 = vmatprep.subr.mxu0 0.0
    %1068 = vmatpush1.msra.mxu0 0.0
    %1069 = vmatprep.subr.mxu0 0.0
    %1070 = vmatpush1.msra.mxu0 0.0
    %1071 = vmatprep.subr.mxu0 0.0
    %1072 = vmatpush1.msra.mxu0 0.0
    %1073 = vmatprep.subr.mxu0 0.0
    %1074 = vmatpush1.msra.mxu0 0.0
    %1075 = vmatprep.subr.mxu0 0.0
    %1076 = vmatpush1.msra.mxu0 0.0
    %1077 = vmatprep.subr.mxu0 0.0
    %1078 = vmatpush1.msra.mxu0 0.0
    %1079 = vmatprep.subr.mxu0 0.0
    %1080 = vmatpush1.msra.mxu0 0.0
    %1081 = vmatprep.subr.mxu0 0.0
    %1082 = vmatpush1.msra.mxu0 0.0
    %1083 = vmatprep.subr.mxu0 0.0
    %1084 = vmatpush1.msra.mxu0 0.0
    %1085 = vmatprep.subr.mxu0 0.0
    %1086 = vmatpush1.msra.mxu0 0.0
    %1087 = vmatprep.subr.mxu0 0.0
    %1088 = vmatpush1.msra.mxu0 0.0
    %1089 = vmatprep.subr.mxu0 0.0
    %1090 = vmatpush1.msra.mxu0 0.0
    %1091 = vmatprep.subr.mxu0 0.0
    %1092 = vmatpush1.msra.mxu0 0.0
    %1093 = vmatprep.subr.mxu0 0.0
    %1094 = vmatpush1.msra.mxu0 0.0
    %1095 = vmatprep.subr.mxu0 0.0
    %1096 = vmatpush1.msra.mxu0 0.0
    %1097 = vmatprep.subr.mxu0 0.0
    %1098 = vmatpush1.msra.mxu0 0.0
    %1099 = vmatprep.subr.mxu0 0.0
    %1100 = vmatpush1.msra.mxu0 0.0
    %1101 = vmatprep.subr.mxu0 0.0
    %1102 = vmatpush1.msra.mxu0 0.0
    %1103 = vmatprep.subr.mxu0 0.0
    %1104 = vmatpush1.msra.mxu0 0.0
    %1105 = vmatprep.subr.mxu0 0.0
    %1106 = vmatpush1.msra.mxu0 0.0
    %1107 = vmatprep.subr.mxu0 0.0
    %1108 = vmatpush1.msra.mxu0 0.0
    %1109 = vmatprep.subr.mxu0 0.0
    %1110 = vmatpush1.msra.mxu0 0.0
    %1111 = vmatprep.subr.mxu0 0.0
    %1112 = vmatpush1.msra.mxu0 0.0
    %1113 = vmatprep.subr.mxu0 0.0
    %1114 = vmatpush1.msra.mxu0 0.0
    %1115 = vmatprep.subr.mxu0 0.0
    %1116 = vmatpush1.msra.mxu0 0.0
    %1117 = vmatprep.subr.mxu0 0.0
    %1118 = vmatpush1.msra.mxu0 0.0
    %1119 = vmatprep.subr.mxu0 0.0
    %1120 = vmatpush1.msra.mxu0 0.0
    %1121 = vmatprep.mubr.f32.mxu0 0.0
    %1122 = vmatmul.mubr.f32.gmra.mrb[0].mxu0 %v1055
    %v1123 = vpop.f32.mrb[0].mxu0
    %v1124 = vadd.f32 0.0, %v1123
    %v1125 = vpop.f32.mrb[0].mxu0
    %1126 = vdwg.mxu0
    %1127 = vrot.lane.b32.xlu0 %v244, 48
    %v1128 = vpop.permute.xlu0 %1127
    %v1131 = vsel %vm257, %v964, 0
    %1133 = vmatprep.subr.mxu0 0.0
    %1134 = vmatpush1.msra.mxu0 %v1128
    %1135 = vmatprep.subr.mxu0 0.0
    %1136 = vmatpush1.msra.mxu0 0.0
    %1137 = vmatprep.subr.mxu0 0.0
    %1138 = vmatpush1.msra.mxu0 0.0
    %1139 = vmatprep.subr.mxu0 0.0
    %1140 = vmatpush1.msra.mxu0 0.0
    %1141 = vmatprep.subr.mxu0 0.0
    %1142 = vmatpush1.msra.mxu0 0.0
    %1143 = vmatprep.subr.mxu0 0.0
    %1144 = vmatpush1.msra.mxu0 0.0
    %1145 = vmatprep.subr.mxu0 0.0
    %1146 = vmatpush1.msra.mxu0 0.0
    %1147 = vmatprep.subr.mxu0 0.0
    %1148 = vmatpush1.msra.mxu0 0.0
    %1149 = vmatprep.subr.mxu0 0.0
    %1150 = vmatpush1.msra.mxu0 0.0
    %1151 = vmatprep.subr.mxu0 0.0
    %1152 = vmatpush1.msra.mxu0 0.0
    %1153 = vmatprep.subr.mxu0 0.0
    %1154 = vmatpush1.msra.mxu0 0.0
    %1155 = vmatprep.subr.mxu0 0.0
    %1156 = vmatpush1.msra.mxu0 0.0
    %1157 = vmatprep.subr.mxu0 0.0
    %1158 = vmatpush1.msra.mxu0 0.0
    %1159 = vmatprep.subr.mxu0 0.0
    %1160 = vmatpush1.msra.mxu0 0.0
    %1161 = vmatprep.subr.mxu0 0.0
    %1162 = vmatpush1.msra.mxu0 0.0
    %1163 = vmatprep.subr.mxu0 0.0
    %1164 = vmatpush1.msra.mxu0 0.0
    %1165 = vmatprep.subr.mxu0 0.0
    %1166 = vmatpush1.msra.mxu0 0.0
    %1167 = vmatprep.subr.mxu0 0.0
    %1168 = vmatpush1.msra.mxu0 0.0
    %1169 = vmatprep.subr.mxu0 0.0
    %1170 = vmatpush1.msra.mxu0 0.0
    %1171 = vmatprep.subr.mxu0 0.0
    %1172 = vmatpush1.msra.mxu0 0.0
    %1173 = vmatprep.subr.mxu0 0.0
    %1174 = vmatpush1.msra.mxu0 0.0
    %1175 = vmatprep.subr.mxu0 0.0
    %1176 = vmatpush1.msra.mxu0 0.0
    %1177 = vmatprep.subr.mxu0 0.0
    %1178 = vmatpush1.msra.mxu0 0.0
    %1179 = vmatprep.subr.mxu0 0.0
    %1180 = vmatpush1.msra.mxu0 0.0
    %1181 = vmatprep.subr.mxu0 0.0
    %1182 = vmatpush1.msra.mxu0 0.0
    %1183 = vmatprep.subr.mxu0 0.0
    %1184 = vmatpush1.msra.mxu0 0.0
    %1185 = vmatprep.subr.mxu0 0.0
    %1186 = vmatpush1.msra.mxu0 0.0
    %1187 = vmatprep.subr.mxu0 0.0
    %1188 = vmatpush1.msra.mxu0 0.0
    %1189 = vmatprep.subr.mxu0 0.0
    %1190 = vmatpush1.msra.mxu0 0.0
    %1191 = vmatprep.subr.mxu0 0.0
    %1192 = vmatpush1.msra.mxu0 0.0
    %1193 = vmatprep.subr.mxu0 0.0
    %1194 = vmatpush1.msra.mxu0 0.0
    %1195 = vmatprep.subr.mxu0 0.0
    %1196 = vmatpush1.msra.mxu0 0.0
    %1197 = vmatprep.mubr.f32.mxu0 0.0
    %1198 = vmatmul.mubr.f32.gmra.mrb[0].mxu0 %v1131
    %v1199 = vpop.f32.mrb[0].mxu0
    %v1200 = vadd.f32 0.0, %v1199
    %v1201 = vpop.f32.mrb[0].mxu0
    %1202 = vdwg.mxu0
    %1203 = vrot.lane.b32.xlu0 %v244, 40
    %v1204 = vpop.permute.xlu0 %1203
    %v1207 = vsel %vm257, %v966, 0
    %1209 = vmatprep.subr.mxu0 0.0
    %1210 = vmatpush1.msra.mxu0 %v1204
    %1211 = vmatprep.subr.mxu0 0.0
    %1212 = vmatpush1.msra.mxu0 0.0
    %1213 = vmatprep.subr.mxu0 0.0
    %1214 = vmatpush1.msra.mxu0 0.0
    %1215 = vmatprep.subr.mxu0 0.0
    %1216 = vmatpush1.msra.mxu0 0.0
    %1217 = vmatprep.subr.mxu0 0.0
    %1218 = vmatpush1.msra.mxu0 0.0
    %1219 = vmatprep.subr.mxu0 0.0
    %1220 = vmatpush1.msra.mxu0 0.0
    %1221 = vmatprep.subr.mxu0 0.0
    %1222 = vmatpush1.msra.mxu0 0.0
    %1223 = vmatprep.subr.mxu0 0.0
    %1224 = vmatpush1.msra.mxu0 0.0
    %1225 = vmatprep.subr.mxu0 0.0
    %1226 = vmatpush1.msra.mxu0 0.0
    %1227 = vmatprep.subr.mxu0 0.0
    %1228 = vmatpush1.msra.mxu0 0.0
    %1229 = vmatprep.subr.mxu0 0.0
    %1230 = vmatpush1.msra.mxu0 0.0
    %1231 = vmatprep.subr.mxu0 0.0
    %1232 = vmatpush1.msra.mxu0 0.0
    %1233 = vmatprep.subr.mxu0 0.0
    %1234 = vmatpush1.msra.mxu0 0.0
    %1235 = vmatprep.subr.mxu0 0.0
    %1236 = vmatpush1.msra.mxu0 0.0
    %1237 = vmatprep.subr.mxu0 0.0
    %1238 = vmatpush1.msra.mxu0 0.0
    %1239 = vmatprep.subr.mxu0 0.0
    %1240 = vmatpush1.msra.mxu0 0.0
    %1241 = vmatprep.subr.mxu0 0.0
    %1242 = vmatpush1.msra.mxu0 0.0
    %1243 = vmatprep.subr.mxu0 0.0
    %1244 = vmatpush1.msra.mxu0 0.0
    %1245 = vmatprep.subr.mxu0 0.0
    %1246 = vmatpush1.msra.mxu0 0.0
    %1247 = vmatprep.subr.mxu0 0.0
    %1248 = vmatpush1.msra.mxu0 0.0
    %1249 = vmatprep.subr.mxu0 0.0
    %1250 = vmatpush1.msra.mxu0 0.0
    %1251 = vmatprep.subr.mxu0 0.0
    %1252 = vmatpush1.msra.mxu0 0.0
    %1253 = vmatprep.subr.mxu0 0.0
    %1254 = vmatpush1.msra.mxu0 0.0
    %1255 = vmatprep.subr.mxu0 0.0
    %1256 = vmatpush1.msra.mxu0 0.0
    %1257 = vmatprep.subr.mxu0 0.0
    %1258 = vmatpush1.msra.mxu0 0.0
    %1259 = vmatprep.subr.mxu0 0.0
    %1260 = vmatpush1.msra.mxu0 0.0
    %1261 = vmatprep.subr.mxu0 0.0
    %1262 = vmatpush1.msra.mxu0 0.0
    %1263 = vmatprep.subr.mxu0 0.0
    %1264 = vmatpush1.msra.mxu0 0.0
    %1265 = vmatprep.subr.mxu0 0.0
    %1266 = vmatpush1.msra.mxu0 0.0
    %1267 = vmatprep.subr.mxu0 0.0
    %1268 = vmatpush1.msra.mxu0 0.0
    %1269 = vmatprep.subr.mxu0 0.0
    %1270 = vmatpush1.msra.mxu0 0.0
    %1271 = vmatprep.subr.mxu0 0.0
    %1272 = vmatpush1.msra.mxu0 0.0
    %1273 = vmatprep.mubr.f32.mxu0 0.0
    %1274 = vmatmul.mubr.f32.gmra.mrb[0].mxu0 %v1207
    %v1275 = vpop.f32.mrb[0].mxu0
    %v1276 = vadd.f32 0.0, %v1275
    %v1277 = vpop.f32.mrb[0].mxu0
    %1278 = vdwg.mxu0
    %1280 = vrot.lane.b32.xlu0 %v1124, 8
    %v1281 = vpop.permute.xlu0 %1280
    %1284 = vrot.lane.b32.xlu0 %v1200, 16
    %v1285 = vpop.permute.xlu0 %1284
    %1288 = vrot.lane.b32.xlu0 %v1276, 24
    %v1289 = vpop.permute.xlu0 %1288
    %v1291 = vsel %vm257, %v1048, %v1281
    %vm1292 = vcmask 130048
    %v1293 = vsel %vm1292, %v1291, %v1285
    %vm1294 = vcmask 195584
    %v1295 = vsel %vm1294, %v1293, %v1289
    %1296 = vrot.lane.b32.xlu0 %v249, 64
    %v1297 = vpop.permute.xlu0 %1296
    %v1300 = vsel %vm257, %v968, 0
    %1302 = vmatprep.subr.mxu0 0.0
    %1303 = vmatpush1.msra.mxu0 %v1297
    %1304 = vmatprep.subr.mxu0 0.0
    %1305 = vmatpush1.msra.mxu0 0.0
    %1306 = vmatprep.subr.mxu0 0.0
    %1307 = vmatpush1.msra.mxu0 0.0
    %1308 = vmatprep.subr.mxu0 0.0
    %1309 = vmatpush1.msra.mxu0 0.0
    %1310 = vmatprep.subr.mxu0 0.0
    %1311 = vmatpush1.msra.mxu0 0.0
    %1312 = vmatprep.subr.mxu0 0.0
    %1313 = vmatpush1.msra.mxu0 0.0
    %1314 = vmatprep.subr.mxu0 0.0
    %1315 = vmatpush1.msra.mxu0 0.0
    %1316 = vmatprep.subr.mxu0 0.0
    %1317 = vmatpush1.msra.mxu0 0.0
    %1318 = vmatprep.subr.mxu0 0.0
    %1319 = vmatpush1.msra.mxu0 0.0
    %1320 = vmatprep.subr.mxu0 0.0
    %1321 = vmatpush1.msra.mxu0 0.0
    %1322 = vmatprep.subr.mxu0 0.0
    %1323 = vmatpush1.msra.mxu0 0.0
    %1324 = vmatprep.subr.mxu0 0.0
    %1325 = vmatpush1.msra.mxu0 0.0
    %1326 = vmatprep.subr.mxu0 0.0
    %1327 = vmatpush1.msra.mxu0 0.0
    %1328 = vmatprep.subr.mxu0 0.0
    %1329 = vmatpush1.msra.mxu0 0.0
    %1330 = vmatprep.subr.mxu0 0.0
    %1331 = vmatpush1.msra.mxu0 0.0
    %1332 = vmatprep.subr.mxu0 0.0
    %1333 = vmatpush1.msra.mxu0 0.0
    %1334 = vmatprep.subr.mxu0 0.0
    %1335 = vmatpush1.msra.mxu0 0.0
    %1336 = vmatprep.subr.mxu0 0.0
    %1337 = vmatpush1.msra.mxu0 0.0
    %1338 = vmatprep.subr.mxu0 0.0
    %1339 = vmatpush1.msra.mxu0 0.0
    %1340 = vmatprep.subr.mxu0 0.0
    %1341 = vmatpush1.msra.mxu0 0.0
    %1342 = vmatprep.subr.mxu0 0.0
    %1343 = vmatpush1.msra.mxu0 0.0
    %1344 = vmatprep.subr.mxu0 0.0
    %1345 = vmatpush1.msra.mxu0 0.0
    %1346 = vmatprep.subr.mxu0 0.0
    %1347 = vmatpush1.msra.mxu0 0.0
    %1348 = vmatprep.subr.mxu0 0.0
    %1349 = vmatpush1.msra.mxu0 0.0
    %1350 = vmatprep.subr.mxu0 0.0
    %1351 = vmatpush1.msra.mxu0 0.0
    %1352 = vmatprep.subr.mxu0 0.0
    %1353 = vmatpush1.msra.mxu0 0.0
    %1354 = vmatprep.subr.mxu0 0.0
    %1355 = vmatpush1.msra.mxu0 0.0
    %1356 = vmatprep.subr.mxu0 0.0
    %1357 = vmatpush1.msra.mxu0 0.0
    %1358 = vmatprep.subr.mxu0 0.0
    %1359 = vmatpush1.msra.mxu0 0.0
    %1360 = vmatprep.subr.mxu0 0.0
    %1361 = vmatpush1.msra.mxu0 0.0
    %1362 = vmatprep.subr.mxu0 0.0
    %1363 = vmatpush1.msra.mxu0 0.0
    %1364 = vmatprep.subr.mxu0 0.0
    %1365 = vmatpush1.msra.mxu0 0.0
    %1366 = vmatprep.mubr.f32.mxu0 0.0
    %1367 = vmatmul.mubr.f32.gmra.mrb[0].mxu0 %v1300
    %v1368 = vpop.f32.mrb[0].mxu0
    %v1369 = vadd.f32 0.0, %v1368
    %v1370 = vpop.f32.mrb[0].mxu0
    %1371 = vdwg.mxu0
    %1372 = vrot.lane.b32.xlu0 %v249, 56
    %v1373 = vpop.permute.xlu0 %1372
    %v1376 = vsel %vm257, %v970, 0
    %1378 = vmatprep.subr.mxu0 0.0
    %1379 = vmatpush1.msra.mxu0 %v1373
    %1380 = vmatprep.subr.mxu0 0.0
    %1381 = vmatpush1.msra.mxu0 0.0
    %1382 = vmatprep.subr.mxu0 0.0
    %1383 = vmatpush1.msra.mxu0 0.0
    %1384 = vmatprep.subr.mxu0 0.0
    %1385 = vmatpush1.msra.mxu0 0.0
    %1386 = vmatprep.subr.mxu0 0.0
    %1387 = vmatpush1.msra.mxu0 0.0
    %1388 = vmatprep.subr.mxu0 0.0
    %1389 = vmatpush1.msra.mxu0 0.0
    %1390 = vmatprep.subr.mxu0 0.0
    %1391 = vmatpush1.msra.mxu0 0.0
    %1392 = vmatprep.subr.mxu0 0.0
    %1393 = vmatpush1.msra.mxu0 0.0
    %1394 = vmatprep.subr.mxu0 0.0
    %1395 = vmatpush1.msra.mxu0 0.0
    %1396 = vmatprep.subr.mxu0 0.0
    %1397 = vmatpush1.msra.mxu0 0.0
    %1398 = vmatprep.subr.mxu0 0.0
    %1399 = vmatpush1.msra.mxu0 0.0
    %1400 = vmatprep.subr.mxu0 0.0
    %1401 = vmatpush1.msra.mxu0 0.0
    %1402 = vmatprep.subr.mxu0 0.0
    %1403 = vmatpush1.msra.mxu0 0.0
    %1404 = vmatprep.subr.mxu0 0.0
    %1405 = vmatpush1.msra.mxu0 0.0
    %1406 = vmatprep.subr.mxu0 0.0
    %1407 = vmatpush1.msra.mxu0 0.0
    %1408 = vmatprep.subr.mxu0 0.0
    %1409 = vmatpush1.msra.mxu0 0.0
    %1410 = vmatprep.subr.mxu0 0.0
    %1411 = vmatpush1.msra.mxu0 0.0
    %1412 = vmatprep.subr.mxu0 0.0
    %1413 = vmatpush1.msra.mxu0 0.0
    %1414 = vmatprep.subr.mxu0 0.0
    %1415 = vmatpush1.msra.mxu0 0.0
    %1416 = vmatprep.subr.mxu0 0.0
    %1417 = vmatpush1.msra.mxu0 0.0
    %1418 = vmatprep.subr.mxu0 0.0
    %1419 = vmatpush1.msra.mxu0 0.0
    %1420 = vmatprep.subr.mxu0 0.0
    %1421 = vmatpush1.msra.mxu0 0.0
    %1422 = vmatprep.subr.mxu0 0.0
    %1423 = vmatpush1.msra.mxu0 0.0
    %1424 = vmatprep.subr.mxu0 0.0
    %1425 = vmatpush1.msra.mxu0 0.0
    %1426 = vmatprep.subr.mxu0 0.0
    %1427 = vmatpush1.msra.mxu0 0.0
    %1428 = vmatprep.subr.mxu0 0.0
    %1429 = vmatpush1.msra.mxu0 0.0
    %1430 = vmatprep.subr.mxu0 0.0
    %1431 = vmatpush1.msra.mxu0 0.0
    %1432 = vmatprep.subr.mxu0 0.0
    %1433 = vmatpush1.msra.mxu0 0.0
    %1434 = vmatprep.subr.mxu0 0.0
    %1435 = vmatpush1.msra.mxu0 0.0
    %1436 = vmatprep.subr.mxu0 0.0
    %1437 = vmatpush1.msra.mxu0 0.0
    %1438 = vmatprep.subr.mxu0 0.0
    %1439 = vmatpush1.msra.mxu0 0.0
    %1440 = vmatprep.subr.mxu0 0.0
    %1441 = vmatpush1.msra.mxu0 0.0
    %1442 = vmatprep.mubr.f32.mxu0 0.0
    %1443 = vmatmul.mubr.f32.gmra.mrb[0].mxu0 %v1376
    %v1444 = vpop.f32.mrb[0].mxu0
    %v1445 = vadd.f32 0.0, %v1444
    %v1446 = vpop.f32.mrb[0].mxu0
    %1447 = vdwg.mxu0
    %1448 = vrot.lane.b32.xlu0 %v249, 48
    %v1449 = vpop.permute.xlu0 %1448
    %v1452 = vsel %vm257, %v972, 0
    %1454 = vmatprep.subr.mxu0 0.0
    %1455 = vmatpush1.msra.mxu0 %v1449
    %1456 = vmatprep.subr.mxu0 0.0
    %1457 = vmatpush1.msra.mxu0 0.0
    %1458 = vmatprep.subr.mxu0 0.0
    %1459 = vmatpush1.msra.mxu0 0.0
    %1460 = vmatprep.subr.mxu0 0.0
    %1461 = vmatpush1.msra.mxu0 0.0
    %1462 = vmatprep.subr.mxu0 0.0
    %1463 = vmatpush1.msra.mxu0 0.0
    %1464 = vmatprep.subr.mxu0 0.0
    %1465 = vmatpush1.msra.mxu0 0.0
    %1466 = vmatprep.subr.mxu0 0.0
    %1467 = vmatpush1.msra.mxu0 0.0
    %1468 = vmatprep.subr.mxu0 0.0
    %1469 = vmatpush1.msra.mxu0 0.0
    %1470 = vmatprep.subr.mxu0 0.0
    %1471 = vmatpush1.msra.mxu0 0.0
    %1472 = vmatprep.subr.mxu0 0.0
    %1473 = vmatpush1.msra.mxu0 0.0
    %1474 = vmatprep.subr.mxu0 0.0
    %1475 = vmatpush1.msra.mxu0 0.0
    %1476 = vmatprep.subr.mxu0 0.0
    %1477 = vmatpush1.msra.mxu0 0.0
    %1478 = vmatprep.subr.mxu0 0.0
    %1479 = vmatpush1.msra.mxu0 0.0
    %1480 = vmatprep.subr.mxu0 0.0
    %1481 = vmatpush1.msra.mxu0 0.0
    %1482 = vmatprep.subr.mxu0 0.0
    %1483 = vmatpush1.msra.mxu0 0.0
    %1484 = vmatprep.subr.mxu0 0.0
    %1485 = vmatpush1.msra.mxu0 0.0
    %1486 = vmatprep.subr.mxu0 0.0
    %1487 = vmatpush1.msra.mxu0 0.0
    %1488 = vmatprep.subr.mxu0 0.0
    %1489 = vmatpush1.msra.mxu0 0.0
    %1490 = vmatprep.subr.mxu0 0.0
    %1491 = vmatpush1.msra.mxu0 0.0
    %1492 = vmatprep.subr.mxu0 0.0
    %1493 = vmatpush1.msra.mxu0 0.0
    %1494 = vmatprep.subr.mxu0 0.0
    %1495 = vmatpush1.msra.mxu0 0.0
    %1496 = vmatprep.subr.mxu0 0.0
    %1497 = vmatpush1.msra.mxu0 0.0
    %1498 = vmatprep.subr.mxu0 0.0
    %1499 = vmatpush1.msra.mxu0 0.0
    %1500 = vmatprep.subr.mxu0 0.0
    %1501 = vmatpush1.msra.mxu0 0.0
    %1502 = vmatprep.subr.mxu0 0.0
    %1503 = vmatpush1.msra.mxu0 0.0
    %1504 = vmatprep.subr.mxu0 0.0
    %1505 = vmatpush1.msra.mxu0 0.0
    %1506 = vmatprep.subr.mxu0 0.0
    %1507 = vmatpush1.msra.mxu0 0.0
    %1508 = vmatprep.subr.mxu0 0.0
    %1509 = vmatpush1.msra.mxu0 0.0
    %1510 = vmatprep.subr.mxu0 0.0
    %1511 = vmatpush1.msra.mxu0 0.0
    %1512 = vmatprep.subr.mxu0 0.0
    %1513 = vmatpush1.msra.mxu0 0.0
    %1514 = vmatprep.subr.mxu0 0.0
    %1515 = vmatpush1.msra.mxu0 0.0
    %1516 = vmatprep.subr.mxu0 0.0
    %1517 = vmatpush1.msra.mxu0 0.0
    %1518 = vmatprep.mubr.f32.mxu0 0.0
    %1519 = vmatmul.mubr.f32.gmra.mrb[0].mxu0 %v1452
    %v1520 = vpop.f32.mrb[0].mxu0
    %v1521 = vadd.f32 0.0, %v1520
    %v1522 = vpop.f32.mrb[0].mxu0
    %1523 = vdwg.mxu0
    %1524 = vrot.lane.b32.xlu0 %v249, 40
    %v1525 = vpop.permute.xlu0 %1524
    %v1528 = vsel %vm257, %v974, 0
    %1530 = vmatprep.subr.mxu0 0.0
    %1531 = vmatpush1.msra.mxu0 %v1525
    %1532 = vmatprep.subr.mxu0 0.0
    %1533 = vmatpush1.msra.mxu0 0.0
    %1534 = vmatprep.subr.mxu0 0.0
    %1535 = vmatpush1.msra.mxu0 0.0
    %1536 = vmatprep.subr.mxu0 0.0
    %1537 = vmatpush1.msra.mxu0 0.0
    %1538 = vmatprep.subr.mxu0 0.0
    %1539 = vmatpush1.msra.mxu0 0.0
    %1540 = vmatprep.subr.mxu0 0.0
    %1541 = vmatpush1.msra.mxu0 0.0
    %1542 = vmatprep.subr.mxu0 0.0
    %1543 = vmatpush1.msra.mxu0 0.0
    %1544 = vmatprep.subr.mxu0 0.0
    %1545 = vmatpush1.msra.mxu0 0.0
    %1546 = vmatprep.subr.mxu0 0.0
    %1547 = vmatpush1.msra.mxu0 0.0
    %1548 = vmatprep.subr.mxu0 0.0
    %1549 = vmatpush1.msra.mxu0 0.0
    %1550 = vmatprep.subr.mxu0 0.0
    %1551 = vmatpush1.msra.mxu0 0.0
    %1552 = vmatprep.subr.mxu0 0.0
    %1553 = vmatpush1.msra.mxu0 0.0
    %1554 = vmatprep.subr.mxu0 0.0
    %1555 = vmatpush1.msra.mxu0 0.0
    %1556 = vmatprep.subr.mxu0 0.0
    %1557 = vmatpush1.msra.mxu0 0.0
    %1558 = vmatprep.subr.mxu0 0.0
    %1559 = vmatpush1.msra.mxu0 0.0
    %1560 = vmatprep.subr.mxu0 0.0
    %1561 = vmatpush1.msra.mxu0 0.0
    %1562 = vmatprep.subr.mxu0 0.0
    %1563 = vmatpush1.msra.mxu0 0.0
    %1564 = vmatprep.subr.mxu0 0.0
    %1565 = vmatpush1.msra.mxu0 0.0
    %1566 = vmatprep.subr.mxu0 0.0
    %1567 = vmatpush1.msra.mxu0 0.0
    %1568 = vmatprep.subr.mxu0 0.0
    %1569 = vmatpush1.msra.mxu0 0.0
    %1570 = vmatprep.subr.mxu0 0.0
    %1571 = vmatpush1.msra.mxu0 0.0
    %1572 = vmatprep.subr.mxu0 0.0
    %1573 = vmatpush1.msra.mxu0 0.0
    %1574 = vmatprep.subr.mxu0 0.0
    %1575 = vmatpush1.msra.mxu0 0.0
    %1576 = vmatprep.subr.mxu0 0.0
    %1577 = vmatpush1.msra.mxu0 0.0
    %1578 = vmatprep.subr.mxu0 0.0
    %1579 = vmatpush1.msra.mxu0 0.0
    %1580 = vmatprep.subr.mxu0 0.0
    %1581 = vmatpush1.msra.mxu0 0.0
    %1582 = vmatprep.subr.mxu0 0.0
    %1583 = vmatpush1.msra.mxu0 0.0
    %1584 = vmatprep.subr.mxu0 0.0
    %1585 = vmatpush1.msra.mxu0 0.0
    %1586 = vmatprep.subr.mxu0 0.0
    %1587 = vmatpush1.msra.mxu0 0.0
    %1588 = vmatprep.subr.mxu0 0.0
    %1589 = vmatpush1.msra.mxu0 0.0
    %1590 = vmatprep.subr.mxu0 0.0
    %1591 = vmatpush1.msra.mxu0 0.0
    %1592 = vmatprep.subr.mxu0 0.0
    %1593 = vmatpush1.msra.mxu0 0.0
    %1594 = vmatprep.mubr.f32.mxu0 0.0
    %1595 = vmatmul.mubr.f32.gmra.mrb[0].mxu0 %v1528
    %v1596 = vpop.f32.mrb[0].mxu0
    %v1597 = vadd.f32 0.0, %v1596
    %v1598 = vpop.f32.mrb[0].mxu0
    %1599 = vdwg.mxu0
    %1601 = vrot.lane.b32.xlu0 %v1445, 8
    %v1602 = vpop.permute.xlu0 %1601
    %1605 = vrot.lane.b32.xlu0 %v1521, 16
    %v1606 = vpop.permute.xlu0 %1605
    %1609 = vrot.lane.b32.xlu0 %v1597, 24
    %v1610 = vpop.permute.xlu0 %1609
    %v1612 = vsel %vm257, %v1369, %v1602
    %v1613 = vsel %vm1292, %v1612, %v1606
    %v1614 = vsel %vm1294, %v1613, %v1610
    %1615 = vst.msk [vmem:[%s21] sm:$0xff] %vm257, %v960
    %1616 = vst.msk [vmem:[%s21 + $0x8] sm:$0xff] %vm257, %v962
    %1617 = vst.msk [vmem:[%s21 + $0x10] sm:$0xff] %vm257, %v964
    %1618 = vst.msk [vmem:[%s21 + $0x18] sm:$0xff] %vm257, %v966
    %1619 = vst.msk [vmem:[%s21 + $0x20] sm:$0xff] %vm257, %v968
    %1620 = vst.msk [vmem:[%s21 + $0x28] sm:$0xff] %vm257, %v970
    %1621 = vst.msk [vmem:[%s21 + $0x30] sm:$0xff] %vm257, %v972
    %1622 = vst.msk [vmem:[%s21 + $0x38] sm:$0xff] %vm257, %v974
    %v1623 = vld [vmem:[%s6] sm:$0xff]
    %v1624 = vld [vmem:[%s6 + $0x8] sm:$0xff]
    %v1625 = vld [vmem:[%s6 + $0x10] sm:$0xff]
    %v1626 = vld [vmem:[%s6 + $0x18] sm:$0xff]
    %v1627 = vld [vmem:[%s7] sm:$0x1]
    %v1629 = vlaneseq
    %v1630 = vshrl.u32 %v1629, 7
    %v1631 = vsub.s32 0, %v1630
    %v1632 = vrot.slane %v1627, %v1631
    %v1635 = vsel %vm170, %v1295, 0
    %v1638 = vsel %vm170, %v1614, 0
    %1640 = vmatprep.subr.mxu0 0.0
    %1641 = vmatpush1.msra.mxu0 %v1623
    %1642 = vmatprep.subr.mxu0 0.0
    %1643 = vmatpush1.msra.mxu0 %v1624
    %1644 = vmatprep.subr.mxu0 0.0
    %1645 = vmatpush1.msra.mxu0 %v1625
    %1646 = vmatprep.subr.mxu0 0.0
    %1647 = vmatpush1.msra.mxu0 %v1626
    %1648 = vmatprep.subr.mxu0 0.0
    %1649 = vmatpush1.msra.mxu0 0.0
    %1650 = vmatprep.subr.mxu0 0.0
    %1651 = vmatpush1.msra.mxu0 0.0
    %1652 = vmatprep.subr.mxu0 0.0
    %1653 = vmatpush1.msra.mxu0 0.0
    %1654 = vmatprep.subr.mxu0 0.0
    %1655 = vmatpush1.msra.mxu0 0.0
    %1656 = vmatprep.subr.mxu0 0.0
    %1657 = vmatpush1.msra.mxu0 0.0
    %1658 = vmatprep.subr.mxu0 0.0
    %1659 = vmatpush1.msra.mxu0 0.0
    %1660 = vmatprep.subr.mxu0 0.0
    %1661 = vmatpush1.msra.mxu0 0.0
    %1662 = vmatprep.subr.mxu0 0.0
    %1663 = vmatpush1.msra.mxu0 0.0
    %1664 = vmatprep.subr.mxu0 0.0
    %1665 = vmatpush1.msra.mxu0 0.0
    %1666 = vmatprep.subr.mxu0 0.0
    %1667 = vmatpush1.msra.mxu0 0.0
    %1668 = vmatprep.subr.mxu0 0.0
    %1669 = vmatpush1.msra.mxu0 0.0
    %1670 = vmatprep.subr.mxu0 0.0
    %1671 = vmatpush1.msra.mxu0 0.0
    %1672 = vmatprep.subr.mxu0 0.0
    %1673 = vmatpush1.msra.mxu0 0.0
    %1674 = vmatprep.subr.mxu0 0.0
    %1675 = vmatpush1.msra.mxu0 0.0
    %1676 = vmatprep.subr.mxu0 0.0
    %1677 = vmatpush1.msra.mxu0 0.0
    %1678 = vmatprep.subr.mxu0 0.0
    %1679 = vmatpush1.msra.mxu0 0.0
    %1680 = vmatprep.subr.mxu0 0.0
    %1681 = vmatpush1.msra.mxu0 0.0
    %1682 = vmatprep.subr.mxu0 0.0
    %1683 = vmatpush1.msra.mxu0 0.0
    %1684 = vmatprep.subr.mxu0 0.0
    %1685 = vmatpush1.msra.mxu0 0.0
    %1686 = vmatprep.subr.mxu0 0.0
    %1687 = vmatpush1.msra.mxu0 0.0
    %1688 = vmatprep.subr.mxu0 0.0
    %1689 = vmatpush1.msra.mxu0 0.0
    %1690 = vmatprep.subr.mxu0 0.0
    %1691 = vmatpush1.msra.mxu0 0.0
    %1692 = vmatprep.subr.mxu0 0.0
    %1693 = vmatpush1.msra.mxu0 0.0
    %1694 = vmatprep.subr.mxu0 0.0
    %1695 = vmatpush1.msra.mxu0 0.0
    %1696 = vmatprep.subr.mxu0 0.0
    %1697 = vmatpush1.msra.mxu0 0.0
    %1698 = vmatprep.subr.mxu0 0.0
    %1699 = vmatpush1.msra.mxu0 0.0
    %1700 = vmatprep.subr.mxu0 0.0
    %1701 = vmatpush1.msra.mxu0 0.0
    %1702 = vmatprep.subr.mxu0 0.0
    %1703 = vmatpush1.msra.mxu0 0.0
    %1704 = vmatprep.mubr.f32.mxu0 0.0
    %1705 = vmatmul.mubr.f32.gmra.mrb[0].mxu0 %v1635
    %v1706 = vpop.f32.mrb[0].mxu0
    %v1707 = vadd.f32 %v1632, %v1706
    %v1708 = vpop.f32.mrb[0].mxu0
    %1709 = vmatprep.mubr.f32.mxu0 0.0
    %1710 = vmatmul.mubr.f32.gmra.mrb[0].mxu0 %v1638
    %v1711 = vpop.f32.mrb[0].mxu0
    %v1712 = vadd.f32 %v1632, %v1711
    %v1713 = vpop.f32.mrb[0].mxu0
    %1714 = vdwg.mxu0
    %v1715 = vadd.f32 %v149, %v1707
    %v1716 = vadd.f32 %v150, %v1712
    %v1717 = vld [vmem:[%s18] sm:$0x1]
    %v1718 = vld [vmem:[%s19] sm:$0x1]
    %v1719 = vsel %vm170, %v1715, 0.0
    %1720 = vadd.xlane.f32.xlu0 %v1719
    %v1721 = vpop.xlane.xlu0 %1720
    %v1722 = vsel %vm170, %v1716, 0.0
    %1723 = vadd.xlane.f32.xlu0 %v1722
    %v1724 = vpop.xlane.xlu0 %1723
    %v1725 = vrcp.pop 32.0
    %v1726 = vmul.f32 %v1721, %v1725
    %v1727 = vmul.f32 %v1724, %v1725
    %v1728 = vsub.f32 %v1715, %v1726
    %v1729 = vsub.f32 %v1716, %v1727
    %v1730 = vmul.f32 %v1728, %v1728
    %v1731 = vmul.f32 %v1729, %v1729
    %v1732 = vsel %vm170, %v1730, 0.0
    %1733 = vadd.xlane.f32.xlu0 %v1732
    %v1734 = vpop.xlane.xlu0 %1733
    %v1735 = vsel %vm170, %v1731, 0.0
    %1736 = vadd.xlane.f32.xlu0 %v1735
    %v1737 = vpop.xlane.xlu0 %1736
    %v1738 = vmul.f32 %v1734, %v1725
    %v1739 = vmul.f32 %v1737, %v1725
    %v1740 = vadd.f32 %v1738, 1e-05
    %v1741 = vadd.f32 %v1739, 1e-05
    %v1742 = vrsqrt.pop %v1740
    %v1743 = vrsqrt.pop %v1741
    %v1744 = vmul.f32 %v1728, %v1742
    %v1745 = vmul.f32 %v1729, %v1743
    %v1746 = vlaneseq
    %v1747 = vshrl.u32 %v1746, 7
    %v1748 = vsub.s32 0, %v1747
    %v1749 = vrot.slane %v1717, %v1748
    %v1750 = vmul.f32 %v1744, %v1749
    %v1751 = vmul.f32 %v1745, %v1749
    %v1752 = vlaneseq
    %v1753 = vshrl.u32 %v1752, 7
    %v1754 = vsub.s32 0, %v1753
    %v1755 = vrot.slane %v1718, %v1754
    %v1756 = vadd.f32 %v1750, %v1755
    %v1757 = vadd.f32 %v1751, %v1755
    %v1758 = vld [vmem:[%s8] sm:$0xff]
    %v1759 = vld [vmem:[%s8 + $0x8] sm:$0xff]
    %v1760 = vld [vmem:[%s8 + $0x10] sm:$0xff]
    %v1761 = vld [vmem:[%s8 + $0x18] sm:$0xff]
    %v1762 = vld [vmem:[%s9] sm:$0x1]
    %v1764 = vlaneseq
    %v1765 = vshrl.u32 %v1764, 7
    %v1766 = vsub.s32 0, %v1765
    %v1767 = vrot.slane %v1762, %v1766
    %v1770 = vsel %vm170, %v1756, 0
    %v1773 = vsel %vm170, %v1757, 0
    %1775 = vmatprep.subr.mxu0 0.0
    %1776 = vmatpush1.msra.mxu0 %v1758
    %1777 = vmatprep.subr.mxu0 0.0
    %1778 = vmatpush1.msra.mxu0 %v1759
    %1779 = vmatprep.subr.mxu0 0.0
    %1780 = vmatpush1.msra.mxu0 %v1760
    %1781 = vmatprep.subr.mxu0 0.0
    %1782 = vmatpush1.msra.mxu0 %v1761
    %1783 = vmatprep.subr.mxu0 0.0
    %1784 = vmatpush1.msra.mxu0 0.0
    %1785 = vmatprep.subr.mxu0 0.0
    %1786 = vmatpush1.msra.mxu0 0.0
    %1787 = vmatprep.subr.mxu0 0.0
    %1788 = vmatpush1.msra.mxu0 0.0
    %1789 = vmatprep.subr.mxu0 0.0
    %1790 = vmatpush1.msra.mxu0 0.0
    %1791 = vmatprep.subr.mxu0 0.0
    %1792 = vmatpush1.msra.mxu0 0.0
    %1793 = vmatprep.subr.mxu0 0.0
    %1794 = vmatpush1.msra.mxu0 0.0
    %1795 = vmatprep.subr.mxu0 0.0
    %1796 = vmatpush1.msra.mxu0 0.0
    %1797 = vmatprep.subr.mxu0 0.0
    %1798 = vmatpush1.msra.mxu0 0.0
    %1799 = vmatprep.subr.mxu0 0.0
    %1800 = vmatpush1.msra.mxu0 0.0
    %1801 = vmatprep.subr.mxu0 0.0
    %1802 = vmatpush1.msra.mxu0 0.0
    %1803 = vmatprep.subr.mxu0 0.0
    %1804 = vmatpush1.msra.mxu0 0.0
    %1805 = vmatprep.subr.mxu0 0.0
    %1806 = vmatpush1.msra.mxu0 0.0
    %1807 = vmatprep.subr.mxu0 0.0
    %1808 = vmatpush1.msra.mxu0 0.0
    %1809 = vmatprep.subr.mxu0 0.0
    %1810 = vmatpush1.msra.mxu0 0.0
    %1811 = vmatprep.subr.mxu0 0.0
    %1812 = vmatpush1.msra.mxu0 0.0
    %1813 = vmatprep.subr.mxu0 0.0
    %1814 = vmatpush1.msra.mxu0 0.0
    %1815 = vmatprep.subr.mxu0 0.0
    %1816 = vmatpush1.msra.mxu0 0.0
    %1817 = vmatprep.subr.mxu0 0.0
    %1818 = vmatpush1.msra.mxu0 0.0
    %1819 = vmatprep.subr.mxu0 0.0
    %1820 = vmatpush1.msra.mxu0 0.0
    %1821 = vmatprep.subr.mxu0 0.0
    %1822 = vmatpush1.msra.mxu0 0.0
    %1823 = vmatprep.subr.mxu0 0.0
    %1824 = vmatpush1.msra.mxu0 0.0
    %1825 = vmatprep.subr.mxu0 0.0
    %1826 = vmatpush1.msra.mxu0 0.0
    %1827 = vmatprep.subr.mxu0 0.0
    %1828 = vmatpush1.msra.mxu0 0.0
    %1829 = vmatprep.subr.mxu0 0.0
    %1830 = vmatpush1.msra.mxu0 0.0
    %1831 = vmatprep.subr.mxu0 0.0
    %1832 = vmatpush1.msra.mxu0 0.0
    %1833 = vmatprep.subr.mxu0 0.0
    %1834 = vmatpush1.msra.mxu0 0.0
    %1835 = vmatprep.subr.mxu0 0.0
    %1836 = vmatpush1.msra.mxu0 0.0
    %1837 = vmatprep.subr.mxu0 0.0
    %1838 = vmatpush1.msra.mxu0 0.0
    %1839 = vmatprep.mubr.f32.mxu0 0.0
    %1840 = vmatmul.mubr.f32.gmra.mrb[0].mxu0 %v1770
    %v1841 = vpop.f32.mrb[0].mxu0
    %v1842 = vadd.f32 %v1767, %v1841
    %v1843 = vpop.f32.mrb[0].mxu0
    %1844 = vmatprep.mubr.f32.mxu0 0.0
    %1845 = vmatmul.mubr.f32.gmra.mrb[0].mxu0 %v1773
    %v1846 = vpop.f32.mrb[0].mxu0
    %v1847 = vadd.f32 %v1767, %v1846
    %v1848 = vpop.f32.mrb[0].mxu0
    %1849 = vdwg.mxu0
    %v1850 = vmul.f32 %v1842, 0.35355338
    %v1851 = vmul.f32 %v1847, 0.35355338
    %v1852 = vld [vmem:[#allocation8] sm:$0xff]
    %v1853 = vld [vmem:[#allocation8 + $0x8] sm:$0xff]
    %v1854 = vld [vmem:[#allocation8 + $0x10] sm:$0xff]
    %v1855 = vld [vmem:[#allocation8 + $0x18] sm:$0xff]
    %v1856 = vld [vmem:[%s11] sm:$0x1]
    %v1858 = vlaneseq
    %v1859 = vshrl.u32 %v1858, 7
    %v1860 = vsub.s32 0, %v1859
    %v1861 = vrot.slane %v1856, %v1860
    %v1864 = vsel %vm170, %v151, 0
    %v1867 = vsel %vm170, %v152, 0
    %1869 = vmatprep.subr.mxu0 0.0
    %1870 = vmatpush1.msra.mxu0 %v1852
    %1871 = vmatprep.subr.mxu0 0.0
    %1872 = vmatpush1.msra.mxu0 %v1853
    %1873 = vmatprep.subr.mxu0 0.0
    %1874 = vmatpush1.msra.mxu0 %v1854
    %1875 = vmatprep.subr.mxu0 0.0
    %1876 = vmatpush1.msra.mxu0 %v1855
    %1877 = vmatprep.subr.mxu0 0.0
    %1878 = vmatpush1.msra.mxu0 0.0
    %1879 = vmatprep.subr.mxu0 0.0
    %1880 = vmatpush1.msra.mxu0 0.0
    %1881 = vmatprep.subr.mxu0 0.0
    %1882 = vmatpush1.msra.mxu0 0.0
    %1883 = vmatprep.subr.mxu0 0.0
    %1884 = vmatpush1.msra.mxu0 0.0
    %1885 = vmatprep.subr.mxu0 0.0
    %1886 = vmatpush1.msra.mxu0 0.0
    %1887 = vmatprep.subr.mxu0 0.0
    %1888 = vmatpush1.msra.mxu0 0.0
    %1889 = vmatprep.subr.mxu0 0.0
    %1890 = vmatpush1.msra.mxu0 0.0
    %1891 = vmatprep.subr.mxu0 0.0
    %1892 = vmatpush1.msra.mxu0 0.0
    %1893 = vmatprep.subr.mxu0 0.0
    %1894 = vmatpush1.msra.mxu0 0.0
    %1895 = vmatprep.subr.mxu0 0.0
    %1896 = vmatpush1.msra.mxu0 0.0
    %1897 = vmatprep.subr.mxu0 0.0
    %1898 = vmatpush1.msra.mxu0 0.0
    %1899 = vmatprep.subr.mxu0 0.0
    %1900 = vmatpush1.msra.mxu0 0.0
    %1901 = vmatprep.subr.mxu0 0.0
    %1902 = vmatpush1.msra.mxu0 0.0
    %1903 = vmatprep.subr.mxu0 0.0
    %1904 = vmatpush1.msra.mxu0 0.0
    %1905 = vmatprep.subr.mxu0 0.0
    %1906 = vmatpush1.msra.mxu0 0.0
    %1907 = vmatprep.subr.mxu0 0.0
    %1908 = vmatpush1.msra.mxu0 0.0
    %1909 = vmatprep.subr.mxu0 0.0
    %1910 = vmatpush1.msra.mxu0 0.0
    %1911 = vmatprep.subr.mxu0 0.0
    %1912 = vmatpush1.msra.mxu0 0.0
    %1913 = vmatprep.subr.mxu0 0.0
    %1914 = vmatpush1.msra.mxu0 0.0
    %1915 = vmatprep.subr.mxu0 0.0
    %1916 = vmatpush1.msra.mxu0 0.0
    %1917 = vmatprep.subr.mxu0 0.0
    %1918 = vmatpush1.msra.mxu0 0.0
    %1919 = vmatprep.subr.mxu0 0.0
    %1920 = vmatpush1.msra.mxu0 0.0
    %1921 = vmatprep.subr.mxu0 0.0
    %1922 = vmatpush1.msra.mxu0 0.0
    %1923 = vmatprep.subr.mxu0 0.0
    %1924 = vmatpush1.msra.mxu0 0.0
    %1925 = vmatprep.subr.mxu0 0.0
    %1926 = vmatpush1.msra.mxu0 0.0
    %1927 = vmatprep.subr.mxu0 0.0
    %1928 = vmatpush1.msra.mxu0 0.0
    %1929 = vmatprep.subr.mxu0 0.0
    %1930 = vmatpush1.msra.mxu0 0.0
    %1931 = vmatprep.subr.mxu0 0.0
    %1932 = vmatpush1.msra.mxu0 0.0
    %1933 = vmatprep.mubr.f32.mxu0 0.0
    %1934 = vmatmul.mubr.f32.gmra.mrb[0].mxu0 %v1864
    %v1935 = vpop.f32.mrb[0].mxu0
    %v1936 = vadd.f32 %v1861, %v1935
    %v1937 = vpop.f32.mrb[0].mxu0
    %1938 = vmatprep.mubr.f32.mxu0 0.0
    %1939 = vmatmul.mubr.f32.gmra.mrb[0].mxu0 %v1867
    %v1940 = vpop.f32.mrb[0].mxu0
    %v1941 = vadd.f32 %v1861, %v1940
    %v1942 = vpop.f32.mrb[0].mxu0
    %1943 = vdwg.mxu0
    %v1945 = vsel %vm257, %v1850, 0
    %v1948 = vsel %vm257, %v1936, 0
    %1950 = vmatprep.subr.mxu0 0.0
    %1951 = vmatpush1.xpose.msra.mxu0 %v1948
    %1952 = vmatprep.subr.mxu0 0.0
    %1953 = vmatpush1.xpose.msra.mxu0 0.0
    %1954 = vmatprep.subr.mxu0 0.0
    %1955 = vmatpush1.xpose.msra.mxu0 0.0
    %1956 = vmatprep.subr.mxu0 0.0
    %1957 = vmatpush1.xpose.msra.mxu0 0.0
    %1958 = vmatprep.subr.mxu0 0.0
    %1959 = vmatpush1.xpose.msra.mxu0 0.0
    %1960 = vmatprep.subr.mxu0 0.0
    %1961 = vmatpush1.xpose.msra.mxu0 0.0
    %1962 = vmatprep.subr.mxu0 0.0
    %1963 = vmatpush1.xpose.msra.mxu0 0.0
    %1964 = vmatprep.subr.mxu0 0.0
    %1965 = vmatpush1.xpose.msra.mxu0 0.0
    %1966 = vmatprep.subr.mxu0 0.0
    %1967 = vmatpush1.xpose.msra.mxu0 0.0
    %1968 = vmatprep.subr.mxu0 0.0
    %1969 = vmatpush1.xpose.msra.mxu0 0.0
    %1970 = vmatprep.subr.mxu0 0.0
    %1971 = vmatpush1.xpose.msra.mxu0 0.0
    %1972 = vmatprep.subr.mxu0 0.0
    %1973 = vmatpush1.xpose.msra.mxu0 0.0
    %1974 = vmatprep.subr.mxu0 0.0
    %1975 = vmatpush1.xpose.msra.mxu0 0.0
    %1976 = vmatprep.subr.mxu0 0.0
    %1977 = vmatpush1.xpose.msra.mxu0 0.0
    %1978 = vmatprep.subr.mxu0 0.0
    %1979 = vmatpush1.xpose.msra.mxu0 0.0
    %1980 = vmatprep.subr.mxu0 0.0
    %1981 = vmatpush1.xpose.msra.mxu0 0.0
    %1982 = vmatprep.subr.mxu0 0.0
    %1983 = vmatpush1.xpose.msra.mxu0 0.0
    %1984 = vmatprep.subr.mxu0 0.0
    %1985 = vmatpush1.xpose.msra.mxu0 0.0
    %1986 = vmatprep.subr.mxu0 0.0
    %1987 = vmatpush1.xpose.msra.mxu0 0.0
    %1988 = vmatprep.subr.mxu0 0.0
    %1989 = vmatpush1.xpose.msra.mxu0 0.0
    %1990 = vmatprep.subr.mxu0 0.0
    %1991 = vmatpush1.xpose.msra.mxu0 0.0
    %1992 = vmatprep.subr.mxu0 0.0
    %1993 = vmatpush1.xpose.msra.mxu0 0.0
    %1994 = vmatprep.subr.mxu0 0.0
    %1995 = vmatpush1.xpose.msra.mxu0 0.0
    %1996 = vmatprep.subr.mxu0 0.0
    %1997 = vmatpush1.xpose.msra.mxu0 0.0
    %1998 = vmatprep.subr.mxu0 0.0
    %1999 = vmatpush1.xpose.msra.mxu0 0.0
    %2000 = vmatprep.subr.mxu0 0.0
    %2001 = vmatpush1.xpose.msra.mxu0 0.0
    %2002 = vmatprep.subr.mxu0 0.0
    %2003 = vmatpush1.xpose.msra.mxu0 0.0
    %2004 = vmatprep.subr.mxu0 0.0
    %2005 = vmatpush1.xpose.msra.mxu0 0.0
    %2006 = vmatprep.subr.mxu0 0.0
    %2007 = vmatpush1.xpose.msra.mxu0 0.0
    %2008 = vmatprep.subr.mxu0 0.0
    %2009 = vmatpush1.xpose.msra.mxu0 0.0
    %2010 = vmatprep.subr.mxu0 0.0
    %2011 = vmatpush1.xpose.msra.mxu0 0.0
    %2012 = vmatprep.subr.mxu0 0.0
    %2013 = vmatpush1.xpose.msra.mxu0 0.0
    %2014 = vmatprep.mubr.f32.mxu0 0.0
    %2015 = vmatmul.mubr.f32.gmra.mrb[0].mxu0 %v1945
    %v2016 = vpop.f32.mrb[0].mxu0
    %v2017 = vadd.f32 0.0, %v2016
    %v2018 = vpop.f32.mrb[0].mxu0
    %2019 = vdwg.mxu0
    %2020 = vrot.lane.b32.xlu0 %v1850, 120
    %v2021 = vpop.permute.xlu0 %2020
    %2022 = vrot.lane.b32.xlu0 %v1936, 120
    %v2023 = vpop.permute.xlu0 %2022
    %v2024 = vsel %vm257, %v2021, 0
    %v2026 = vsel %vm257, %v2023, 0
    %2028 = vmatprep.subr.mxu0 0.0
    %2029 = vmatpush1.xpose.msra.mxu0 %v2026
    %2030 = vmatprep.subr.mxu0 0.0
    %2031 = vmatpush1.xpose.msra.mxu0 0.0
    %2032 = vmatprep.subr.mxu0 0.0
    %2033 = vmatpush1.xpose.msra.mxu0 0.0
    %2034 = vmatprep.subr.mxu0 0.0
    %2035 = vmatpush1.xpose.msra.mxu0 0.0
    %2036 = vmatprep.subr.mxu0 0.0
    %2037 = vmatpush1.xpose.msra.mxu0 0.0
    %2038 = vmatprep.subr.mxu0 0.0
    %2039 = vmatpush1.xpose.msra.mxu0 0.0
    %2040 = vmatprep.subr.mxu0 0.0
    %2041 = vmatpush1.xpose.msra.mxu0 0.0
    %2042 = vmatprep.subr.mxu0 0.0
    %2043 = vmatpush1.xpose.msra.mxu0 0.0
    %2044 = vmatprep.subr.mxu0 0.0
    %2045 = vmatpush1.xpose.msra.mxu0 0.0
    %2046 = vmatprep.subr.mxu0 0.0
    %2047 = vmatpush1.xpose.msra.mxu0 0.0
    %2048 = vmatprep.subr.mxu0 0.0
    %2049 = vmatpush1.xpose.msra.mxu0 0.0
    %2050 = vmatprep.subr.mxu0 0.0
    %2051 = vmatpush1.xpose.msra.mxu0 0.0
    %2052 = vmatprep.subr.mxu0 0.0
    %2053 = vmatpush1.xpose.msra.mxu0 0.0
    %2054 = vmatprep.subr.mxu0 0.0
    %2055 = vmatpush1.xpose.msra.mxu0 0.0
    %2056 = vmatprep.subr.mxu0 0.0
    %2057 = vmatpush1.xpose.msra.mxu0 0.0
    %2058 = vmatprep.subr.mxu0 0.0
    %2059 = vmatpush1.xpose.msra.mxu0 0.0
    %2060 = vmatprep.subr.mxu0 0.0
    %2061 = vmatpush1.xpose.msra.mxu0 0.0
    %2062 = vmatprep.subr.mxu0 0.0
    %2063 = vmatpush1.xpose.msra.mxu0 0.0
    %2064 = vmatprep.subr.mxu0 0.0
    %2065 = vmatpush1.xpose.msra.mxu0 0.0
    %2066 = vmatprep.subr.mxu0 0.0
    %2067 = vmatpush1.xpose.msra.mxu0 0.0
    %2068 = vmatprep.subr.mxu0 0.0
    %2069 = vmatpush1.xpose.msra.mxu0 0.0
    %2070 = vmatprep.subr.mxu0 0.0
    %2071 = vmatpush1.xpose.msra.mxu0 0.0
    %2072 = vmatprep.subr.mxu0 0.0
    %2073 = vmatpush1.xpose.msra.mxu0 0.0
    %2074 = vmatprep.subr.mxu0 0.0
    %2075 = vmatpush1.xpose.msra.mxu0 0.0
    %2076 = vmatprep.subr.mxu0 0.0
    %2077 = vmatpush1.xpose.msra.mxu0 0.0
    %2078 = vmatprep.subr.mxu0 0.0
    %2079 = vmatpush1.xpose.msra.mxu0 0.0
    %2080 = vmatprep.subr.mxu0 0.0
    %2081 = vmatpush1.xpose.msra.mxu0 0.0
    %2082 = vmatprep.subr.mxu0 0.0
    %2083 = vmatpush1.xpose.msra.mxu0 0.0
    %2084 = vmatprep.subr.mxu0 0.0
    %2085 = vmatpush1.xpose.msra.mxu0 0.0
    %2086 = vmatprep.subr.mxu0 0.0
    %2087 = vmatpush1.xpose.msra.mxu0 0.0
    %2088 = vmatprep.subr.mxu0 0.0
    %2089 = vmatpush1.xpose.msra.mxu0 0.0
    %2090 = vmatprep.subr.mxu0 0.0
    %2091 = vmatpush1.xpose.msra.mxu0 0.0
    %2092 = vmatprep.mubr.f32.mxu0 0.0
    %2093 = vmatmul.mubr.f32.gmra.mrb[0].mxu0 %v2024
    %v2094 = vpop.f32.mrb[0].mxu0
    %v2095 = vadd.f32 0.0, %v2094
    %v2096 = vpop.f32.mrb[0].mxu0
    %2097 = vdwg.mxu0
    %2098 = vrot.lane.b32.xlu0 %v1850, 112
    %v2099 = vpop.permute.xlu0 %2098
    %2100 = vrot.lane.b32.xlu0 %v1936, 112
    %v2101 = vpop.permute.xlu0 %2100
    %v2102 = vsel %vm257, %v2099, 0
    %v2104 = vsel %vm257, %v2101, 0
    %2106 = vmatprep.subr.mxu0 0.0
    %2107 = vmatpush1.xpose.msra.mxu0 %v2104
    %2108 = vmatprep.subr.mxu0 0.0
    %2109 = vmatpush1.xpose.msra.mxu0 0.0
    %2110 = vmatprep.subr.mxu0 0.0
    %2111 = vmatpush1.xpose.msra.mxu0 0.0
    %2112 = vmatprep.subr.mxu0 0.0
    %2113 = vmatpush1.xpose.msra.mxu0 0.0
    %2114 = vmatprep.subr.mxu0 0.0
    %2115 = vmatpush1.xpose.msra.mxu0 0.0
    %2116 = vmatprep.subr.mxu0 0.0
    %2117 = vmatpush1.xpose.msra.mxu0 0.0
    %2118 = vmatprep.subr.mxu0 0.0
    %2119 = vmatpush1.xpose.msra.mxu0 0.0
    %2120 = vmatprep.subr.mxu0 0.0
    %2121 = vmatpush1.xpose.msra.mxu0 0.0
    %2122 = vmatprep.subr.mxu0 0.0
    %2123 = vmatpush1.xpose.msra.mxu0 0.0
    %2124 = vmatprep.subr.mxu0 0.0
    %2125 = vmatpush1.xpose.msra.mxu0 0.0
    %2126 = vmatprep.subr.mxu0 0.0
    %2127 = vmatpush1.xpose.msra.mxu0 0.0
    %2128 = vmatprep.subr.mxu0 0.0
    %2129 = vmatpush1.xpose.msra.mxu0 0.0
    %2130 = vmatprep.subr.mxu0 0.0
    %2131 = vmatpush1.xpose.msra.mxu0 0.0
    %2132 = vmatprep.subr.mxu0 0.0
    %2133 = vmatpush1.xpose.msra.mxu0 0.0
    %2134 = vmatprep.subr.mxu0 0.0
    %2135 = vmatpush1.xpose.msra.mxu0 0.0
    %2136 = vmatprep.subr.mxu0 0.0
    %2137 = vmatpush1.xpose.msra.mxu0 0.0
    %2138 = vmatprep.subr.mxu0 0.0
    %2139 = vmatpush1.xpose.msra.mxu0 0.0
    %2140 = vmatprep.subr.mxu0 0.0
    %2141 = vmatpush1.xpose.msra.mxu0 0.0
    %2142 = vmatprep.subr.mxu0 0.0
    %2143 = vmatpush1.xpose.msra.mxu0 0.0
    %2144 = vmatprep.subr.mxu0 0.0
    %2145 = vmatpush1.xpose.msra.mxu0 0.0
    %2146 = vmatprep.subr.mxu0 0.0
    %2147 = vmatpush1.xpose.msra.mxu0 0.0
    %2148 = vmatprep.subr.mxu0 0.0
    %2149 = vmatpush1.xpose.msra.mxu0 0.0
    %2150 = vmatprep.subr.mxu0 0.0
    %2151 = vmatpush1.xpose.msra.mxu0 0.0
    %2152 = vmatprep.subr.mxu0 0.0
    %2153 = vmatpush1.xpose.msra.mxu0 0.0
    %2154 = vmatprep.subr.mxu0 0.0
    %2155 = vmatpush1.xpose.msra.mxu0 0.0
    %2156 = vmatprep.subr.mxu0 0.0
    %2157 = vmatpush1.xpose.msra.mxu0 0.0
    %2158 = vmatprep.subr.mxu0 0.0
    %2159 = vmatpush1.xpose.msra.mxu0 0.0
    %2160 = vmatprep.subr.mxu0 0.0
    %2161 = vmatpush1.xpose.msra.mxu0 0.0
    %2162 = vmatprep.subr.mxu0 0.0
    %2163 = vmatpush1.xpose.msra.mxu0 0.0
    %2164 = vmatprep.subr.mxu0 0.0
    %2165 = vmatpush1.xpose.msra.mxu0 0.0
    %2166 = vmatprep.subr.mxu0 0.0
    %2167 = vmatpush1.xpose.msra.mxu0 0.0
    %2168 = vmatprep.subr.mxu0 0.0
    %2169 = vmatpush1.xpose.msra.mxu0 0.0
    %2170 = vmatprep.mubr.f32.mxu0 0.0
    %2171 = vmatmul.mubr.f32.gmra.mrb[0].mxu0 %v2102
    %v2172 = vpop.f32.mrb[0].mxu0
    %v2173 = vadd.f32 0.0, %v2172
    %v2174 = vpop.f32.mrb[0].mxu0
    %2175 = vdwg.mxu0
    %2176 = vrot.lane.b32.xlu0 %v1850, 104
    %v2177 = vpop.permute.xlu0 %2176
    %2178 = vrot.lane.b32.xlu0 %v1936, 104
    %v2179 = vpop.permute.xlu0 %2178
    %v2180 = vsel %vm257, %v2177, 0
    %v2182 = vsel %vm257, %v2179, 0
    %2184 = vmatprep.subr.mxu0 0.0
    %2185 = vmatpush1.xpose.msra.mxu0 %v2182
    %2186 = vmatprep.subr.mxu0 0.0
    %2187 = vmatpush1.xpose.msra.mxu0 0.0
    %2188 = vmatprep.subr.mxu0 0.0
    %2189 = vmatpush1.xpose.msra.mxu0 0.0
    %2190 = vmatprep.subr.mxu0 0.0
    %2191 = vmatpush1.xpose.msra.mxu0 0.0
    %2192 = vmatprep.subr.mxu0 0.0
    %2193 = vmatpush1.xpose.msra.mxu0 0.0
    %2194 = vmatprep.subr.mxu0 0.0
    %2195 = vmatpush1.xpose.msra.mxu0 0.0
    %2196 = vmatprep.subr.mxu0 0.0
    %2197 = vmatpush1.xpose.msra.mxu0 0.0
    %2198 = vmatprep.subr.mxu0 0.0
    %2199 = vmatpush1.xpose.msra.mxu0 0.0
    %2200 = vmatprep.subr.mxu0 0.0
    %2201 = vmatpush1.xpose.msra.mxu0 0.0
    %2202 = vmatprep.subr.mxu0 0.0
    %2203 = vmatpush1.xpose.msra.mxu0 0.0
    %2204 = vmatprep.subr.mxu0 0.0
    %2205 = vmatpush1.xpose.msra.mxu0 0.0
    %2206 = vmatprep.subr.mxu0 0.0
    %2207 = vmatpush1.xpose.msra.mxu0 0.0
    %2208 = vmatprep.subr.mxu0 0.0
    %2209 = vmatpush1.xpose.msra.mxu0 0.0
    %2210 = vmatprep.subr.mxu0 0.0
    %2211 = vmatpush1.xpose.msra.mxu0 0.0
    %2212 = vmatprep.subr.mxu0 0.0
    %2213 = vmatpush1.xpose.msra.mxu0 0.0
    %2214 = vmatprep.subr.mxu0 0.0
    %2215 = vmatpush1.xpose.msra.mxu0 0.0
    %2216 = vmatprep.subr.mxu0 0.0
    %2217 = vmatpush1.xpose.msra.mxu0 0.0
    %2218 = vmatprep.subr.mxu0 0.0
    %2219 = vmatpush1.xpose.msra.mxu0 0.0
    %2220 = vmatprep.subr.mxu0 0.0
    %2221 = vmatpush1.xpose.msra.mxu0 0.0
    %2222 = vmatprep.subr.mxu0 0.0
    %2223 = vmatpush1.xpose.msra.mxu0 0.0
    %2224 = vmatprep.subr.mxu0 0.0
    %2225 = vmatpush1.xpose.msra.mxu0 0.0
    %2226 = vmatprep.subr.mxu0 0.0
    %2227 = vmatpush1.xpose.msra.mxu0 0.0
    %2228 = vmatprep.subr.mxu0 0.0
    %2229 = vmatpush1.xpose.msra.mxu0 0.0
    %2230 = vmatprep.subr.mxu0 0.0
    %2231 = vmatpush1.xpose.msra.mxu0 0.0
    %2232 = vmatprep.subr.mxu0 0.0
    %2233 = vmatpush1.xpose.msra.mxu0 0.0
    %2234 = vmatprep.subr.mxu0 0.0
    %2235 = vmatpush1.xpose.msra.mxu0 0.0
    %2236 = vmatprep.subr.mxu0 0.0
    %2237 = vmatpush1.xpose.msra.mxu0 0.0
    %2238 = vmatprep.subr.mxu0 0.0
    %2239 = vmatpush1.xpose.msra.mxu0 0.0
    %2240 = vmatprep.subr.mxu0 0.0
    %2241 = vmatpush1.xpose.msra.mxu0 0.0
    %2242 = vmatprep.subr.mxu0 0.0
    %2243 = vmatpush1.xpose.msra.mxu0 0.0
    %2244 = vmatprep.subr.mxu0 0.0
    %2245 = vmatpush1.xpose.msra.mxu0 0.0
    %2246 = vmatprep.subr.mxu0 0.0
    %2247 = vmatpush1.xpose.msra.mxu0 0.0
    %2248 = vmatprep.mubr.f32.mxu0 0.0
    %2249 = vmatmul.mubr.f32.gmra.mrb[0].mxu0 %v2180
    %v2250 = vpop.f32.mrb[0].mxu0
    %v2251 = vadd.f32 0.0, %v2250
    %v2252 = vpop.f32.mrb[0].mxu0
    %2253 = vdwg.mxu0
    %v2255 = vsel %vm257, %v1851, 0
    %v2258 = vsel %vm257, %v1941, 0
    %2260 = vmatprep.subr.mxu0 0.0
    %2261 = vmatpush1.xpose.msra.mxu0 %v2258
    %2262 = vmatprep.subr.mxu0 0.0
    %2263 = vmatpush1.xpose.msra.mxu0 0.0
    %2264 = vmatprep.subr.mxu0 0.0
    %2265 = vmatpush1.xpose.msra.mxu0 0.0
    %2266 = vmatprep.subr.mxu0 0.0
    %2267 = vmatpush1.xpose.msra.mxu0 0.0
    %2268 = vmatprep.subr.mxu0 0.0
    %2269 = vmatpush1.xpose.msra.mxu0 0.0
    %2270 = vmatprep.subr.mxu0 0.0
    %2271 = vmatpush1.xpose.msra.mxu0 0.0
    %2272 = vmatprep.subr.mxu0 0.0
    %2273 = vmatpush1.xpose.msra.mxu0 0.0
    %2274 = vmatprep.subr.mxu0 0.0
    %2275 = vmatpush1.xpose.msra.mxu0 0.0
    %2276 = vmatprep.subr.mxu0 0.0
    %2277 = vmatpush1.xpose.msra.mxu0 0.0
    %2278 = vmatprep.subr.mxu0 0.0
    %2279 = vmatpush1.xpose.msra.mxu0 0.0
    %2280 = vmatprep.subr.mxu0 0.0
    %2281 = vmatpush1.xpose.msra.mxu0 0.0
    %2282 = vmatprep.subr.mxu0 0.0
    %2283 = vmatpush1.xpose.msra.mxu0 0.0
    %2284 = vmatprep.subr.mxu0 0.0
    %2285 = vmatpush1.xpose.msra.mxu0 0.0
    %2286 = vmatprep.subr.mxu0 0.0
    %2287 = vmatpush1.xpose.msra.mxu0 0.0
    %2288 = vmatprep.subr.mxu0 0.0
    %2289 = vmatpush1.xpose.msra.mxu0 0.0
    %2290 = vmatprep.subr.mxu0 0.0
    %2291 = vmatpush1.xpose.msra.mxu0 0.0
    %2292 = vmatprep.subr.mxu0 0.0
    %2293 = vmatpush1.xpose.msra.mxu0 0.0
    %2294 = vmatprep.subr.mxu0 0.0
    %2295 = vmatpush1.xpose.msra.mxu0 0.0
    %2296 = vmatprep.subr.mxu0 0.0
    %2297 = vmatpush1.xpose.msra.mxu0 0.0
    %2298 = vmatprep.subr.mxu0 0.0
    %2299 = vmatpush1.xpose.msra.mxu0 0.0
    %2300 = vmatprep.subr.mxu0 0.0
    %2301 = vmatpush1.xpose.msra.mxu0 0.0
    %2302 = vmatprep.subr.mxu0 0.0
    %2303 = vmatpush1.xpose.msra.mxu0 0.0
    %2304 = vmatprep.subr.mxu0 0.0
    %2305 = vmatpush1.xpose.msra.mxu0 0.0
    %2306 = vmatprep.subr.mxu0 0.0
    %2307 = vmatpush1.xpose.msra.mxu0 0.0
    %2308 = vmatprep.subr.mxu0 0.0
    %2309 = vmatpush1.xpose.msra.mxu0 0.0
    %2310 = vmatprep.subr.mxu0 0.0
    %2311 = vmatpush1.xpose.msra.mxu0 0.0
    %2312 = vmatprep.subr.mxu0 0.0
    %2313 = vmatpush1.xpose.msra.mxu0 0.0
    %2314 = vmatprep.subr.mxu0 0.0
    %2315 = vmatpush1.xpose.msra.mxu0 0.0
    %2316 = vmatprep.subr.mxu0 0.0
    %2317 = vmatpush1.xpose.msra.mxu0 0.0
    %2318 = vmatprep.subr.mxu0 0.0
    %2319 = vmatpush1.xpose.msra.mxu0 0.0
    %2320 = vmatprep.subr.mxu0 0.0
    %2321 = vmatpush1.xpose.msra.mxu0 0.0
    %2322 = vmatprep.subr.mxu0 0.0
    %2323 = vmatpush1.xpose.msra.mxu0 0.0
    %2324 = vmatprep.mubr.f32.mxu0 0.0
    %2325 = vmatmul.mubr.f32.gmra.mrb[0].mxu0 %v2255
    %v2326 = vpop.f32.mrb[0].mxu0
    %v2327 = vadd.f32 0.0, %v2326
    %v2328 = vpop.f32.mrb[0].mxu0
    %2329 = vdwg.mxu0
    %2330 = vrot.lane.b32.xlu0 %v1851, 120
    %v2331 = vpop.permute.xlu0 %2330
    %2332 = vrot.lane.b32.xlu0 %v1941, 120
    %v2333 = vpop.permute.xlu0 %2332
    %v2334 = vsel %vm257, %v2331, 0
    %v2336 = vsel %vm257, %v2333, 0
    %2338 = vmatprep.subr.mxu0 0.0
    %2339 = vmatpush1.xpose.msra.mxu0 %v2336
    %2340 = vmatprep.subr.mxu0 0.0
    %2341 = vmatpush1.xpose.msra.mxu0 0.0
    %2342 = vmatprep.subr.mxu0 0.0
    %2343 = vmatpush1.xpose.msra.mxu0 0.0
    %2344 = vmatprep.subr.mxu0 0.0
    %2345 = vmatpush1.xpose.msra.mxu0 0.0
    %2346 = vmatprep.subr.mxu0 0.0
    %2347 = vmatpush1.xpose.msra.mxu0 0.0
    %2348 = vmatprep.subr.mxu0 0.0
    %2349 = vmatpush1.xpose.msra.mxu0 0.0
    %2350 = vmatprep.subr.mxu0 0.0
    %2351 = vmatpush1.xpose.msra.mxu0 0.0
    %2352 = vmatprep.subr.mxu0 0.0
    %2353 = vmatpush1.xpose.msra.mxu0 0.0
    %2354 = vmatprep.subr.mxu0 0.0
    %2355 = vmatpush1.xpose.msra.mxu0 0.0
    %2356 = vmatprep.subr.mxu0 0.0
    %2357 = vmatpush1.xpose.msra.mxu0 0.0
    %2358 = vmatprep.subr.mxu0 0.0
    %2359 = vmatpush1.xpose.msra.mxu0 0.0
    %2360 = vmatprep.subr.mxu0 0.0
    %2361 = vmatpush1.xpose.msra.mxu0 0.0
    %2362 = vmatprep.subr.mxu0 0.0
    %2363 = vmatpush1.xpose.msra.mxu0 0.0
    %2364 = vmatprep.subr.mxu0 0.0
    %2365 = vmatpush1.xpose.msra.mxu0 0.0
    %2366 = vmatprep.subr.mxu0 0.0
    %2367 = vmatpush1.xpose.msra.mxu0 0.0
    %2368 = vmatprep.subr.mxu0 0.0
    %2369 = vmatpush1.xpose.msra.mxu0 0.0
    %2370 = vmatprep.subr.mxu0 0.0
    %2371 = vmatpush1.xpose.msra.mxu0 0.0
    %2372 = vmatprep.subr.mxu0 0.0
    %2373 = vmatpush1.xpose.msra.mxu0 0.0
    %2374 = vmatprep.subr.mxu0 0.0
    %2375 = vmatpush1.xpose.msra.mxu0 0.0
    %2376 = vmatprep.subr.mxu0 0.0
    %2377 = vmatpush1.xpose.msra.mxu0 0.0
    %2378 = vmatprep.subr.mxu0 0.0
    %2379 = vmatpush1.xpose.msra.mxu0 0.0
    %2380 = vmatprep.subr.mxu0 0.0
    %2381 = vmatpush1.xpose.msra.mxu0 0.0
    %2382 = vmatprep.subr.mxu0 0.0
    %2383 = vmatpush1.xpose.msra.mxu0 0.0
    %2384 = vmatprep.subr.mxu0 0.0
    %2385 = vmatpush1.xpose.msra.mxu0 0.0
    %2386 = vmatprep.subr.mxu0 0.0
    %2387 = vmatpush1.xpose.msra.mxu0 0.0
    %2388 = vmatprep.subr.mxu0 0.0
    %2389 = vmatpush1.xpose.msra.mxu0 0.0
    %2390 = vmatprep.subr.mxu0 0.0
    %2391 = vmatpush1.xpose.msra.mxu0 0.0
    %2392 = vmatprep.subr.mxu0 0.0
    %2393 = vmatpush1.xpose.msra.mxu0 0.0
    %2394 = vmatprep.subr.mxu0 0.0
    %2395 = vmatpush1.xpose.msra.mxu0 0.0
    %2396 = vmatprep.subr.mxu0 0.0
    %2397 = vmatpush1.xpose.msra.mxu0 0.0
    %2398 = vmatprep.subr.mxu0 0.0
    %2399 = vmatpush1.xpose.msra.mxu0 0.0
    %2400 = vmatprep.subr.mxu0 0.0
    %2401 = vmatpush1.xpose.msra.mxu0 0.0
    %2402 = vmatprep.mubr.f32.mxu0 0.0
    %2403 = vmatmul.mubr.f32.gmra.mrb[0].mxu0 %v2334
    %v2404 = vpop.f32.mrb[0].mxu0
    %v2405 = vadd.f32 0.0, %v2404
    %v2406 = vpop.f32.mrb[0].mxu0
    %2407 = vdwg.mxu0
    %2408 = vrot.lane.b32.xlu0 %v1851, 112
    %v2409 = vpop.permute.xlu0 %2408
    %2410 = vrot.lane.b32.xlu0 %v1941, 112
    %v2411 = vpop.permute.xlu0 %2410
    %v2412 = vsel %vm257, %v2409, 0
    %v2414 = vsel %vm257, %v2411, 0
    %2416 = vmatprep.subr.mxu0 0.0
    %2417 = vmatpush1.xpose.msra.mxu0 %v2414
    %2418 = vmatprep.subr.mxu0 0.0
    %2419 = vmatpush1.xpose.msra.mxu0 0.0
    %2420 = vmatprep.subr.mxu0 0.0
    %2421 = vmatpush1.xpose.msra.mxu0 0.0
    %2422 = vmatprep.subr.mxu0 0.0
    %2423 = vmatpush1.xpose.msra.mxu0 0.0
    %2424 = vmatprep.subr.mxu0 0.0
    %2425 = vmatpush1.xpose.msra.mxu0 0.0
    %2426 = vmatprep.subr.mxu0 0.0
    %2427 = vmatpush1.xpose.msra.mxu0 0.0
    %2428 = vmatprep.subr.mxu0 0.0
    %2429 = vmatpush1.xpose.msra.mxu0 0.0
    %2430 = vmatprep.subr.mxu0 0.0
    %2431 = vmatpush1.xpose.msra.mxu0 0.0
    %2432 = vmatprep.subr.mxu0 0.0
    %2433 = vmatpush1.xpose.msra.mxu0 0.0
    %2434 = vmatprep.subr.mxu0 0.0
    %2435 = vmatpush1.xpose.msra.mxu0 0.0
    %2436 = vmatprep.subr.mxu0 0.0
    %2437 = vmatpush1.xpose.msra.mxu0 0.0
    %2438 = vmatprep.subr.mxu0 0.0
    %2439 = vmatpush1.xpose.msra.mxu0 0.0
    %2440 = vmatprep.subr.mxu0 0.0
    %2441 = vmatpush1.xpose.msra.mxu0 0.0
    %2442 = vmatprep.subr.mxu0 0.0
    %2443 = vmatpush1.xpose.msra.mxu0 0.0
    %2444 = vmatprep.subr.mxu0 0.0
    %2445 = vmatpush1.xpose.msra.mxu0 0.0
    %2446 = vmatprep.subr.mxu0 0.0
    %2447 = vmatpush1.xpose.msra.mxu0 0.0
    %2448 = vmatprep.subr.mxu0 0.0
    %2449 = vmatpush1.xpose.msra.mxu0 0.0
    %2450 = vmatprep.subr.mxu0 0.0
    %2451 = vmatpush1.xpose.msra.mxu0 0.0
    %2452 = vmatprep.subr.mxu0 0.0
    %2453 = vmatpush1.xpose.msra.mxu0 0.0
    %2454 = vmatprep.subr.mxu0 0.0
    %2455 = vmatpush1.xpose.msra.mxu0 0.0
    %2456 = vmatprep.subr.mxu0 0.0
    %2457 = vmatpush1.xpose.msra.mxu0 0.0
    %2458 = vmatprep.subr.mxu0 0.0
    %2459 = vmatpush1.xpose.msra.mxu0 0.0
    %2460 = vmatprep.subr.mxu0 0.0
    %2461 = vmatpush1.xpose.msra.mxu0 0.0
    %2462 = vmatprep.subr.mxu0 0.0
    %2463 = vmatpush1.xpose.msra.mxu0 0.0
    %2464 = vmatprep.subr.mxu0 0.0
    %2465 = vmatpush1.xpose.msra.mxu0 0.0
    %2466 = vmatprep.subr.mxu0 0.0
    %2467 = vmatpush1.xpose.msra.mxu0 0.0
    %2468 = vmatprep.subr.mxu0 0.0
    %2469 = vmatpush1.xpose.msra.mxu0 0.0
    %2470 = vmatprep.subr.mxu0 0.0
    %2471 = vmatpush1.xpose.msra.mxu0 0.0
    %2472 = vmatprep.subr.mxu0 0.0
    %2473 = vmatpush1.xpose.msra.mxu0 0.0
    %2474 = vmatprep.subr.mxu0 0.0
    %2475 = vmatpush1.xpose.msra.mxu0 0.0
    %2476 = vmatprep.subr.mxu0 0.0
    %2477 = vmatpush1.xpose.msra.mxu0 0.0
    %2478 = vmatprep.subr.mxu0 0.0
    %2479 = vmatpush1.xpose.msra.mxu0 0.0
    %2480 = vmatprep.mubr.f32.mxu0 0.0
    %2481 = vmatmul.mubr.f32.gmra.mrb[0].mxu0 %v2412
    %v2482 = vpop.f32.mrb[0].mxu0
    %v2483 = vadd.f32 0.0, %v2482
    %v2484 = vpop.f32.mrb[0].mxu0
    %2485 = vdwg.mxu0
    %2486 = vrot.lane.b32.xlu0 %v1851, 104
    %v2487 = vpop.permute.xlu0 %2486
    %2488 = vrot.lane.b32.xlu0 %v1941, 104
    %v2489 = vpop.permute.xlu0 %2488
    %v2490 = vsel %vm257, %v2487, 0
    %v2492 = vsel %vm257, %v2489, 0
    %2494 = vmatprep.subr.mxu0 0.0
    %2495 = vmatpush1.xpose.msra.mxu0 %v2492
    %2496 = vmatprep.subr.mxu0 0.0
    %2497 = vmatpush1.xpose.msra.mxu0 0.0
    %2498 = vmatprep.subr.mxu0 0.0
    %2499 = vmatpush1.xpose.msra.mxu0 0.0
    %2500 = vmatprep.subr.mxu0 0.0
    %2501 = vmatpush1.xpose.msra.mxu0 0.0
    %2502 = vmatprep.subr.mxu0 0.0
    %2503 = vmatpush1.xpose.msra.mxu0 0.0
    %2504 = vmatprep.subr.mxu0 0.0
    %2505 = vmatpush1.xpose.msra.mxu0 0.0
    %2506 = vmatprep.subr.mxu0 0.0
    %2507 = vmatpush1.xpose.msra.mxu0 0.0
    %2508 = vmatprep.subr.mxu0 0.0
    %2509 = vmatpush1.xpose.msra.mxu0 0.0
    %2510 = vmatprep.subr.mxu0 0.0
    %2511 = vmatpush1.xpose.msra.mxu0 0.0
    %2512 = vmatprep.subr.mxu0 0.0
    %2513 = vmatpush1.xpose.msra.mxu0 0.0
    %2514 = vmatprep.subr.mxu0 0.0
    %2515 = vmatpush1.xpose.msra.mxu0 0.0
    %2516 = vmatprep.subr.mxu0 0.0
    %2517 = vmatpush1.xpose.msra.mxu0 0.0
    %2518 = vmatprep.subr.mxu0 0.0
    %2519 = vmatpush1.xpose.msra.mxu0 0.0
    %2520 = vmatprep.subr.mxu0 0.0
    %2521 = vmatpush1.xpose.msra.mxu0 0.0
    %2522 = vmatprep.subr.mxu0 0.0
    %2523 = vmatpush1.xpose.msra.mxu0 0.0
    %2524 = vmatprep.subr.mxu0 0.0
    %2525 = vmatpush1.xpose.msra.mxu0 0.0
    %2526 = vmatprep.subr.mxu0 0.0
    %2527 = vmatpush1.xpose.msra.mxu0 0.0
    %2528 = vmatprep.subr.mxu0 0.0
    %2529 = vmatpush1.xpose.msra.mxu0 0.0
    %2530 = vmatprep.subr.mxu0 0.0
    %2531 = vmatpush1.xpose.msra.mxu0 0.0
    %2532 = vmatprep.subr.mxu0 0.0
    %2533 = vmatpush1.xpose.msra.mxu0 0.0
    %2534 = vmatprep.subr.mxu0 0.0
    %2535 = vmatpush1.xpose.msra.mxu0 0.0
    %2536 = vmatprep.subr.mxu0 0.0
    %2537 = vmatpush1.xpose.msra.mxu0 0.0
    %2538 = vmatprep.subr.mxu0 0.0
    %2539 = vmatpush1.xpose.msra.mxu0 0.0
    %2540 = vmatprep.subr.mxu0 0.0
    %2541 = vmatpush1.xpose.msra.mxu0 0.0
    %2542 = vmatprep.subr.mxu0 0.0
    %2543 = vmatpush1.xpose.msra.mxu0 0.0
    %2544 = vmatprep.subr.mxu0 0.0
    %2545 = vmatpush1.xpose.msra.mxu0 0.0
    %2546 = vmatprep.subr.mxu0 0.0
    %2547 = vmatpush1.xpose.msra.mxu0 0.0
    %2548 = vmatprep.subr.mxu0 0.0
    %2549 = vmatpush1.xpose.msra.mxu0 0.0
    %2550 = vmatprep.subr.mxu0 0.0
    %2551 = vmatpush1.xpose.msra.mxu0 0.0
    %2552 = vmatprep.subr.mxu0 0.0
    %2553 = vmatpush1.xpose.msra.mxu0 0.0
    %2554 = vmatprep.subr.mxu0 0.0
    %2555 = vmatpush1.xpose.msra.mxu0 0.0
    %2556 = vmatprep.subr.mxu0 0.0
    %2557 = vmatpush1.xpose.msra.mxu0 0.0
    %2558 = vmatprep.mubr.f32.mxu0 0.0
    %2559 = vmatmul.mubr.f32.gmra.mrb[0].mxu0 %v2490
    %v2560 = vpop.f32.mrb[0].mxu0
    %v2561 = vadd.f32 0.0, %v2560
    %v2562 = vpop.f32.mrb[0].mxu0
    %2563 = vdwg.mxu0
    %v2564 = vadd.f32 %v2017, %v158
    %v2565 = vadd.f32 %v2095, %v158
    %v2566 = vadd.f32 %v2173, %v158
    %v2567 = vadd.f32 %v2251, %v158
    %v2568 = vadd.f32 %v2327, %v158
    %v2569 = vadd.f32 %v2405, %v158
    %v2570 = vadd.f32 %v2483, %v158
    %v2571 = vadd.f32 %v2561, %v158
    %v2572 = vsel %vm257, %v2564, -inf
    %2573 = vmax.xlane.f32.xlu0 %v2572
    %v2574 = vpop.xlane.xlu0 %2573
    %v2575 = vsel %vm257, %v2565, -inf
    %2576 = vmax.xlane.f32.xlu0 %v2575
    %v2577 = vpop.xlane.xlu0 %2576
    %v2578 = vsel %vm257, %v2566, -inf
    %2579 = vmax.xlane.f32.xlu0 %v2578
    %v2580 = vpop.xlane.xlu0 %2579
    %v2581 = vsel %vm257, %v2567, -inf
    %2582 = vmax.xlane.f32.xlu0 %v2581
    %v2583 = vpop.xlane.xlu0 %2582
    %v2584 = vsel %vm257, %v2568, -inf
    %2585 = vmax.xlane.f32.xlu0 %v2584
    %v2586 = vpop.xlane.xlu0 %2585
    %v2587 = vsel %vm257, %v2569, -inf
    %2588 = vmax.xlane.f32.xlu0 %v2587
    %v2589 = vpop.xlane.xlu0 %2588
    %v2590 = vsel %vm257, %v2570, -inf
    %2591 = vmax.xlane.f32.xlu0 %v2590
    %v2592 = vpop.xlane.xlu0 %2591
    %v2593 = vsel %vm257, %v2571, -inf
    %2594 = vmax.xlane.f32.xlu0 %v2593
    %v2595 = vpop.xlane.xlu0 %2594
    %v2596 = vsub.f32 %v2564, %v2574
    %v2597 = vsub.f32 %v2565, %v2577
    %v2598 = vsub.f32 %v2566, %v2580
    %v2599 = vsub.f32 %v2567, %v2583
    %v2600 = vsub.f32 %v2568, %v2586
    %v2601 = vsub.f32 %v2569, %v2589
    %v2602 = vsub.f32 %v2570, %v2592
    %v2603 = vsub.f32 %v2571, %v2595
    %v2604 = vmul.f32 %v2596, 1.442695
    %v2605 = vpow.pop %v2604
    %v2606 = vmul.f32 %v2597, 1.442695
    %v2607 = vpow.pop %v2606
    %v2608 = vmul.f32 %v2598, 1.442695
    %v2609 = vpow.pop %v2608
    %v2610 = vmul.f32 %v2599, 1.442695
    %v2611 = vpow.pop %v2610
    %v2612 = vmul.f32 %v2600, 1.442695
    %v2613 = vpow.pop %v2612
    %v2614 = vmul.f32 %v2601, 1.442695
    %v2615 = vpow.pop %v2614
    %v2616 = vmul.f32 %v2602, 1.442695
    %v2617 = vpow.pop %v2616
    %v2618 = vmul.f32 %v2603, 1.442695
    %v2619 = vpow.pop %v2618
    %v2620 = vsel %vm257, %v2605, 0.0
    %2621 = vadd.xlane.f32.xlu0 %v2620
    %v2622 = vpop.xlane.xlu0 %2621
    %v2623 = vsel %vm257, %v2607, 0.0
    %2624 = vadd.xlane.f32.xlu0 %v2623
    %v2625 = vpop.xlane.xlu0 %2624
    %v2626 = vsel %vm257, %v2609, 0.0
    %2627 = vadd.xlane.f32.xlu0 %v2626
    %v2628 = vpop.xlane.xlu0 %2627
    %v2629 = vsel %vm257, %v2611, 0.0
    %2630 = vadd.xlane.f32.xlu0 %v2629
    %v2631 = vpop.xlane.xlu0 %2630
    %v2632 = vsel %vm257, %v2613, 0.0
    %2633 = vadd.xlane.f32.xlu0 %v2632
    %v2634 = vpop.xlane.xlu0 %2633
    %v2635 = vsel %vm257, %v2615, 0.0
    %2636 = vadd.xlane.f32.xlu0 %v2635
    %v2637 = vpop.xlane.xlu0 %2636
    %v2638 = vsel %vm257, %v2617, 0.0
    %2639 = vadd.xlane.f32.xlu0 %v2638
    %v2640 = vpop.xlane.xlu0 %2639
    %v2641 = vsel %vm257, %v2619, 0.0
    %2642 = vadd.xlane.f32.xlu0 %v2641
    %v2643 = vpop.xlane.xlu0 %2642
    %v2644 = vrcp.pop %v2622
    %v2645 = vmul.f32 %v2605, %v2644
    %v2646 = vrcp.pop %v2625
    %v2647 = vmul.f32 %v2607, %v2646
    %v2648 = vrcp.pop %v2628
    %v2649 = vmul.f32 %v2609, %v2648
    %v2650 = vrcp.pop %v2631
    %v2651 = vmul.f32 %v2611, %v2650
    %v2652 = vrcp.pop %v2634
    %v2653 = vmul.f32 %v2613, %v2652
    %v2654 = vrcp.pop %v2637
    %v2655 = vmul.f32 %v2615, %v2654
    %v2656 = vrcp.pop %v2640
    %v2657 = vmul.f32 %v2617, %v2656
    %v2658 = vrcp.pop %v2643
    %v2659 = vmul.f32 %v2619, %v2658
    %2660 = vrot.lane.b32.xlu0 %v1936, 96
    %v2661 = vpop.permute.xlu0 %2660
    %v2664 = vsel %vm257, %v2645, 0
    %2666 = vmatprep.subr.mxu0 0.0
    %2667 = vmatpush1.msra.mxu0 %v2661
    %2668 = vmatprep.subr.mxu0 0.0
    %2669 = vmatpush1.msra.mxu0 0.0
    %2670 = vmatprep.subr.mxu0 0.0
    %2671 = vmatpush1.msra.mxu0 0.0
    %2672 = vmatprep.subr.mxu0 0.0
    %2673 = vmatpush1.msra.mxu0 0.0
    %2674 = vmatprep.subr.mxu0 0.0
    %2675 = vmatpush1.msra.mxu0 0.0
    %2676 = vmatprep.subr.mxu0 0.0
    %2677 = vmatpush1.msra.mxu0 0.0
    %2678 = vmatprep.subr.mxu0 0.0
    %2679 = vmatpush1.msra.mxu0 0.0
    %2680 = vmatprep.subr.mxu0 0.0
    %2681 = vmatpush1.msra.mxu0 0.0
    %2682 = vmatprep.subr.mxu0 0.0
    %2683 = vmatpush1.msra.mxu0 0.0
    %2684 = vmatprep.subr.mxu0 0.0
    %2685 = vmatpush1.msra.mxu0 0.0
    %2686 = vmatprep.subr.mxu0 0.0
    %2687 = vmatpush1.msra.mxu0 0.0
    %2688 = vmatprep.subr.mxu0 0.0
    %2689 = vmatpush1.msra.mxu0 0.0
    %2690 = vmatprep.subr.mxu0 0.0
    %2691 = vmatpush1.msra.mxu0 0.0
    %2692 = vmatprep.subr.mxu0 0.0
    %2693 = vmatpush1.msra.mxu0 0.0
    %2694 = vmatprep.subr.mxu0 0.0
    %2695 = vmatpush1.msra.mxu0 0.0
    %2696 = vmatprep.subr.mxu0 0.0
    %2697 = vmatpush1.msra.mxu0 0.0
    %2698 = vmatprep.subr.mxu0 0.0
    %2699 = vmatpush1.msra.mxu0 0.0
    %2700 = vmatprep.subr.mxu0 0.0
    %2701 = vmatpush1.msra.mxu0 0.0
    %2702 = vmatprep.subr.mxu0 0.0
    %2703 = vmatpush1.msra.mxu0 0.0
    %2704 = vmatprep.subr.mxu0 0.0
    %2705 = vmatpush1.msra.mxu0 0.0
    %2706 = vmatprep.subr.mxu0 0.0
    %2707 = vmatpush1.msra.mxu0 0.0
    %2708 = vmatprep.subr.mxu0 0.0
    %2709 = vmatpush1.msra.mxu0 0.0
    %2710 = vmatprep.subr.mxu0 0.0
    %2711 = vmatpush1.msra.mxu0 0.0
    %2712 = vmatprep.subr.mxu0 0.0
    %2713 = vmatpush1.msra.mxu0 0.0
    %2714 = vmatprep.subr.mxu0 0.0
    %2715 = vmatpush1.msra.mxu0 0.0
    %2716 = vmatprep.subr.mxu0 0.0
    %2717 = vmatpush1.msra.mxu0 0.0
    %2718 = vmatprep.subr.mxu0 0.0
    %2719 = vmatpush1.msra.mxu0 0.0
    %2720 = vmatprep.subr.mxu0 0.0
    %2721 = vmatpush1.msra.mxu0 0.0
    %2722 = vmatprep.subr.mxu0 0.0
    %2723 = vmatpush1.msra.mxu0 0.0
    %2724 = vmatprep.subr.mxu0 0.0
    %2725 = vmatpush1.msra.mxu0 0.0
    %2726 = vmatprep.subr.mxu0 0.0
    %2727 = vmatpush1.msra.mxu0 0.0
    %2728 = vmatprep.subr.mxu0 0.0
    %2729 = vmatpush1.msra.mxu0 0.0
    %2730 = vmatprep.mubr.f32.mxu0 0.0
    %2731 = vmatmul.mubr.f32.gmra.mrb[0].mxu0 %v2664
    %v2732 = vpop.f32.mrb[0].mxu0
    %v2733 = vadd.f32 0.0, %v2732
    %v2734 = vpop.f32.mrb[0].mxu0
    %2735 = vdwg.mxu0
    %2736 = vrot.lane.b32.xlu0 %v1936, 88
    %v2737 = vpop.permute.xlu0 %2736
    %v2740 = vsel %vm257, %v2647, 0
    %2742 = vmatprep.subr.mxu0 0.0
    %2743 = vmatpush1.msra.mxu0 %v2737
    %2744 = vmatprep.subr.mxu0 0.0
    %2745 = vmatpush1.msra.mxu0 0.0
    %2746 = vmatprep.subr.mxu0 0.0
    %2747 = vmatpush1.msra.mxu0 0.0
    %2748 = vmatprep.subr.mxu0 0.0
    %2749 = vmatpush1.msra.mxu0 0.0
    %2750 = vmatprep.subr.mxu0 0.0
    %2751 = vmatpush1.msra.mxu0 0.0
    %2752 = vmatprep.subr.mxu0 0.0
    %2753 = vmatpush1.msra.mxu0 0.0
    %2754 = vmatprep.subr.mxu0 0.0
    %2755 = vmatpush1.msra.mxu0 0.0
    %2756 = vmatprep.subr.mxu0 0.0
    %2757 = vmatpush1.msra.mxu0 0.0
    %2758 = vmatprep.subr.mxu0 0.0
    %2759 = vmatpush1.msra.mxu0 0.0
    %2760 = vmatprep.subr.mxu0 0.0
    %2761 = vmatpush1.msra.mxu0 0.0
    %2762 = vmatprep.subr.mxu0 0.0
    %2763 = vmatpush1.msra.mxu0 0.0
    %2764 = vmatprep.subr.mxu0 0.0
    %2765 = vmatpush1.msra.mxu0 0.0
    %2766 = vmatprep.subr.mxu0 0.0
    %2767 = vmatpush1.msra.mxu0 0.0
    %2768 = vmatprep.subr.mxu0 0.0
    %2769 = vmatpush1.msra.mxu0 0.0
    %2770 = vmatprep.subr.mxu0 0.0
    %2771 = vmatpush1.msra.mxu0 0.0
    %2772 = vmatprep.subr.mxu0 0.0
    %2773 = vmatpush1.msra.mxu0 0.0
    %2774 = vmatprep.subr.mxu0 0.0
    %2775 = vmatpush1.msra.mxu0 0.0
    %2776 = vmatprep.subr.mxu0 0.0
    %2777 = vmatpush1.msra.mxu0 0.0
    %2778 = vmatprep.subr.mxu0 0.0
    %2779 = vmatpush1.msra.mxu0 0.0
    %2780 = vmatprep.subr.mxu0 0.0
    %2781 = vmatpush1.msra.mxu0 0.0
    %2782 = vmatprep.subr.mxu0 0.0
    %2783 = vmatpush1.msra.mxu0 0.0
    %2784 = vmatprep.subr.mxu0 0.0
    %2785 = vmatpush1.msra.mxu0 0.0
    %2786 = vmatprep.subr.mxu0 0.0
    %2787 = vmatpush1.msra.mxu0 0.0
    %2788 = vmatprep.subr.mxu0 0.0
    %2789 = vmatpush1.msra.mxu0 0.0
    %2790 = vmatprep.subr.mxu0 0.0
    %2791 = vmatpush1.msra.mxu0 0.0
    %2792 = vmatprep.subr.mxu0 0.0
    %2793 = vmatpush1.msra.mxu0 0.0
    %2794 = vmatprep.subr.mxu0 0.0
    %2795 = vmatpush1.msra.mxu0 0.0
    %2796 = vmatprep.subr.mxu0 0.0
    %2797 = vmatpush1.msra.mxu0 0.0
    %2798 = vmatprep.subr.mxu0 0.0
    %2799 = vmatpush1.msra.mxu0 0.0
    %2800 = vmatprep.subr.mxu0 0.0
    %2801 = vmatpush1.msra.mxu0 0.0
    %2802 = vmatprep.subr.mxu0 0.0
    %2803 = vmatpush1.msra.mxu0 0.0
    %2804 = vmatprep.subr.mxu0 0.0
    %2805 = vmatpush1.msra.mxu0 0.0
    %2806 = vmatprep.mubr.f32.mxu0 0.0
    %2807 = vmatmul.mubr.f32.gmra.mrb[0].mxu0 %v2740
    %v2808 = vpop.f32.mrb[0].mxu0
    %v2809 = vadd.f32 0.0, %v2808
    %v2810 = vpop.f32.mrb[0].mxu0
    %2811 = vdwg.mxu0
    %2812 = vrot.lane.b32.xlu0 %v1936, 80
    %v2813 = vpop.permute.xlu0 %2812
    %v2816 = vsel %vm257, %v2649, 0
    %2818 = vmatprep.subr.mxu0 0.0
    %2819 = vmatpush1.msra.mxu0 %v2813
    %2820 = vmatprep.subr.mxu0 0.0
    %2821 = vmatpush1.msra.mxu0 0.0
    %2822 = vmatprep.subr.mxu0 0.0
    %2823 = vmatpush1.msra.mxu0 0.0
    %2824 = vmatprep.subr.mxu0 0.0
    %2825 = vmatpush1.msra.mxu0 0.0
    %2826 = vmatprep.subr.mxu0 0.0
    %2827 = vmatpush1.msra.mxu0 0.0
    %2828 = vmatprep.subr.mxu0 0.0
    %2829 = vmatpush1.msra.mxu0 0.0
    %2830 = vmatprep.subr.mxu0 0.0
    %2831 = vmatpush1.msra.mxu0 0.0
    %2832 = vmatprep.subr.mxu0 0.0
    %2833 = vmatpush1.msra.mxu0 0.0
    %2834 = vmatprep.subr.mxu0 0.0
    %2835 = vmatpush1.msra.mxu0 0.0
    %2836 = vmatprep.subr.mxu0 0.0
    %2837 = vmatpush1.msra.mxu0 0.0
    %2838 = vmatprep.subr.mxu0 0.0
    %2839 = vmatpush1.msra.mxu0 0.0
    %2840 = vmatprep.subr.mxu0 0.0
    %2841 = vmatpush1.msra.mxu0 0.0
    %2842 = vmatprep.subr.mxu0 0.0
    %2843 = vmatpush1.msra.mxu0 0.0
    %2844 = vmatprep.subr.mxu0 0.0
    %2845 = vmatpush1.msra.mxu0 0.0
    %2846 = vmatprep.subr.mxu0 0.0
    %2847 = vmatpush1.msra.mxu0 0.0
    %2848 = vmatprep.subr.mxu0 0.0
    %2849 = vmatpush1.msra.mxu0 0.0
    %2850 = vmatprep.subr.mxu0 0.0
    %2851 = vmatpush1.msra.mxu0 0.0
    %2852 = vmatprep.subr.mxu0 0.0
    %2853 = vmatpush1.msra.mxu0 0.0
    %2854 = vmatprep.subr.mxu0 0.0
    %2855 = vmatpush1.msra.mxu0 0.0
    %2856 = vmatprep.subr.mxu0 0.0
    %2857 = vmatpush1.msra.mxu0 0.0
    %2858 = vmatprep.subr.mxu0 0.0
    %2859 = vmatpush1.msra.mxu0 0.0
    %2860 = vmatprep.subr.mxu0 0.0
    %2861 = vmatpush1.msra.mxu0 0.0
    %2862 = vmatprep.subr.mxu0 0.0
    %2863 = vmatpush1.msra.mxu0 0.0
    %2864 = vmatprep.subr.mxu0 0.0
    %2865 = vmatpush1.msra.mxu0 0.0
    %2866 = vmatprep.subr.mxu0 0.0
    %2867 = vmatpush1.msra.mxu0 0.0
    %2868 = vmatprep.subr.mxu0 0.0
    %2869 = vmatpush1.msra.mxu0 0.0
    %2870 = vmatprep.subr.mxu0 0.0
    %2871 = vmatpush1.msra.mxu0 0.0
    %2872 = vmatprep.subr.mxu0 0.0
    %2873 = vmatpush1.msra.mxu0 0.0
    %2874 = vmatprep.subr.mxu0 0.0
    %2875 = vmatpush1.msra.mxu0 0.0
    %2876 = vmatprep.subr.mxu0 0.0
    %2877 = vmatpush1.msra.mxu0 0.0
    %2878 = vmatprep.subr.mxu0 0.0
    %2879 = vmatpush1.msra.mxu0 0.0
    %2880 = vmatprep.subr.mxu0 0.0
    %2881 = vmatpush1.msra.mxu0 0.0
    %2882 = vmatprep.mubr.f32.mxu0 0.0
    %2883 = vmatmul.mubr.f32.gmra.mrb[0].mxu0 %v2816
    %v2884 = vpop.f32.mrb[0].mxu0
    %v2885 = vadd.f32 0.0, %v2884
    %v2886 = vpop.f32.mrb[0].mxu0
    %2887 = vdwg.mxu0
    %2888 = vrot.lane.b32.xlu0 %v1936, 72
    %v2889 = vpop.permute.xlu0 %2888
    %v2892 = vsel %vm257, %v2651, 0
    %2894 = vmatprep.subr.mxu0 0.0
    %2895 = vmatpush1.msra.mxu0 %v2889
    %2896 = vmatprep.subr.mxu0 0.0
    %2897 = vmatpush1.msra.mxu0 0.0
    %2898 = vmatprep.subr.mxu0 0.0
    %2899 = vmatpush1.msra.mxu0 0.0
    %2900 = vmatprep.subr.mxu0 0.0
    %2901 = vmatpush1.msra.mxu0 0.0
    %2902 = vmatprep.subr.mxu0 0.0
    %2903 = vmatpush1.msra.mxu0 0.0
    %2904 = vmatprep.subr.mxu0 0.0
    %2905 = vmatpush1.msra.mxu0 0.0
    %2906 = vmatprep.subr.mxu0 0.0
    %2907 = vmatpush1.msra.mxu0 0.0
    %2908 = vmatprep.subr.mxu0 0.0
    %2909 = vmatpush1.msra.mxu0 0.0
    %2910 = vmatprep.subr.mxu0 0.0
    %2911 = vmatpush1.msra.mxu0 0.0
    %2912 = vmatprep.subr.mxu0 0.0
    %2913 = vmatpush1.msra.mxu0 0.0
    %2914 = vmatprep.subr.mxu0 0.0
    %2915 = vmatpush1.msra.mxu0 0.0
    %2916 = vmatprep.subr.mxu0 0.0
    %2917 = vmatpush1.msra.mxu0 0.0
    %2918 = vmatprep.subr.mxu0 0.0
    %2919 = vmatpush1.msra.mxu0 0.0
    %2920 = vmatprep.subr.mxu0 0.0
    %2921 = vmatpush1.msra.mxu0 0.0
    %2922 = vmatprep.subr.mxu0 0.0
    %2923 = vmatpush1.msra.mxu0 0.0
    %2924 = vmatprep.subr.mxu0 0.0
    %2925 = vmatpush1.msra.mxu0 0.0
    %2926 = vmatprep.subr.mxu0 0.0
    %2927 = vmatpush1.msra.mxu0 0.0
    %2928 = vmatprep.subr.mxu0 0.0
    %2929 = vmatpush1.msra.mxu0 0.0
    %2930 = vmatprep.subr.mxu0 0.0
    %2931 = vmatpush1.msra.mxu0 0.0
    %2932 = vmatprep.subr.mxu0 0.0
    %2933 = vmatpush1.msra.mxu0 0.0
    %2934 = vmatprep.subr.mxu0 0.0
    %2935 = vmatpush1.msra.mxu0 0.0
    %2936 = vmatprep.subr.mxu0 0.0
    %2937 = vmatpush1.msra.mxu0 0.0
    %2938 = vmatprep.subr.mxu0 0.0
    %2939 = vmatpush1.msra.mxu0 0.0
    %2940 = vmatprep.subr.mxu0 0.0
    %2941 = vmatpush1.msra.mxu0 0.0
    %2942 = vmatprep.subr.mxu0 0.0
    %2943 = vmatpush1.msra.mxu0 0.0
    %2944 = vmatprep.subr.mxu0 0.0
    %2945 = vmatpush1.msra.mxu0 0.0
    %2946 = vmatprep.subr.mxu0 0.0
    %2947 = vmatpush1.msra.mxu0 0.0
    %2948 = vmatprep.subr.mxu0 0.0
    %2949 = vmatpush1.msra.mxu0 0.0
    %2950 = vmatprep.subr.mxu0 0.0
    %2951 = vmatpush1.msra.mxu0 0.0
    %2952 = vmatprep.subr.mxu0 0.0
    %2953 = vmatpush1.msra.mxu0 0.0
    %2954 = vmatprep.subr.mxu0 0.0
    %2955 = vmatpush1.msra.mxu0 0.0
    %2956 = vmatprep.subr.mxu0 0.0
    %2957 = vmatpush1.msra.mxu0 0.0
    %2958 = vmatprep.mubr.f32.mxu0 0.0
    %2959 = vmatmul.mubr.f32.gmra.mrb[0].mxu0 %v2892
    %v2960 = vpop.f32.mrb[0].mxu0
    %v2961 = vadd.f32 0.0, %v2960
    %v2962 = vpop.f32.mrb[0].mxu0
    %2963 = vdwg.mxu0
    %2965 = vrot.lane.b32.xlu0 %v2809, 8
    %v2966 = vpop.permute.xlu0 %2965
    %2969 = vrot.lane.b32.xlu0 %v2885, 16
    %v2970 = vpop.permute.xlu0 %2969
    %2973 = vrot.lane.b32.xlu0 %v2961, 24
    %v2974 = vpop.permute.xlu0 %2973
    %v2976 = vsel %vm257, %v2733, %v2966
    %v2977 = vsel %vm1292, %v2976, %v2970
    %v2978 = vsel %vm1294, %v2977, %v2974
    %2979 = vrot.lane.b32.xlu0 %v1941, 96
    %v2980 = vpop.permute.xlu0 %2979
    %v2983 = vsel %vm257, %v2653, 0
    %2985 = vmatprep.subr.mxu0 0.0
    %2986 = vmatpush1.msra.mxu0 %v2980
    %2987 = vmatprep.subr.mxu0 0.0
    %2988 = vmatpush1.msra.mxu0 0.0
    %2989 = vmatprep.subr.mxu0 0.0
    %2990 = vmatpush1.msra.mxu0 0.0
    %2991 = vmatprep.subr.mxu0 0.0
    %2992 = vmatpush1.msra.mxu0 0.0
    %2993 = vmatprep.subr.mxu0 0.0
    %2994 = vmatpush1.msra.mxu0 0.0
    %2995 = vmatprep.subr.mxu0 0.0
    %2996 = vmatpush1.msra.mxu0 0.0
    %2997 = vmatprep.subr.mxu0 0.0
    %2998 = vmatpush1.msra.mxu0 0.0
    %2999 = vmatprep.subr.mxu0 0.0
    %3000 = vmatpush1.msra.mxu0 0.0
    %3001 = vmatprep.subr.mxu0 0.0
    %3002 = vmatpush1.msra.mxu0 0.0
    %3003 = vmatprep.subr.mxu0 0.0
    %3004 = vmatpush1.msra.mxu0 0.0
    %3005 = vmatprep.subr.mxu0 0.0
    %3006 = vmatpush1.msra.mxu0 0.0
    %3007 = vmatprep.subr.mxu0 0.0
    %3008 = vmatpush1.msra.mxu0 0.0
    %3009 = vmatprep.subr.mxu0 0.0
    %3010 = vmatpush1.msra.mxu0 0.0
    %3011 = vmatprep.subr.mxu0 0.0
    %3012 = vmatpush1.msra.mxu0 0.0
    %3013 = vmatprep.subr.mxu0 0.0
    %3014 = vmatpush1.msra.mxu0 0.0
    %3015 = vmatprep.subr.mxu0 0.0
    %3016 = vmatpush1.msra.mxu0 0.0
    %3017 = vmatprep.subr.mxu0 0.0
    %3018 = vmatpush1.msra.mxu0 0.0
    %3019 = vmatprep.subr.mxu0 0.0
    %3020 = vmatpush1.msra.mxu0 0.0
    %3021 = vmatprep.subr.mxu0 0.0
    %3022 = vmatpush1.msra.mxu0 0.0
    %3023 = vmatprep.subr.mxu0 0.0
    %3024 = vmatpush1.msra.mxu0 0.0
    %3025 = vmatprep.subr.mxu0 0.0
    %3026 = vmatpush1.msra.mxu0 0.0
    %3027 = vmatprep.subr.mxu0 0.0
    %3028 = vmatpush1.msra.mxu0 0.0
    %3029 = vmatprep.subr.mxu0 0.0
    %3030 = vmatpush1.msra.mxu0 0.0
    %3031 = vmatprep.subr.mxu0 0.0
    %3032 = vmatpush1.msra.mxu0 0.0
    %3033 = vmatprep.subr.mxu0 0.0
    %3034 = vmatpush1.msra.mxu0 0.0
    %3035 = vmatprep.subr.mxu0 0.0
    %3036 = vmatpush1.msra.mxu0 0.0
    %3037 = vmatprep.subr.mxu0 0.0
    %3038 = vmatpush1.msra.mxu0 0.0
    %3039 = vmatprep.subr.mxu0 0.0
    %3040 = vmatpush1.msra.mxu0 0.0
    %3041 = vmatprep.subr.mxu0 0.0
    %3042 = vmatpush1.msra.mxu0 0.0
    %3043 = vmatprep.subr.mxu0 0.0
    %3044 = vmatpush1.msra.mxu0 0.0
    %3045 = vmatprep.subr.mxu0 0.0
    %3046 = vmatpush1.msra.mxu0 0.0
    %3047 = vmatprep.subr.mxu0 0.0
    %3048 = vmatpush1.msra.mxu0 0.0
    %3049 = vmatprep.mubr.f32.mxu0 0.0
    %3050 = vmatmul.mubr.f32.gmra.mrb[0].mxu0 %v2983
    %v3051 = vpop.f32.mrb[0].mxu0
    %v3052 = vadd.f32 0.0, %v3051
    %v3053 = vpop.f32.mrb[0].mxu0
    %3054 = vdwg.mxu0
    %3055 = vrot.lane.b32.xlu0 %v1941, 88
    %v3056 = vpop.permute.xlu0 %3055
    %v3059 = vsel %vm257, %v2655, 0
    %3061 = vmatprep.subr.mxu0 0.0
    %3062 = vmatpush1.msra.mxu0 %v3056
    %3063 = vmatprep.subr.mxu0 0.0
    %3064 = vmatpush1.msra.mxu0 0.0
    %3065 = vmatprep.subr.mxu0 0.0
    %3066 = vmatpush1.msra.mxu0 0.0
    %3067 = vmatprep.subr.mxu0 0.0
    %3068 = vmatpush1.msra.mxu0 0.0
    %3069 = vmatprep.subr.mxu0 0.0
    %3070 = vmatpush1.msra.mxu0 0.0
    %3071 = vmatprep.subr.mxu0 0.0
    %3072 = vmatpush1.msra.mxu0 0.0
    %3073 = vmatprep.subr.mxu0 0.0
    %3074 = vmatpush1.msra.mxu0 0.0
    %3075 = vmatprep.subr.mxu0 0.0
    %3076 = vmatpush1.msra.mxu0 0.0
    %3077 = vmatprep.subr.mxu0 0.0
    %3078 = vmatpush1.msra.mxu0 0.0
    %3079 = vmatprep.subr.mxu0 0.0
    %3080 = vmatpush1.msra.mxu0 0.0
    %3081 = vmatprep.subr.mxu0 0.0
    %3082 = vmatpush1.msra.mxu0 0.0
    %3083 = vmatprep.subr.mxu0 0.0
    %3084 = vmatpush1.msra.mxu0 0.0
    %3085 = vmatprep.subr.mxu0 0.0
    %3086 = vmatpush1.msra.mxu0 0.0
    %3087 = vmatprep.subr.mxu0 0.0
    %3088 = vmatpush1.msra.mxu0 0.0
    %3089 = vmatprep.subr.mxu0 0.0
    %3090 = vmatpush1.msra.mxu0 0.0
    %3091 = vmatprep.subr.mxu0 0.0
    %3092 = vmatpush1.msra.mxu0 0.0
    %3093 = vmatprep.subr.mxu0 0.0
    %3094 = vmatpush1.msra.mxu0 0.0
    %3095 = vmatprep.subr.mxu0 0.0
    %3096 = vmatpush1.msra.mxu0 0.0
    %3097 = vmatprep.subr.mxu0 0.0
    %3098 = vmatpush1.msra.mxu0 0.0
    %3099 = vmatprep.subr.mxu0 0.0
    %3100 = vmatpush1.msra.mxu0 0.0
    %3101 = vmatprep.subr.mxu0 0.0
    %3102 = vmatpush1.msra.mxu0 0.0
    %3103 = vmatprep.subr.mxu0 0.0
    %3104 = vmatpush1.msra.mxu0 0.0
    %3105 = vmatprep.subr.mxu0 0.0
    %3106 = vmatpush1.msra.mxu0 0.0
    %3107 = vmatprep.subr.mxu0 0.0
    %3108 = vmatpush1.msra.mxu0 0.0
    %3109 = vmatprep.subr.mxu0 0.0
    %3110 = vmatpush1.msra.mxu0 0.0
    %3111 = vmatprep.subr.mxu0 0.0
    %3112 = vmatpush1.msra.mxu0 0.0
    %3113 = vmatprep.subr.mxu0 0.0
    %3114 = vmatpush1.msra.mxu0 0.0
    %3115 = vmatprep.subr.mxu0 0.0
    %3116 = vmatpush1.msra.mxu0 0.0
    %3117 = vmatprep.subr.mxu0 0.0
    %3118 = vmatpush1.msra.mxu0 0.0
    %3119 = vmatprep.subr.mxu0 0.0
    %3120 = vmatpush1.msra.mxu0 0.0
    %3121 = vmatprep.subr.mxu0 0.0
    %3122 = vmatpush1.msra.mxu0 0.0
    %3123 = vmatprep.subr.mxu0 0.0
    %3124 = vmatpush1.msra.mxu0 0.0
    %3125 = vmatprep.mubr.f32.mxu0 0.0
    %3126 = vmatmul.mubr.f32.gmra.mrb[0].mxu0 %v3059
    %v3127 = vpop.f32.mrb[0].mxu0
    %v3128 = vadd.f32 0.0, %v3127
    %v3129 = vpop.f32.mrb[0].mxu0
    %3130 = vdwg.mxu0
    %3131 = vrot.lane.b32.xlu0 %v1941, 80
    %v3132 = vpop.permute.xlu0 %3131
    %v3135 = vsel %vm257, %v2657, 0
    %3137 = vmatprep.subr.mxu0 0.0
    %3138 = vmatpush1.msra.mxu0 %v3132
    %3139 = vmatprep.subr.mxu0 0.0
    %3140 = vmatpush1.msra.mxu0 0.0
    %3141 = vmatprep.subr.mxu0 0.0
    %3142 = vmatpush1.msra.mxu0 0.0
    %3143 = vmatprep.subr.mxu0 0.0
    %3144 = vmatpush1.msra.mxu0 0.0
    %3145 = vmatprep.subr.mxu0 0.0
    %3146 = vmatpush1.msra.mxu0 0.0
    %3147 = vmatprep.subr.mxu0 0.0
    %3148 = vmatpush1.msra.mxu0 0.0
    %3149 = vmatprep.subr.mxu0 0.0
    %3150 = vmatpush1.msra.mxu0 0.0
    %3151 = vmatprep.subr.mxu0 0.0
    %3152 = vmatpush1.msra.mxu0 0.0
    %3153 = vmatprep.subr.mxu0 0.0
    %3154 = vmatpush1.msra.mxu0 0.0
    %3155 = vmatprep.subr.mxu0 0.0
    %3156 = vmatpush1.msra.mxu0 0.0
    %3157 = vmatprep.subr.mxu0 0.0
    %3158 = vmatpush1.msra.mxu0 0.0
    %3159 = vmatprep.subr.mxu0 0.0
    %3160 = vmatpush1.msra.mxu0 0.0
    %3161 = vmatprep.subr.mxu0 0.0
    %3162 = vmatpush1.msra.mxu0 0.0
    %3163 = vmatprep.subr.mxu0 0.0
    %3164 = vmatpush1.msra.mxu0 0.0
    %3165 = vmatprep.subr.mxu0 0.0
    %3166 = vmatpush1.msra.mxu0 0.0
    %3167 = vmatprep.subr.mxu0 0.0
    %3168 = vmatpush1.msra.mxu0 0.0
    %3169 = vmatprep.subr.mxu0 0.0
    %3170 = vmatpush1.msra.mxu0 0.0
    %3171 = vmatprep.subr.mxu0 0.0
    %3172 = vmatpush1.msra.mxu0 0.0
    %3173 = vmatprep.subr.mxu0 0.0
    %3174 = vmatpush1.msra.mxu0 0.0
    %3175 = vmatprep.subr.mxu0 0.0
    %3176 = vmatpush1.msra.mxu0 0.0
    %3177 = vmatprep.subr.mxu0 0.0
    %3178 = vmatpush1.msra.mxu0 0.0
    %3179 = vmatprep.subr.mxu0 0.0
    %3180 = vmatpush1.msra.mxu0 0.0
    %3181 = vmatprep.subr.mxu0 0.0
    %3182 = vmatpush1.msra.mxu0 0.0
    %3183 = vmatprep.subr.mxu0 0.0
    %3184 = vmatpush1.msra.mxu0 0.0
    %3185 = vmatprep.subr.mxu0 0.0
    %3186 = vmatpush1.msra.mxu0 0.0
    %3187 = vmatprep.subr.mxu0 0.0
    %3188 = vmatpush1.msra.mxu0 0.0
    %3189 = vmatprep.subr.mxu0 0.0
    %3190 = vmatpush1.msra.mxu0 0.0
    %3191 = vmatprep.subr.mxu0 0.0
    %3192 = vmatpush1.msra.mxu0 0.0
    %3193 = vmatprep.subr.mxu0 0.0
    %3194 = vmatpush1.msra.mxu0 0.0
    %3195 = vmatprep.subr.mxu0 0.0
    %3196 = vmatpush1.msra.mxu0 0.0
    %3197 = vmatprep.subr.mxu0 0.0
    %3198 = vmatpush1.msra.mxu0 0.0
    %3199 = vmatprep.subr.mxu0 0.0
    %3200 = vmatpush1.msra.mxu0 0.0
    %3201 = vmatprep.mubr.f32.mxu0 0.0
    %3202 = vmatmul.mubr.f32.gmra.mrb[0].mxu0 %v3135
    %v3203 = vpop.f32.mrb[0].mxu0
    %v3204 = vadd.f32 0.0, %v3203
    %v3205 = vpop.f32.mrb[0].mxu0
    %3206 = vdwg.mxu0
    %3207 = vrot.lane.b32.xlu0 %v1941, 72
    %v3208 = vpop.permute.xlu0 %3207
    %v3211 = vsel %vm257, %v2659, 0
    %3213 = vmatprep.subr.mxu0 0.0
    %3214 = vmatpush1.msra.mxu0 %v3208
    %3215 = vmatprep.subr.mxu0 0.0
    %3216 = vmatpush1.msra.mxu0 0.0
    %3217 = vmatprep.subr.mxu0 0.0
    %3218 = vmatpush1.msra.mxu0 0.0
    %3219 = vmatprep.subr.mxu0 0.0
    %3220 = vmatpush1.msra.mxu0 0.0
    %3221 = vmatprep.subr.mxu0 0.0
    %3222 = vmatpush1.msra.mxu0 0.0
    %3223 = vmatprep.subr.mxu0 0.0
    %3224 = vmatpush1.msra.mxu0 0.0
    %3225 = vmatprep.subr.mxu0 0.0
    %3226 = vmatpush1.msra.mxu0 0.0
    %3227 = vmatprep.subr.mxu0 0.0
    %3228 = vmatpush1.msra.mxu0 0.0
    %3229 = vmatprep.subr.mxu0 0.0
    %3230 = vmatpush1.msra.mxu0 0.0
    %3231 = vmatprep.subr.mxu0 0.0
    %3232 = vmatpush1.msra.mxu0 0.0
    %3233 = vmatprep.subr.mxu0 0.0
    %3234 = vmatpush1.msra.mxu0 0.0
    %3235 = vmatprep.subr.mxu0 0.0
    %3236 = vmatpush1.msra.mxu0 0.0
    %3237 = vmatprep.subr.mxu0 0.0
    %3238 = vmatpush1.msra.mxu0 0.0
    %3239 = vmatprep.subr.mxu0 0.0
    %3240 = vmatpush1.msra.mxu0 0.0
    %3241 = vmatprep.subr.mxu0 0.0
    %3242 = vmatpush1.msra.mxu0 0.0
    %3243 = vmatprep.subr.mxu0 0.0
    %3244 = vmatpush1.msra.mxu0 0.0
    %3245 = vmatprep.subr.mxu0 0.0
    %3246 = vmatpush1.msra.mxu0 0.0
    %3247 = vmatprep.subr.mxu0 0.0
    %3248 = vmatpush1.msra.mxu0 0.0
    %3249 = vmatprep.subr.mxu0 0.0
    %3250 = vmatpush1.msra.mxu0 0.0
    %3251 = vmatprep.subr.mxu0 0.0
    %3252 = vmatpush1.msra.mxu0 0.0
    %3253 = vmatprep.subr.mxu0 0.0
    %3254 = vmatpush1.msra.mxu0 0.0
    %3255 = vmatprep.subr.mxu0 0.0
    %3256 = vmatpush1.msra.mxu0 0.0
    %3257 = vmatprep.subr.mxu0 0.0
    %3258 = vmatpush1.msra.mxu0 0.0
    %3259 = vmatprep.subr.mxu0 0.0
    %3260 = vmatpush1.msra.mxu0 0.0
    %3261 = vmatprep.subr.mxu0 0.0
    %3262 = vmatpush1.msra.mxu0 0.0
    %3263 = vmatprep.subr.mxu0 0.0
    %3264 = vmatpush1.msra.mxu0 0.0
    %3265 = vmatprep.subr.mxu0 0.0
    %3266 = vmatpush1.msra.mxu0 0.0
    %3267 = vmatprep.subr.mxu0 0.0
    %3268 = vmatpush1.msra.mxu0 0.0
    %3269 = vmatprep.subr.mxu0 0.0
    %3270 = vmatpush1.msra.mxu0 0.0
    %3271 = vmatprep.subr.mxu0 0.0
    %3272 = vmatpush1.msra.mxu0 0.0
    %3273 = vmatprep.subr.mxu0 0.0
    %3274 = vmatpush1.msra.mxu0 0.0
    %3275 = vmatprep.subr.mxu0 0.0
    %3276 = vmatpush1.msra.mxu0 0.0
    %3277 = vmatprep.mubr.f32.mxu0 0.0
    %3278 = vmatmul.mubr.f32.gmra.mrb[0].mxu0 %v3211
    %v3279 = vpop.f32.mrb[0].mxu0
    %v3280 = vadd.f32 0.0, %v3279
    %v3281 = vpop.f32.mrb[0].mxu0
    %3282 = vdwg.mxu0
    %3284 = vrot.lane.b32.xlu0 %v3128, 8
    %v3285 = vpop.permute.xlu0 %3284
    %3288 = vrot.lane.b32.xlu0 %v3204, 16
    %v3289 = vpop.permute.xlu0 %3288
    %3292 = vrot.lane.b32.xlu0 %v3280, 24
    %v3293 = vpop.permute.xlu0 %3292
    %v3295 = vsel %vm257, %v3052, %v3285
    %v3296 = vsel %vm1292, %v3295, %v3289
    %v3297 = vsel %vm1294, %v3296, %v3293
    %3298 = vst.msk [vmem:[%s22] sm:$0xff] %vm257, %v2645
    %3299 = vst.msk [vmem:[%s22 + $0x8] sm:$0xff] %vm257, %v2647
    %3300 = vst.msk [vmem:[%s22 + $0x10] sm:$0xff] %vm257, %v2649
    %3301 = vst.msk [vmem:[%s22 + $0x18] sm:$0xff] %vm257, %v2651
    %3302 = vst.msk [vmem:[%s22 + $0x20] sm:$0xff] %vm257, %v2653
    %3303 = vst.msk [vmem:[%s22 + $0x28] sm:$0xff] %vm257, %v2655
    %3304 = vst.msk [vmem:[%s22 + $0x30] sm:$0xff] %vm257, %v2657
    %3305 = vst.msk [vmem:[%s22 + $0x38] sm:$0xff] %vm257, %v2659
    %v3306 = vld [vmem:[#allocation10] sm:$0xff]
    %v3307 = vld [vmem:[#allocation10 + $0x8] sm:$0xff]
    %v3308 = vld [vmem:[#allocation10 + $0x10] sm:$0xff]
    %v3309 = vld [vmem:[#allocation10 + $0x18] sm:$0xff]
    %v3310 = vld [vmem:[%s13] sm:$0x1]
    %v3312 = vlaneseq
    %v3313 = vshrl.u32 %v3312, 7
    %v3314 = vsub.s32 0, %v3313
    %v3315 = vrot.slane %v3310, %v3314
    %v3318 = vsel %vm170, %v2978, 0
    %v3321 = vsel %vm170, %v3297, 0
    %3323 = vmatprep.subr.mxu0 0.0
    %3324 = vmatpush1.msra.mxu0 %v3306
    %3325 = vmatprep.subr.mxu0 0.0
    %3326 = vmatpush1.msra.mxu0 %v3307
    %3327 = vmatprep.subr.mxu0 0.0
    %3328 = vmatpush1.msra.mxu0 %v3308
    %3329 = vmatprep.subr.mxu0 0.0
    %3330 = vmatpush1.msra.mxu0 %v3309
    %3331 = vmatprep.subr.mxu0 0.0
    %3332 = vmatpush1.msra.mxu0 0.0
    %3333 = vmatprep.subr.mxu0 0.0
    %3334 = vmatpush1.msra.mxu0 0.0
    %3335 = vmatprep.subr.mxu0 0.0
    %3336 = vmatpush1.msra.mxu0 0.0
    %3337 = vmatprep.subr.mxu0 0.0
    %3338 = vmatpush1.msra.mxu0 0.0
    %3339 = vmatprep.subr.mxu0 0.0
    %3340 = vmatpush1.msra.mxu0 0.0
    %3341 = vmatprep.subr.mxu0 0.0
    %3342 = vmatpush1.msra.mxu0 0.0
    %3343 = vmatprep.subr.mxu0 0.0
    %3344 = vmatpush1.msra.mxu0 0.0
    %3345 = vmatprep.subr.mxu0 0.0
    %3346 = vmatpush1.msra.mxu0 0.0
    %3347 = vmatprep.subr.mxu0 0.0
    %3348 = vmatpush1.msra.mxu0 0.0
    %3349 = vmatprep.subr.mxu0 0.0
    %3350 = vmatpush1.msra.mxu0 0.0
    %3351 = vmatprep.subr.mxu0 0.0
    %3352 = vmatpush1.msra.mxu0 0.0
    %3353 = vmatprep.subr.mxu0 0.0
    %3354 = vmatpush1.msra.mxu0 0.0
    %3355 = vmatprep.subr.mxu0 0.0
    %3356 = vmatpush1.msra.mxu0 0.0
    %3357 = vmatprep.subr.mxu0 0.0
    %3358 = vmatpush1.msra.mxu0 0.0
    %3359 = vmatprep.subr.mxu0 0.0
    %3360 = vmatpush1.msra.mxu0 0.0
    %3361 = vmatprep.subr.mxu0 0.0
    %3362 = vmatpush1.msra.mxu0 0.0
    %3363 = vmatprep.subr.mxu0 0.0
    %3364 = vmatpush1.msra.mxu0 0.0
    %3365 = vmatprep.subr.mxu0 0.0
    %3366 = vmatpush1.msra.mxu0 0.0
    %3367 = vmatprep.subr.mxu0 0.0
    %3368 = vmatpush1.msra.mxu0 0.0
    %3369 = vmatprep.subr.mxu0 0.0
    %3370 = vmatpush1.msra.mxu0 0.0
    %3371 = vmatprep.subr.mxu0 0.0
    %3372 = vmatpush1.msra.mxu0 0.0
    %3373 = vmatprep.subr.mxu0 0.0
    %3374 = vmatpush1.msra.mxu0 0.0
    %3375 = vmatprep.subr.mxu0 0.0
    %3376 = vmatpush1.msra.mxu0 0.0
    %3377 = vmatprep.subr.mxu0 0.0
    %3378 = vmatpush1.msra.mxu0 0.0
    %3379 = vmatprep.subr.mxu0 0.0
    %3380 = vmatpush1.msra.mxu0 0.0
    %3381 = vmatprep.subr.mxu0 0.0
    %3382 = vmatpush1.msra.mxu0 0.0
    %3383 = vmatprep.subr.mxu0 0.0
    %3384 = vmatpush1.msra.mxu0 0.0
    %3385 = vmatprep.subr.mxu0 0.0
    %3386 = vmatpush1.msra.mxu0 0.0
    %3387 = vmatprep.mubr.f32.mxu0 0.0
    %3388 = vmatmul.mubr.f32.gmra.mrb[0].mxu0 %v3318
    %v3389 = vpop.f32.mrb[0].mxu0
    %v3390 = vadd.f32 %v3315, %v3389
    %v3391 = vpop.f32.mrb[0].mxu0
    %3392 = vmatprep.mubr.f32.mxu0 0.0
    %3393 = vmatmul.mubr.f32.gmra.mrb[0].mxu0 %v3321
    %v3394 = vpop.f32.mrb[0].mxu0
    %v3395 = vadd.f32 %v3315, %v3394
    %v3396 = vpop.f32.mrb[0].mxu0
    %3397 = vdwg.mxu0
    %v3398 = vadd.f32 %v1756, %v3390
    %v3399 = vadd.f32 %v1757, %v3395
    %v3400 = vld [vmem:[%s18 + $0x1] sm:$0x1]
    %v3401 = vld [vmem:[%s19 + $0x1] sm:$0x1]
    %v3402 = vsel %vm170, %v3398, 0.0
    %3403 = vadd.xlane.f32.xlu0 %v3402
    %v3404 = vpop.xlane.xlu0 %3403
    %v3405 = vsel %vm170, %v3399, 0.0
    %3406 = vadd.xlane.f32.xlu0 %v3405
    %v3407 = vpop.xlane.xlu0 %3406
    %v3408 = vmul.f32 %v3404, %v1725
    %v3409 = vmul.f32 %v3407, %v1725
    %v3410 = vsub.f32 %v3398, %v3408
    %v3411 = vsub.f32 %v3399, %v3409
    %v3412 = vmul.f32 %v3410, %v3410
    %v3413 = vmul.f32 %v3411, %v3411
    %v3414 = vsel %vm170, %v3412, 0.0
    %3415 = vadd.xlane.f32.xlu0 %v3414
    %v3416 = vpop.xlane.xlu0 %3415
    %v3417 = vsel %vm170, %v3413, 0.0
    %3418 = vadd.xlane.f32.xlu0 %v3417
    %v3419 = vpop.xlane.xlu0 %3418
    %v3420 = vmul.f32 %v3416, %v1725
    %v3421 = vmul.f32 %v3419, %v1725
    %v3422 = vadd.f32 %v3420, 1e-05
    %v3423 = vadd.f32 %v3421, 1e-05
    %v3424 = vrsqrt.pop %v3422
    %v3425 = vrsqrt.pop %v3423
    %v3426 = vmul.f32 %v3410, %v3424
    %v3427 = vmul.f32 %v3411, %v3425
    %v3428 = vlaneseq
    %v3429 = vshrl.u32 %v3428, 7
    %v3430 = vsub.s32 0, %v3429
    %v3431 = vrot.slane %v3400, %v3430
    %v3432 = vmul.f32 %v3426, %v3431
    %v3433 = vmul.f32 %v3427, %v3431
    %v3434 = vlaneseq
    %v3435 = vshrl.u32 %v3434, 7
    %v3436 = vsub.s32 0, %v3435
    %v3437 = vrot.slane %v3401, %v3436
    %v3438 = vadd.f32 %v3432, %v3437
    %v3439 = vadd.f32 %v3433, %v3437
    %v3440 = vld [vmem:[#allocation11] sm:$0xff]
    %v3441 = vld [vmem:[#allocation11 + $0x8] sm:$0xff]
    %v3442 = vld [vmem:[#allocation11 + $0x10] sm:$0xff]
    %v3443 = vld [vmem:[#allocation11 + $0x18] sm:$0xff]
    %v3444 = vld [vmem:[%s15] sm:$0x1]
    %v3446 = vlaneseq
    %v3447 = vshrl.u32 %v3446, 7
    %v3448 = vsub.s32 0, %v3447
    %v3449 = vrot.slane %v3444, %v3448
    %v3452 = vsel %vm170, %v3438, 0
    %v3455 = vsel %vm170, %v3439, 0
    %3457 = vmatprep.subr.mxu0 0.0
    %3458 = vmatpush1.msra.mxu0 %v3440
    %3459 = vmatprep.subr.mxu0 0.0
    %3460 = vmatpush1.msra.mxu0 %v3441
    %3461 = vmatprep.subr.mxu0 0.0
    %3462 = vmatpush1.msra.mxu0 %v3442
    %3463 = vmatprep.subr.mxu0 0.0
    %3464 = vmatpush1.msra.mxu0 %v3443
    %3465 = vmatprep.subr.mxu0 0.0
    %3466 = vmatpush1.msra.mxu0 0.0
    %3467 = vmatprep.subr.mxu0 0.0
    %3468 = vmatpush1.msra.mxu0 0.0
    %3469 = vmatprep.subr.mxu0 0.0
    %3470 = vmatpush1.msra.mxu0 0.0
    %3471 = vmatprep.subr.mxu0 0.0
    %3472 = vmatpush1.msra.mxu0 0.0
    %3473 = vmatprep.subr.mxu0 0.0
    %3474 = vmatpush1.msra.mxu0 0.0
    %3475 = vmatprep.subr.mxu0 0.0
    %3476 = vmatpush1.msra.mxu0 0.0
    %3477 = vmatprep.subr.mxu0 0.0
    %3478 = vmatpush1.msra.mxu0 0.0
    %3479 = vmatprep.subr.mxu0 0.0
    %3480 = vmatpush1.msra.mxu0 0.0
    %3481 = vmatprep.subr.mxu0 0.0
    %3482 = vmatpush1.msra.mxu0 0.0
    %3483 = vmatprep.subr.mxu0 0.0
    %3484 = vmatpush1.msra.mxu0 0.0
    %3485 = vmatprep.subr.mxu0 0.0
    %3486 = vmatpush1.msra.mxu0 0.0
    %3487 = vmatprep.subr.mxu0 0.0
    %3488 = vmatpush1.msra.mxu0 0.0
    %3489 = vmatprep.subr.mxu0 0.0
    %3490 = vmatpush1.msra.mxu0 0.0
    %3491 = vmatprep.subr.mxu0 0.0
    %3492 = vmatpush1.msra.mxu0 0.0
    %3493 = vmatprep.subr.mxu0 0.0
    %3494 = vmatpush1.msra.mxu0 0.0
    %3495 = vmatprep.subr.mxu0 0.0
    %3496 = vmatpush1.msra.mxu0 0.0
    %3497 = vmatprep.subr.mxu0 0.0
    %3498 = vmatpush1.msra.mxu0 0.0
    %3499 = vmatprep.subr.mxu0 0.0
    %3500 = vmatpush1.msra.mxu0 0.0
    %3501 = vmatprep.subr.mxu0 0.0
    %3502 = vmatpush1.msra.mxu0 0.0
    %3503 = vmatprep.subr.mxu0 0.0
    %3504 = vmatpush1.msra.mxu0 0.0
    %3505 = vmatprep.subr.mxu0 0.0
    %3506 = vmatpush1.msra.mxu0 0.0
    %3507 = vmatprep.subr.mxu0 0.0
    %3508 = vmatpush1.msra.mxu0 0.0
    %3509 = vmatprep.subr.mxu0 0.0
    %3510 = vmatpush1.msra.mxu0 0.0
    %3511 = vmatprep.subr.mxu0 0.0
    %3512 = vmatpush1.msra.mxu0 0.0
    %3513 = vmatprep.subr.mxu0 0.0
    %3514 = vmatpush1.msra.mxu0 0.0
    %3515 = vmatprep.subr.mxu0 0.0
    %3516 = vmatpush1.msra.mxu0 0.0
    %3517 = vmatprep.subr.mxu0 0.0
    %3518 = vmatpush1.msra.mxu0 0.0
    %3519 = vmatprep.subr.mxu0 0.0
    %3520 = vmatpush1.msra.mxu0 0.0
    %3521 = vmatprep.mubr.f32.mxu0 0.0
    %3522 = vmatmul.mubr.f32.gmra.mrb[0].mxu0 %v3452
    %v3523 = vpop.f32.mrb[0].mxu0
    %v3524 = vadd.f32 %v3449, %v3523
    %v3525 = vpop.f32.mrb[0].mxu0
    %3526 = vmatprep.mubr.f32.mxu0 0.0
    %3527 = vmatmul.mubr.f32.gmra.mrb[0].mxu0 %v3455
    %v3528 = vpop.f32.mrb[0].mxu0
    %v3529 = vadd.f32 %v3449, %v3528
    %v3530 = vpop.f32.mrb[0].mxu0
    %3531 = vdwg.mxu0
    %v3532 = vmax.f32 %v3524, 0.0
    %v3533 = vmax.f32 %v3529, 0.0
    %v3534 = vld [vmem:[%s16] sm:$0xff]
    %v3535 = vld [vmem:[%s16 + $0x8] sm:$0xff]
    %v3536 = vld [vmem:[%s16 + $0x10] sm:$0xff]
    %v3537 = vld [vmem:[%s16 + $0x18] sm:$0xff]
    %v3538 = vld [vmem:[%s16 + $0x20] sm:$0xff]
    %v3539 = vld [vmem:[%s16 + $0x28] sm:$0xff]
    %v3540 = vld [vmem:[%s16 + $0x30] sm:$0xff]
    %v3541 = vld [vmem:[%s16 + $0x38] sm:$0xff]
    %v3542 = vld [vmem:[%s17] sm:$0x1]
    %v3544 = vlaneseq
    %v3545 = vshrl.u32 %v3544, 7
    %v3546 = vsub.s32 0, %v3545
    %v3547 = vrot.slane %v3542, %v3546
    %vm3549 = vcmask 523264
    %v3551 = vsel %vm3549, %v3532, 0
    %v3554 = vsel %vm3549, %v3533, 0
    %3556 = vmatprep.subr.mxu0 0.0
    %3557 = vmatpush1.msra.mxu0 %v3534
    %3558 = vmatprep.subr.mxu0 0.0
    %3559 = vmatpush1.msra.mxu0 %v3535
    %3560 = vmatprep.subr.mxu0 0.0
    %3561 = vmatpush1.msra.mxu0 %v3536
    %3562 = vmatprep.subr.mxu0 0.0
    %3563 = vmatpush1.msra.mxu0 %v3537
    %3564 = vmatprep.subr.mxu0 0.0
    %3565 = vmatpush1.msra.mxu0 %v3538
    %3566 = vmatprep.subr.mxu0 0.0
    %3567 = vmatpush1.msra.mxu0 %v3539
    %3568 = vmatprep.subr.mxu0 0.0
    %3569 = vmatpush1.msra.mxu0 %v3540
    %3570 = vmatprep.subr.mxu0 0.0
    %3571 = vmatpush1.msra.mxu0 %v3541
    %3572 = vmatprep.subr.mxu0 0.0
    %3573 = vmatpush1.msra.mxu0 0.0
    %3574 = vmatprep.subr.mxu0 0.0
    %3575 = vmatpush1.msra.mxu0 0.0
    %3576 = vmatprep.subr.mxu0 0.0
    %3577 = vmatpush1.msra.mxu0 0.0
    %3578 = vmatprep.subr.mxu0 0.0
    %3579 = vmatpush1.msra.mxu0 0.0
    %3580 = vmatprep.subr.mxu0 0.0
    %3581 = vmatpush1.msra.mxu0 0.0
    %3582 = vmatprep.subr.mxu0 0.0
    %3583 = vmatpush1.msra.mxu0 0.0
    %3584 = vmatprep.subr.mxu0 0.0
    %3585 = vmatpush1.msra.mxu0 0.0
    %3586 = vmatprep.subr.mxu0 0.0
    %3587 = vmatpush1.msra.mxu0 0.0
    %3588 = vmatprep.subr.mxu0 0.0
    %3589 = vmatpush1.msra.mxu0 0.0
    %3590 = vmatprep.subr.mxu0 0.0
    %3591 = vmatpush1.msra.mxu0 0.0
    %3592 = vmatprep.subr.mxu0 0.0
    %3593 = vmatpush1.msra.mxu0 0.0
    %3594 = vmatprep.subr.mxu0 0.0
    %3595 = vmatpush1.msra.mxu0 0.0
    %3596 = vmatprep.subr.mxu0 0.0
    %3597 = vmatpush1.msra.mxu0 0.0
    %3598 = vmatprep.subr.mxu0 0.0
    %3599 = vmatpush1.msra.mxu0 0.0
    %3600 = vmatprep.subr.mxu0 0.0
    %3601 = vmatpush1.msra.mxu0 0.0
    %3602 = vmatprep.subr.mxu0 0.0
    %3603 = vmatpush1.msra.mxu0 0.0
    %3604 = vmatprep.subr.mxu0 0.0
    %3605 = vmatpush1.msra.mxu0 0.0
    %3606 = vmatprep.subr.mxu0 0.0
    %3607 = vmatpush1.msra.mxu0 0.0
    %3608 = vmatprep.subr.mxu0 0.0
    %3609 = vmatpush1.msra.mxu0 0.0
    %3610 = vmatprep.subr.mxu0 0.0
    %3611 = vmatpush1.msra.mxu0 0.0
    %3612 = vmatprep.subr.mxu0 0.0
    %3613 = vmatpush1.msra.mxu0 0.0
    %3614 = vmatprep.subr.mxu0 0.0
    %3615 = vmatpush1.msra.mxu0 0.0
    %3616 = vmatprep.subr.mxu0 0.0
    %3617 = vmatpush1.msra.mxu0 0.0
    %3618 = vmatprep.subr.mxu0 0.0
    %3619 = vmatpush1.msra.mxu0 0.0
    %3620 = vmatprep.mubr.f32.mxu0 0.0
    %3621 = vmatmul.mubr.f32.gmra.mrb[0].mxu0 %v3551
    %v3622 = vpop.f32.mrb[0].mxu0
    %v3623 = vadd.f32 %v3547, %v3622
    %v3624 = vpop.f32.mrb[0].mxu0
    %3625 = vmatprep.mubr.f32.mxu0 0.0
    %3626 = vmatmul.mubr.f32.gmra.mrb[0].mxu0 %v3554
    %v3627 = vpop.f32.mrb[0].mxu0
    %v3628 = vadd.f32 %v3547, %v3627
    %v3629 = vpop.f32.mrb[0].mxu0
    %3630 = vdwg.mxu0
    %v3631 = vadd.f32 %v3438, %v3623
    %v3632 = vadd.f32 %v3439, %v3628
    %v3633 = vld [vmem:[%s18 + $0x2] sm:$0x1]
    %v3634 = vld [vmem:[%s19 + $0x2] sm:$0x1]
    %v3635 = vsel %vm170, %v3631, 0.0
    %3636 = vadd.xlane.f32.xlu0 %v3635
    %v3637 = vpop.xlane.xlu0 %3636
    %v3638 = vsel %vm170, %v3632, 0.0
    %3639 = vadd.xlane.f32.xlu0 %v3638
    %v3640 = vpop.xlane.xlu0 %3639
    %v3641 = vmul.f32 %v3637, %v1725
    %v3642 = vmul.f32 %v3640, %v1725
    %v3643 = vsub.f32 %v3631, %v3641
    %v3644 = vsub.f32 %v3632, %v3642
    %v3645 = vmul.f32 %v3643, %v3643
    %v3646 = vmul.f32 %v3644, %v3644
    %v3647 = vsel %vm170, %v3645, 0.0
    %3648 = vadd.xlane.f32.xlu0 %v3647
    %v3649 = vpop.xlane.xlu0 %3648
    %v3650 = vsel %vm170, %v3646, 0.0
    %3651 = vadd.xlane.f32.xlu0 %v3650
    %v3652 = vpop.xlane.xlu0 %3651
    %v3653 = vmul.f32 %v3649, %v1725
    %v3654 = vmul.f32 %v3652, %v1725
    %v3655 = vadd.f32 %v3653, 1e-05
    %v3656 = vadd.f32 %v3654, 1e-05
    %v3657 = vrsqrt.pop %v3655
    %v3658 = vrsqrt.pop %v3656
    %v3659 = vmul.f32 %v3643, %v3657
    %v3660 = vmul.f32 %v3644, %v3658
    %v3661 = vlaneseq
    %v3662 = vshrl.u32 %v3661, 7
    %v3663 = vsub.s32 0, %v3662
    %v3664 = vrot.slane %v3633, %v3663
    %v3665 = vmul.f32 %v3659, %v3664
    %v3666 = vmul.f32 %v3660, %v3664
    %v3667 = vlaneseq
    %v3668 = vshrl.u32 %v3667, 7
    %v3669 = vsub.s32 0, %v3668
    %v3670 = vrot.slane %v3634, %v3669
    %v3671 = vadd.f32 %v3665, %v3670
    %v3672 = vadd.f32 %v3666, %v3670
    %3673 = vst.msk [vmem:[#allocation13] sm:$0xff] %vm170, %v3671
    %3674 = vst.msk [vmem:[#allocation13 + $0x8] sm:$0xff] %vm170, %v3672
    // Predicated region
    $region106: #{tpu_custom_call.1} parent=1 // pred_check
      _
    $region107: #{tpu_custom_call.1} parent=1 // pred_check_branch
      %3676 = sbr.rel (0) target = $region109
    $region108: #{tpu_custom_call.1} parent=1 // pred_region
      %s3678 = ssub.s32 256, 256
      %3679 = vsyncadd [#allocation4], %s3678
      %s3680 = sshll.u32 [#allocation13], 4
      %s3681 = int_to_ptr.vmem [resolvable:$true] %s3680
      %3686 = dma.vmem_to_hbm [thread:$0]  %s3681, 256, %s20, [#allocation4], 128, 128, 8
    $region109: #{tpu_custom_call.1} parent=1 // pred_fallthru
      _
    // Predicated region
    $region110: #{tpu_custom_call.1} parent=1 // pred_check
      _
    $region111: #{tpu_custom_call.1} parent=1 // pred_check_branch
      %3688 = sbr.rel (0) target = $region113
    $region112: #{tpu_custom_call.1} parent=1 // pred_region
      _
    $region113: #{tpu_custom_call.1} parent=1 // pred_fallthru
      _
    // Predicated region
    $region114: #{tpu_custom_call.1} parent=1 // pred_check
      _
    $region115: #{tpu_custom_call.1} parent=1 // pred_check_branch
      %3690 = sbr.rel (0) target = $region117
    $region116: #{tpu_custom_call.1} parent=1 // pred_region
      _
    $region117: #{tpu_custom_call.1} parent=1 // pred_fallthru
      _
    // Predicated region
    $region118: #{tpu_custom_call.1} parent=1 // pred_check
      _
    $region119: #{tpu_custom_call.1} parent=1 // pred_check_branch
      %3692 = sbr.rel (0) target = $region121
    $region120: #{tpu_custom_call.1} parent=1 // pred_region
      %3693 = dma.done [#allocation4], 256
    $region121: #{tpu_custom_call.1} parent=1 // pred_fallthru
      _
    // Predicated region
    $region122: #{tpu_custom_call.1} parent=1 // pred_check
      _
    $region123: #{tpu_custom_call.1} parent=1 // pred_check_branch
      %3695 = sbr.rel (0) target = $region125
    $region124: #{tpu_custom_call.1} parent=1 // pred_region
      _
    $region125: #{tpu_custom_call.1} parent=1 // pred_fallthru
      _
    // Predicated region
    $region126: #{tpu_custom_call.1} parent=1 // pred_check
      _
    $region127: #{tpu_custom_call.1} parent=1 // pred_check_branch
      %3697 = sbr.rel (0) target = $region129
    $region128: #{tpu_custom_call.1} parent=1 // pred_region
      _
    $region129: #{tpu_custom_call.1} parent=1 // pred_fallthru
      _
    %3698 = vsyncpa [#allocation3], 1
    %3699 = vsyncpa [#allocation6], 1
    %3700 = vsyncpa [#allocation9], 1
    %3701 = vsyncpa [#allocation12], 1
    %3702 = vsyncpa [#allocation4], 1

</llo_original>
